<compile_context>
chip_gen: v6e
topology: v6e:2x2x1
jax: 0.10.0
libtpu: 0.0.40
codegen_flags: <defaults>
</compile_context>

<pallas_src>
import functools

import jax
import jax.numpy as jnp
from jax import lax
from jax.experimental import pallas as pl
from jax.experimental.pallas import tpu as pltpu


def _round_up(x, m):
    return ((x + m - 1) // m) * m


def _conv_kernel(x_ref, w_ref, b_ref, y_ref, s_ref):
    """Fused ReLU + (depthwise 3x3 folded into pointwise 1x1) for one image.

    x_ref: (1, 3, H+2, W, Cin)  -- dim 1 indexes the kw (width) shift
    w_ref: (9, Cin, Cout)       -- fused per-tap weights, tap index = kh*3 + kw
    b_ref: (1, Cout)            -- fused bias (dwb @ pw + pwb)
    y_ref: (1, H, W, Cout)      -- pre-BN output block (pipelined per image)
    s_ref: (1, 2, Cout)         -- per-image [sum, sum-of-squares] over (H, W)
    """
    H = x_ref.shape[2] - 2
    W = x_ref.shape[3]
    Cin = x_ref.shape[4]
    Cout = y_ref.shape[3]

    acc = jnp.zeros((H * W, Cout), jnp.float32)
    for kh in range(3):
        for kw in range(3):
            # Only major-axis (kw, kh) slices -> no misaligned sublane slicing.
            lhs = jnp.maximum(x_ref[0, kw, kh:kh + H, :, :], 0.0)   # fused ReLU
            acc = acc + jnp.dot(lhs.reshape(H * W, Cin),
                                w_ref[kh * 3 + kw],
                                preferred_element_type=jnp.float32)
    acc = acc + b_ref[...].astype(jnp.float32)

    y_ref[0] = acc.reshape(H, W, Cout).astype(y_ref.dtype)
    # Streamed BN partial statistics for this image.
    # TODO(synk): switch to Welford / two-pass stats if N*H*W grows very large.
    s_ref[0, 0:1, :] = jnp.sum(acc, axis=0, keepdims=True)
    s_ref[0, 1:2, :] = jnp.sum(acc * acc, axis=0, keepdims=True)


def _bn_kernel(s_ref, g_ref, b_ref, y_ref, o_ref, *, count, eps):
    """BatchNorm apply (training-mode batch stats) as one FMA per element."""
    tot = jnp.sum(s_ref[...].astype(jnp.float32), axis=0)       # (2, Cout)
    inv_cnt = 1.0 / count
    mean = tot[0:1, :] * inv_cnt                                 # (1, Cout)
    var = tot[1:2, :] * inv_cnt - mean * mean                    # (1, Cout)
    scale = g_ref[...].astype(jnp.float32) * lax.rsqrt(var + eps)
    shift = b_ref[...].astype(jnp.float32) - mean * scale
    cout = o_ref.shape[3]
    o_ref[0] = (y_ref[0].astype(jnp.float32) * scale.reshape(1, 1, cout)
                + shift.reshape(1, 1, cout)).astype(o_ref.dtype)


def _compiler_params(block_bytes):
    # double-buffered blocks + headroom; clamp well under v7x's 64 MiB physical VMEM.
    budget = 2 * block_bytes + (8 << 20)
    budget = min(max(budget, 16 << 20), 48 << 20)
    return pltpu.CompilerParams(dimension_semantics=("parallel",),
                                vmem_limit_bytes=budget)


def triplet_unit_forward(x_nchw, dw_w, dw_b, pw_w, pw_b, gamma, beta,
                         *, stride=1, eps=1e-5):
    """x_nchw: (N, Cin, H, W).  dw_w: (Cin,1,3,3), pw_w: (Cout,Cin,1,1)."""
    assert stride == 1  # TODO(synk): general stride via strided tap prep in wrapper.
    N, Cin, H, W = x_nchw.shape
    Cout = pw_w.shape[0]
    Cp_in = _round_up(Cin, 128)
    Cp_out = _round_up(Cout, 128)
    f32 = jnp.float32

    # ---- wrapper glue: layout, padding, and weight folding -------------------
    x = jnp.transpose(x_nchw, (0, 2, 3, 1)).astype(f32)            # NHWC
    x = jnp.pad(x, ((0, 0), (1, 1), (1, 1), (0, Cp_in - Cin)))     # spatial + lane pad
    # stack the 3 width shifts so the kernel only ever slices major axes
    x_prep = jnp.stack([x[:, :, kw:kw + W, :] for kw in range(3)], axis=1)

    pw_mat = jnp.transpose(pw_w[:, :, 0, 0], (1, 0)).astype(f32)   # (Cin, Cout)
    dw_taps = dw_w[:, 0].reshape(Cin, 9).T.astype(f32)             # (9, Cin)
    w_fused = dw_taps[:, :, None] * pw_mat[None, :, :]             # (9, Cin, Cout)
    w_fused = jnp.pad(w_fused, ((0, 0), (0, Cp_in - Cin), (0, Cp_out - Cout)))
    b_fused = dw_b.astype(f32) @ pw_mat + pw_b.astype(f32)         # (Cout,)
    b_fused = jnp.pad(b_fused, (0, Cp_out - Cout)).reshape(1, Cp_out)
    g_p = jnp.pad(gamma.astype(f32), (0, Cp_out - Cout)).reshape(1, Cp_out)
    bt_p = jnp.pad(beta.astype(f32), (0, Cp_out - Cout)).reshape(1, Cp_out)

    # TODO(synk): add H-tiling with a halo for large feature maps (keeps per-step
    # VMEM bounded on 64 MiB v7x parts); unnecessary at these sizes.
    # TODO(synk): cast matmul operands to bf16 when inputs are bf16-representable
    # (f32 kept here to match the fp32 PyTorch reference tightly).

    # ---- pass 1: fused ReLU + conv + streamed per-image BN partial stats -----
    blk1 = 4 * (3 * (H + 2) * W * Cp_in + 9 * Cp_in * Cp_out + Cp_out
                + H * W * Cp_out + 2 * Cp_out)
    y_pre, stats = pl.pallas_call(
        _conv_kernel,
        out_shape=(jax.ShapeDtypeStruct((N, H, W, Cp_out), f32),
                   jax.ShapeDtypeStruct((N, 2, Cp_out), f32)),
        grid=(N,),
        in_specs=[
            pl.BlockSpec((1, 3, H + 2, W, Cp_in), lambda n: (n, 0, 0, 0, 0)),
            pl.BlockSpec((9, Cp_in, Cp_out), lambda n: (0, 0, 0)),
            pl.BlockSpec((1, Cp_out), lambda n: (0, 0)),
        ],
        out_specs=(pl.BlockSpec((1, H, W, Cp_out), lambda n: (n, 0, 0, 0)),
                   pl.BlockSpec((1, 2, Cp_out), lambda n: (n, 0, 0))),
        compiler_params=_compiler_params(blk1),
    )(x_prep, w_fused, b_fused)

    # ---- pass 2: BatchNorm apply, in place over y_pre, pipelined per image ---
    blk2 = 4 * (N * 2 * Cp_out + 2 * Cp_out + 2 * H * W * Cp_out)
    out_p = pl.pallas_call(
        functools.partial(_bn_kernel, count=float(N * H * W), eps=eps),
        out_shape=jax.ShapeDtypeStruct((N, H, W, Cp_out), f32),
        grid=(N,),
        in_specs=[
            pl.BlockSpec((N, 2, Cp_out), lambda n: (0, 0, 0)),
            pl.BlockSpec((1, Cp_out), lambda n: (0, 0)),
            pl.BlockSpec((1, Cp_out), lambda n: (0, 0)),
            pl.BlockSpec((1, H, W, Cp_out), lambda n: (n, 0, 0, 0)),
        ],
        out_specs=pl.BlockSpec((1, H, W, Cp_out), lambda n: (n, 0, 0, 0)),
        input_output_aliases={3: 0},
        compiler_params=_compiler_params(blk2),
    )(stats, g_p, bt_p, y_pre)

    # ---- wrapper glue: drop channel padding, back to PyTorch NCHW ------------
    return jnp.transpose(out_p[..., :Cout], (0, 3, 1, 2))


def _reference(x_nchw, dw_w, dw_b, pw_w, pw_b, gamma, beta, eps=1e-5):
    """Pure-JAX reference mirroring the PyTorch module (training-mode BN)."""
    Cin = x_nchw.shape[1]
    out = jnp.maximum(x_nchw, 0.0)
    out = lax.conv_general_dilated(
        out, dw_w, window_strides=(1, 1), padding=((1, 1), (1, 1)),
        dimension_numbers=("NCHW", "OIHW", "NCHW"),
        feature_group_count=Cin) + dw_b[None, :, None, None]
    out = lax.conv_general_dilated(
        out, pw_w, window_strides=(1, 1), padding="VALID",
        dimension_numbers=("NCHW", "OIHW", "NCHW")) + pw_b[None, :, None, None]
    mean = jnp.mean(out, axis=(0, 2, 3), keepdims=True)
    var = jnp.mean((out - mean) ** 2, axis=(0, 2, 3), keepdims=True)
    return ((out - mean) * lax.rsqrt(var + eps)
            * gamma[None, :, None, None] + beta[None, :, None, None])


if __name__ == "__main__":
    N, Cin, H, W = 2, 4, 16, 16
    Cout = 8

    key = jax.random.PRNGKey(0)
    kx, k1, k2, k3, k4, k5, k6 = jax.random.split(key, 7)

    x = jax.random.normal(kx, (N, Cin, H, W), jnp.float32)
    # parameter shapes follow nn.Conv2d / nn.BatchNorm2d in the module __init__
    dw_w = 0.2 * jax.random.normal(k1, (Cin, 1, 3, 3), jnp.float32)
    dw_b = 0.1 * jax.random.normal(k2, (Cin,), jnp.float32)
    pw_w = 0.2 * jax.random.normal(k3, (Cout, Cin, 1, 1), jnp.float32)
    pw_b = 0.1 * jax.random.normal(k4, (Cout,), jnp.float32)
    gamma = 1.0 + 0.1 * jax.random.normal(k5, (Cout,), jnp.float32)
    beta = 0.1 * jax.random.normal(k6, (Cout,), jnp.float32)

    fwd = jax.jit(triplet_unit_forward)
    out = fwd(x, dw_w, dw_b, pw_w, pw_b, gamma, beta)
    out = jax.block_until_ready(out)

    ref = _reference(x, dw_w, dw_b, pw_w, pw_b, gamma, beta)
    assert out.shape == (N, Cout, H, W)
    assert jnp.allclose(out, ref, rtol=1e-4, atol=1e-4), (
        float(jnp.max(jnp.abs(out - ref))))

    print("KERNEL_OK")
</pallas_src>

<mosaic_0001>
module attributes {stable_mosaic.version = 11 : i64} {
  func.func @_bn_kernel(%arg0: i32, %arg1: memref<2x2x128xf32, #tpu.memory_space<vmem>>, %arg2: memref<1x128xf32, #tpu.memory_space<vmem>>, %arg3: memref<1x128xf32, #tpu.memory_space<vmem>>, %arg4: memref<1x16x16x128xf32, #tpu.memory_space<vmem>>, %arg5: memref<1x16x16x128xf32, #tpu.memory_space<vmem>>) attributes {dimension_semantics = [#tpu.dimension_semantics<parallel>], iteration_bounds = array<i64: 2>, scalar_prefetch = 0 : i64, scratch_operands = 0 : i64, tpu.core_type = #tpu.core_type<tc>, window_params = [{pipeline_mode = #tpu.pipeline_mode<synchronous>, transform_indices = @transform_0, window_bounds = array<i64: 2, 2, 128>}, {pipeline_mode = #tpu.pipeline_mode<synchronous>, transform_indices = @transform_1, window_bounds = array<i64: 1, 128>}, {pipeline_mode = #tpu.pipeline_mode<synchronous>, transform_indices = @transform_2, window_bounds = array<i64: 1, 128>}, {transform_indices = @transform_3, window_bounds = array<i64: 1, 16, 16, 128>}, {transform_indices = @transform_4, window_bounds = array<i64: 1, 16, 16, 128>}]} {
    %c0 = arith.constant 0 : index
    %c0_0 = arith.constant 0 : index
    %c0_1 = arith.constant 0 : index
    %0 = vector.load %arg1[%c0, %c0_0, %c0_1] : memref<2x2x128xf32, #tpu.memory_space<vmem>>, vector<2x2x128xf32>
    %cst = arith.constant dense<0.000000e+00> : vector<2x128xf32>
    %1 = vector.multi_reduction <add>, %0, %cst [0] : vector<2x2x128xf32> to vector<2x128xf32>
    %2 = vector.extract_strided_slice %1 {offsets = [0, 0], sizes = [1, 128], strides = [1, 1]} : vector<2x128xf32> to vector<1x128xf32>
    %cst_2 = arith.constant 0.001953125 : f32
    %3 = vector.broadcast %cst_2 : f32 to vector<1x128xf32>
    %4 = arith.mulf %2, %3 : vector<1x128xf32>
    %5 = vector.extract_strided_slice %1 {offsets = [1, 0], sizes = [1, 128], strides = [1, 1]} : vector<2x128xf32> to vector<1x128xf32>
    %cst_3 = arith.constant 0.001953125 : f32
    %6 = vector.broadcast %cst_3 : f32 to vector<1x128xf32>
    %7 = arith.mulf %5, %6 : vector<1x128xf32>
    %8 = arith.mulf %4, %4 : vector<1x128xf32>
    %9 = arith.subf %7, %8 : vector<1x128xf32>
    %c0_4 = arith.constant 0 : index
    %c0_5 = arith.constant 0 : index
    %10 = vector.load %arg2[%c0_4, %c0_5] : memref<1x128xf32, #tpu.memory_space<vmem>>, vector<1x128xf32>
    %cst_6 = arith.constant 9.99999974E-6 : f32
    %11 = vector.broadcast %cst_6 : f32 to vector<1x128xf32>
    %12 = arith.addf %9, %11 : vector<1x128xf32>
    %13 = math.rsqrt %12 : vector<1x128xf32>
    %14 = arith.mulf %10, %13 : vector<1x128xf32>
    %c0_7 = arith.constant 0 : index
    %c0_8 = arith.constant 0 : index
    %15 = vector.load %arg3[%c0_7, %c0_8] : memref<1x128xf32, #tpu.memory_space<vmem>>, vector<1x128xf32>
    %16 = arith.mulf %4, %14 : vector<1x128xf32>
    %17 = arith.subf %15, %16 : vector<1x128xf32>
    %c0_9 = arith.constant 0 : index
    %c0_10 = arith.constant 0 : index
    %c0_11 = arith.constant 0 : index
    %c0_12 = arith.constant 0 : index
    %18 = vector.load %arg4[%c0_9, %c0_10, %c0_11, %c0_12] : memref<1x16x16x128xf32, #tpu.memory_space<vmem>>, vector<1x16x16x128xf32>
    %19 = vector.shape_cast %18 : vector<1x16x16x128xf32> to vector<16x16x128xf32>
    %20 = vector.shape_cast %14 : vector<1x128xf32> to vector<1x1x128xf32>
    %21 = vector.broadcast %20 : vector<1x1x128xf32> to vector<16x16x128xf32>
    %22 = arith.mulf %19, %21 : vector<16x16x128xf32>
    %23 = vector.shape_cast %17 : vector<1x128xf32> to vector<1x1x128xf32>
    %24 = vector.broadcast %23 : vector<1x1x128xf32> to vector<16x16x128xf32>
    %25 = arith.addf %22, %24 : vector<16x16x128xf32>
    %c0_13 = arith.constant 0 : index
    %c0_14 = arith.constant 0 : index
    %c0_15 = arith.constant 0 : index
    %c0_16 = arith.constant 0 : index
    %26 = vector.load %arg5[%c0_13, %c0_14, %c0_15, %c0_16] : memref<1x16x16x128xf32, #tpu.memory_space<vmem>>, vector<1x16x16x128xf32>
    %27 = vector.shape_cast %26 : vector<1x16x16x128xf32> to vector<16x16x128xf32>
    %28 = vector.shape_cast %25 : vector<16x16x128xf32> to vector<1x16x16x128xf32>
    tpu.vector_store %arg5[%c0_13, %c0_14, %c0_15, %c0_16], %28 {strides = array<i32>} : memref<1x16x16x128xf32, #tpu.memory_space<vmem>>, vector<1x16x16x128xf32>,
    return
  }
  func.func @transform_0(%arg0: i32) -> (i32, i32, i32) {
    %c0_i32 = arith.constant 0 : i32
    %c0_i32_0 = arith.constant 0 : i32
    %c0_i32_1 = arith.constant 0 : i32
    %c0_i32_2 = arith.constant 0 : i32
    return %c0_i32, %c0_i32_0, %c0_i32_1 : i32, i32, i32
  }
  func.func @transform_1(%arg0: i32) -> (i32, i32) {
    %c0_i32 = arith.constant 0 : i32
    %c0_i32_0 = arith.constant 0 : i32
    %c0_i32_1 = arith.constant 0 : i32
    return %c0_i32, %c0_i32_0 : i32, i32
  }
  func.func @transform_2(%arg0: i32) -> (i32, i32) {
    %c0_i32 = arith.constant 0 : i32
    %c0_i32_0 = arith.constant 0 : i32
    %c0_i32_1 = arith.constant 0 : i32
    return %c0_i32, %c0_i32_0 : i32, i32
  }
  func.func @transform_3(%arg0: i32) -> (i32, i32, i32, i32) {
    %c0_i32 = arith.constant 0 : i32
    %c0_i32_0 = arith.constant 0 : i32
    %c0_i32_1 = arith.constant 0 : i32
    %c0_i32_2 = arith.constant 0 : i32
    return %arg0, %c0_i32, %c0_i32_0, %c0_i32_1 : i32, i32, i32, i32
  }
  func.func @transform_4(%arg0: i32) -> (i32, i32, i32, i32) {
    %c0_i32 = arith.constant 0 : i32
    %c0_i32_0 = arith.constant 0 : i32
    %c0_i32_1 = arith.constant 0 : i32
    %c0_i32_2 = arith.constant 0 : i32
    return %arg0, %c0_i32, %c0_i32_0, %c0_i32_1 : i32, i32, i32, i32
  }
}

module attributes {stable_mosaic.version = 11 : i64} {
  func.func @_conv_kernel(%arg0: i32, %arg1: memref<1x3x18x16x128xf32, #tpu.memory_space<vmem>>, %arg2: memref<9x128x128xf32, #tpu.memory_space<vmem>>, %arg3: memref<1x128xf32, #tpu.memory_space<vmem>>, %arg4: memref<1x16x16x128xf32, #tpu.memory_space<vmem>>, %arg5: memref<1x2x128xf32, #tpu.memory_space<vmem>>) attributes {dimension_semantics = [#tpu.dimension_semantics<parallel>], iteration_bounds = array<i64: 2>, scalar_prefetch = 0 : i64, scratch_operands = 0 : i64, tpu.core_type = #tpu.core_type<tc>, window_params = [{transform_indices = @transform_0, window_bounds = array<i64: 1, 3, 18, 16, 128>}, {pipeline_mode = #tpu.pipeline_mode<synchronous>, transform_indices = @transform_1, window_bounds = array<i64: 9, 128, 128>}, {pipeline_mode = #tpu.pipeline_mode<synchronous>, transform_indices = @transform_2, window_bounds = array<i64: 1, 128>}, {transform_indices = @transform_3, window_bounds = array<i64: 1, 16, 16, 128>}, {transform_indices = @transform_4, window_bounds = array<i64: 1, 2, 128>}]} {
    %cst = arith.constant 0.000000e+00 : f32
    %0 = vector.broadcast %cst : f32 to vector<256x128xf32>
    %c0 = arith.constant 0 : index
    %c0_0 = arith.constant 0 : index
    %c0_1 = arith.constant 0 : index
    %c0_2 = arith.constant 0 : index
    %c0_3 = arith.constant 0 : index
    %1 = vector.load %arg1[%c0, %c0_0, %c0_1, %c0_2, %c0_3] : memref<1x3x18x16x128xf32, #tpu.memory_space<vmem>>, vector<1x1x16x16x128xf32>
    %2 = vector.shape_cast %1 : vector<1x1x16x16x128xf32> to vector<16x16x128xf32>
    %cst_4 = arith.constant 0.000000e+00 : f32
    %3 = vector.broadcast %cst_4 : f32 to vector<16x16x128xf32>
    %4 = arith.maximumf %2, %3 : vector<16x16x128xf32>
    %5 = vector.shape_cast %4 : vector<16x16x128xf32> to vector<256x128xf32>
    %c0_5 = arith.constant 0 : index
    %c0_6 = arith.constant 0 : index
    %c0_7 = arith.constant 0 : index
    %6 = vector.load %arg2[%c0_5, %c0_6, %c0_7] : memref<9x128x128xf32, #tpu.memory_space<vmem>>, vector<1x128x128xf32>
    %7 = vector.shape_cast %6 : vector<1x128x128xf32> to vector<128x128xf32>
    %cst_8 = arith.constant dense<0.000000e+00> : vector<256x128xf32>
    %8 = tpu.matmul %5, %7, %cst_8 {dimension_numbers = #tpu.dot_dimension_numbers<[1], [0], [0], [1], [0, 0, 1, 1], [], []>} : vector<256x128xf32>, vector<128x128xf32>, vector<256x128xf32> -> vector<256x128xf32>
    %9 = arith.addf %0, %8 : vector<256x128xf32>
    %c0_9 = arith.constant 0 : index
    %c1 = arith.constant 1 : index
    %c0_10 = arith.constant 0 : index
    %c0_11 = arith.constant 0 : index
    %c0_12 = arith.constant 0 : index
    %10 = vector.load %arg1[%c0_9, %c1, %c0_10, %c0_11, %c0_12] : memref<1x3x18x16x128xf32, #tpu.memory_space<vmem>>, vector<1x1x16x16x128xf32>
    %11 = vector.shape_cast %10 : vector<1x1x16x16x128xf32> to vector<16x16x128xf32>
    %cst_13 = arith.constant 0.000000e+00 : f32
    %12 = vector.broadcast %cst_13 : f32 to vector<16x16x128xf32>
    %13 = arith.maximumf %11, %12 : vector<16x16x128xf32>
    %14 = vector.shape_cast %13 : vector<16x16x128xf32> to vector<256x128xf32>
    %c1_14 = arith.constant 1 : index
    %c0_15 = arith.constant 0 : index
    %c0_16 = arith.constant 0 : index
    %15 = vector.load %arg2[%c1_14, %c0_15, %c0_16] : memref<9x128x128xf32, #tpu.memory_space<vmem>>, vector<1x128x128xf32>
    %16 = vector.shape_cast %15 : vector<1x128x128xf32> to vector<128x128xf32>
    %cst_17 = arith.constant dense<0.000000e+00> : vector<256x128xf32>
    %17 = tpu.matmul %14, %16, %cst_17 {dimension_numbers = #tpu.dot_dimension_numbers<[1], [0], [0], [1], [0, 0, 1, 1], [], []>} : vector<256x128xf32>, vector<128x128xf32>, vector<256x128xf32> -> vector<256x128xf32>
    %18 = arith.addf %9, %17 : vector<256x128xf32>
    %c0_18 = arith.constant 0 : index
    %c2 = arith.constant 2 : index
    %c0_19 = arith.constant 0 : index
    %c0_20 = arith.constant 0 : index
    %c0_21 = arith.constant 0 : index
    %19 = vector.load %arg1[%c0_18, %c2, %c0_19, %c0_20, %c0_21] : memref<1x3x18x16x128xf32, #tpu.memory_space<vmem>>, vector<1x1x16x16x128xf32>
    %20 = vector.shape_cast %19 : vector<1x1x16x16x128xf32> to vector<16x16x128xf32>
    %cst_22 = arith.constant 0.000000e+00 : f32
    %21 = vector.broadcast %cst_22 : f32 to vector<16x16x128xf32>
    %22 = arith.maximumf %20, %21 : vector<16x16x128xf32>
    %23 = vector.shape_cast %22 : vector<16x16x128xf32> to vector<256x128xf32>
    %c2_23 = arith.constant 2 : index
    %c0_24 = arith.constant 0 : index
    %c0_25 = arith.constant 0 : index
    %24 = vector.load %arg2[%c2_23, %c0_24, %c0_25] : memref<9x128x128xf32, #tpu.memory_space<vmem>>, vector<1x128x128xf32>
    %25 = vector.shape_cast %24 : vector<1x128x128xf32> to vector<128x128xf32>
    %cst_26 = arith.constant dense<0.000000e+00> : vector<256x128xf32>
    %26 = tpu.matmul %23, %25, %cst_26 {dimension_numbers = #tpu.dot_dimension_numbers<[1], [0], [0], [1], [0, 0, 1, 1], [], []>} : vector<256x128xf32>, vector<128x128xf32>, vector<256x128xf32> -> vector<256x128xf32>
    %27 = arith.addf %18, %26 : vector<256x128xf32>
    %c0_27 = arith.constant 0 : index
    %c0_28 = arith.constant 0 : index
    %c1_29 = arith.constant 1 : index
    %c0_30 = arith.constant 0 : index
    %c0_31 = arith.constant 0 : index
    %28 = vector.load %arg1[%c0_27, %c0_28, %c1_29, %c0_30, %c0_31] : memref<1x3x18x16x128xf32, #tpu.memory_space<vmem>>, vector<1x1x16x16x128xf32>
    %29 = vector.shape_cast %28 : vector<1x1x16x16x128xf32> to vector<16x16x128xf32>
    %cst_32 = arith.constant 0.000000e+00 : f32
    %30 = vector.broadcast %cst_32 : f32 to vector<16x16x128xf32>
    %31 = arith.maximumf %29, %30 : vector<16x16x128xf32>
    %32 = vector.shape_cast %31 : vector<16x16x128xf32> to vector<256x128xf32>
    %c3 = arith.constant 3 : index
    %c0_33 = arith.constant 0 : index
    %c0_34 = arith.constant 0 : index
    %33 = vector.load %arg2[%c3, %c0_33, %c0_34] : memref<9x128x128xf32, #tpu.memory_space<vmem>>, vector<1x128x128xf32>
    %34 = vector.shape_cast %33 : vector<1x128x128xf32> to vector<128x128xf32>
    %cst_35 = arith.constant dense<0.000000e+00> : vector<256x128xf32>
    %35 = tpu.matmul %32, %34, %cst_35 {dimension_numbers = #tpu.dot_dimension_numbers<[1], [0], [0], [1], [0, 0, 1, 1], [], []>} : vector<256x128xf32>, vector<128x128xf32>, vector<256x128xf32> -> vector<256x128xf32>
    %36 = arith.addf %27, %35 : vector<256x128xf32>
    %c0_36 = arith.constant 0 : index
    %c1_37 = arith.constant 1 : index
    %c1_38 = arith.constant 1 : index
    %c0_39 = arith.constant 0 : index
    %c0_40 = arith.constant 0 : index
    %37 = vector.load %arg1[%c0_36, %c1_37, %c1_38, %c0_39, %c0_40] : memref<1x3x18x16x128xf32, #tpu.memory_space<vmem>>, vector<1x1x16x16x128xf32>
    %38 = vector.shape_cast %37 : vector<1x1x16x16x128xf32> to vector<16x16x128xf32>
    %cst_41 = arith.constant 0.000000e+00 : f32
    %39 = vector.broadcast %cst_41 : f32 to vector<16x16x128xf32>
    %40 = arith.maximumf %38, %39 : vector<16x16x128xf32>
    %41 = vector.shape_cast %40 : vector<16x16x128xf32> to vector<256x128xf32>
    %c4 = arith.constant 4 : index
    %c0_42 = arith.constant 0 : index
    %c0_43 = arith.constant 0 : index
    %42 = vector.load %arg2[%c4, %c0_42, %c0_43] : memref<9x128x128xf32, #tpu.memory_space<vmem>>, vector<1x128x128xf32>
    %43 = vector.shape_cast %42 : vector<1x128x128xf32> to vector<128x128xf32>
    %cst_44 = arith.constant dense<0.000000e+00> : vector<256x128xf32>
    %44 = tpu.matmul %41, %43, %cst_44 {dimension_numbers = #tpu.dot_dimension_numbers<[1], [0], [0], [1], [0, 0, 1, 1], [], []>} : vector<256x128xf32>, vector<128x128xf32>, vector<256x128xf32> -> vector<256x128xf32>
    %45 = arith.addf %36, %44 : vector<256x128xf32>
    %c0_45 = arith.constant 0 : index
    %c2_46 = arith.constant 2 : index
    %c1_47 = arith.constant 1 : index
    %c0_48 = arith.constant 0 : index
    %c0_49 = arith.constant 0 : index
    %46 = vector.load %arg1[%c0_45, %c2_46, %c1_47, %c0_48, %c0_49] : memref<1x3x18x16x128xf32, #tpu.memory_space<vmem>>, vector<1x1x16x16x128xf32>
    %47 = vector.shape_cast %46 : vector<1x1x16x16x128xf32> to vector<16x16x128xf32>
    %cst_50 = arith.constant 0.000000e+00 : f32
    %48 = vector.broadcast %cst_50 : f32 to vector<16x16x128xf32>
    %49 = arith.maximumf %47, %48 : vector<16x16x128xf32>
    %50 = vector.shape_cast %49 : vector<16x16x128xf32> to vector<256x128xf32>
    %c5 = arith.constant 5 : index
    %c0_51 = arith.constant 0 : index
    %c0_52 = arith.constant 0 : index
    %51 = vector.load %arg2[%c5, %c0_51, %c0_52] : memref<9x128x128xf32, #tpu.memory_space<vmem>>, vector<1x128x128xf32>
    %52 = vector.shape_cast %51 : vector<1x128x128xf32> to vector<128x128xf32>
    %cst_53 = arith.constant dense<0.000000e+00> : vector<256x128xf32>
    %53 = tpu.matmul %50, %52, %cst_53 {dimension_numbers = #tpu.dot_dimension_numbers<[1], [0], [0], [1], [0, 0, 1, 1], [], []>} : vector<256x128xf32>, vector<128x128xf32>, vector<256x128xf32> -> vector<256x128xf32>
    %54 = arith.addf %45, %53 : vector<256x128xf32>
    %c0_54 = arith.constant 0 : index
    %c0_55 = arith.constant 0 : index
    %c2_56 = arith.constant 2 : index
    %c0_57 = arith.constant 0 : index
    %c0_58 = arith.constant 0 : index
    %55 = vector.load %arg1[%c0_54, %c0_55, %c2_56, %c0_57, %c0_58] : memref<1x3x18x16x128xf32, #tpu.memory_space<vmem>>, vector<1x1x16x16x128xf32>
    %56 = vector.shape_cast %55 : vector<1x1x16x16x128xf32> to vector<16x16x128xf32>
    %cst_59 = arith.constant 0.000000e+00 : f32
    %57 = vector.broadcast %cst_59 : f32 to vector<16x16x128xf32>
    %58 = arith.maximumf %56, %57 : vector<16x16x128xf32>
    %59 = vector.shape_cast %58 : vector<16x16x128xf32> to vector<256x128xf32>
    %c6 = arith.constant 6 : index
    %c0_60 = arith.constant 0 : index
    %c0_61 = arith.constant 0 : index
    %60 = vector.load %arg2[%c6, %c0_60, %c0_61] : memref<9x128x128xf32, #tpu.memory_space<vmem>>, vector<1x128x128xf32>
    %61 = vector.shape_cast %60 : vector<1x128x128xf32> to vector<128x128xf32>
    %cst_62 = arith.constant dense<0.000000e+00> : vector<256x128xf32>
    %62 = tpu.matmul %59, %61, %cst_62 {dimension_numbers = #tpu.dot_dimension_numbers<[1], [0], [0], [1], [0, 0, 1, 1], [], []>} : vector<256x128xf32>, vector<128x128xf32>, vector<256x128xf32> -> vector<256x128xf32>
    %63 = arith.addf %54, %62 : vector<256x128xf32>
    %c0_63 = arith.constant 0 : index
    %c1_64 = arith.constant 1 : index
    %c2_65 = arith.constant 2 : index
    %c0_66 = arith.constant 0 : index
    %c0_67 = arith.constant 0 : index
    %64 = vector.load %arg1[%c0_63, %c1_64, %c2_65, %c0_66, %c0_67] : memref<1x3x18x16x128xf32, #tpu.memory_space<vmem>>, vector<1x1x16x16x128xf32>
    %65 = vector.shape_cast %64 : vector<1x1x16x16x128xf32> to vector<16x16x128xf32>
    %cst_68 = arith.constant 0.000000e+00 : f32
    %66 = vector.broadcast %cst_68 : f32 to vector<16x16x128xf32>
    %67 = arith.maximumf %65, %66 : vector<16x16x128xf32>
    %68 = vector.shape_cast %67 : vector<16x16x128xf32> to vector<256x128xf32>
    %c7 = arith.constant 7 : index
    %c0_69 = arith.constant 0 : index
    %c0_70 = arith.constant 0 : index
    %69 = vector.load %arg2[%c7, %c0_69, %c0_70] : memref<9x128x128xf32, #tpu.memory_space<vmem>>, vector<1x128x128xf32>
    %70 = vector.shape_cast %69 : vector<1x128x128xf32> to vector<128x128xf32>
    %cst_71 = arith.constant dense<0.000000e+00> : vector<256x128xf32>
    %71 = tpu.matmul %68, %70, %cst_71 {dimension_numbers = #tpu.dot_dimension_numbers<[1], [0], [0], [1], [0, 0, 1, 1], [], []>} : vector<256x128xf32>, vector<128x128xf32>, vector<256x128xf32> -> vector<256x128xf32>
    %72 = arith.addf %63, %71 : vector<256x128xf32>
    %c0_72 = arith.constant 0 : index
    %c2_73 = arith.constant 2 : index
    %c2_74 = arith.constant 2 : index
    %c0_75 = arith.constant 0 : index
    %c0_76 = arith.constant 0 : index
    %73 = vector.load %arg1[%c0_72, %c2_73, %c2_74, %c0_75, %c0_76] : memref<1x3x18x16x128xf32, #tpu.memory_space<vmem>>, vector<1x1x16x16x128xf32>
    %74 = vector.shape_cast %73 : vector<1x1x16x16x128xf32> to vector<16x16x128xf32>
    %cst_77 = arith.constant 0.000000e+00 : f32
    %75 = vector.broadcast %cst_77 : f32 to vector<16x16x128xf32>
    %76 = arith.maximumf %74, %75 : vector<16x16x128xf32>
    %77 = vector.shape_cast %76 : vector<16x16x128xf32> to vector<256x128xf32>
    %c8 = arith.constant 8 : index
    %c0_78 = arith.constant 0 : index
    %c0_79 = arith.constant 0 : index
    %78 = vector.load %arg2[%c8, %c0_78, %c0_79] : memref<9x128x128xf32, #tpu.memory_space<vmem>>, vector<1x128x128xf32>
    %79 = vector.shape_cast %78 : vector<1x128x128xf32> to vector<128x128xf32>
    %cst_80 = arith.constant dense<0.000000e+00> : vector<256x128xf32>
    %80 = tpu.matmul %77, %79, %cst_80 {dimension_numbers = #tpu.dot_dimension_numbers<[1], [0], [0], [1], [0, 0, 1, 1], [], []>} : vector<256x128xf32>, vector<128x128xf32>, vector<256x128xf32> -> vector<256x128xf32>
    %81 = arith.addf %72, %80 : vector<256x128xf32>
    %c0_81 = arith.constant 0 : index
    %c0_82 = arith.constant 0 : index
    %82 = vector.load %arg3[%c0_81, %c0_82] : memref<1x128xf32, #tpu.memory_space<vmem>>, vector<1x128xf32>
    %83 = vector.broadcast %82 : vector<1x128xf32> to vector<256x128xf32>
    %84 = arith.addf %81, %83 : vector<256x128xf32>
    %85 = vector.shape_cast %84 : vector<256x128xf32> to vector<16x16x128xf32>
    %c0_83 = arith.constant 0 : index
    %c0_84 = arith.constant 0 : index
    %c0_85 = arith.constant 0 : index
    %c0_86 = arith.constant 0 : index
    %86 = vector.load %arg4[%c0_83, %c0_84, %c0_85, %c0_86] : memref<1x16x16x128xf32, #tpu.memory_space<vmem>>, vector<1x16x16x128xf32>
    %87 = vector.shape_cast %86 : vector<1x16x16x128xf32> to vector<16x16x128xf32>
    %88 = vector.shape_cast %85 : vector<16x16x128xf32> to vector<1x16x16x128xf32>
    tpu.vector_store %arg4[%c0_83, %c0_84, %c0_85, %c0_86], %88 {strides = array<i32>} : memref<1x16x16x128xf32, #tpu.memory_space<vmem>>, vector<1x16x16x128xf32>,
    %cst_87 = arith.constant dense<0.000000e+00> : vector<128xf32>
    %89 = vector.multi_reduction <add>, %84, %cst_87 [0] : vector<256x128xf32> to vector<128xf32>
    %90 = vector.shape_cast %89 : vector<128xf32> to vector<1x128xf32>
    %c0_88 = arith.constant 0 : index
    %c0_89 = arith.constant 0 : index
    %c0_90 = arith.constant 0 : index
    %91 = vector.load %arg5[%c0_88, %c0_89, %c0_90] : memref<1x2x128xf32, #tpu.memory_space<vmem>>, vector<1x1x128xf32>
    %92 = vector.shape_cast %91 : vector<1x1x128xf32> to vector<1x128xf32>
    %93 = vector.shape_cast %90 : vector<1x128xf32> to vector<1x1x128xf32>
    tpu.vector_store %arg5[%c0_88, %c0_89, %c0_90], %93 {strides = array<i32>} : memref<1x2x128xf32, #tpu.memory_space<vmem>>, vector<1x1x128xf32>,
    %94 = arith.mulf %84, %84 : vector<256x128xf32>
    %cst_91 = arith.constant dense<0.000000e+00> : vector<128xf32>
    %95 = vector.multi_reduction <add>, %94, %cst_91 [0] : vector<256x128xf32> to vector<128xf32>
    %96 = vector.shape_cast %95 : vector<128xf32> to vector<1x128xf32>
    %c0_92 = arith.constant 0 : index
    %c1_93 = arith.constant 1 : index
    %c0_94 = arith.constant 0 : index
    %97 = vector.load %arg5[%c0_92, %c1_93, %c0_94] : memref<1x2x128xf32, #tpu.memory_space<vmem>>, vector<1x1x128xf32>
    %98 = vector.shape_cast %97 : vector<1x1x128xf32> to vector<1x128xf32>
    %99 = vector.shape_cast %96 : vector<1x128xf32> to vector<1x1x128xf32>
    tpu.vector_store %arg5[%c0_92, %c1_93, %c0_94], %99 {strides = array<i32>} : memref<1x2x128xf32, #tpu.memory_space<vmem>>, vector<1x1x128xf32>,
    return
  }
  func.func @transform_0(%arg0: i32) -> (i32, i32, i32, i32, i32) {
    %c0_i32 = arith.constant 0 : i32
    %c0_i32_0 = arith.constant 0 : i32
    %c0_i32_1 = arith.constant 0 : i32
    %c0_i32_2 = arith.constant 0 : i32
    %c0_i32_3 = arith.constant 0 : i32
    return %arg0, %c0_i32, %c0_i32_0, %c0_i32_1, %c0_i32_2 : i32, i32, i32, i32, i32
  }
  func.func @transform_1(%arg0: i32) -> (i32, i32, i32) {
    %c0_i32 = arith.constant 0 : i32
    %c0_i32_0 = arith.constant 0 : i32
    %c0_i32_1 = arith.constant 0 : i32
    %c0_i32_2 = arith.constant 0 : i32
    return %c0_i32, %c0_i32_0, %c0_i32_1 : i32, i32, i32
  }
  func.func @transform_2(%arg0: i32) -> (i32, i32) {
    %c0_i32 = arith.constant 0 : i32
    %c0_i32_0 = arith.constant 0 : i32
    %c0_i32_1 = arith.constant 0 : i32
    return %c0_i32, %c0_i32_0 : i32, i32
  }
  func.func @transform_3(%arg0: i32) -> (i32, i32, i32, i32) {
    %c0_i32 = arith.constant 0 : i32
    %c0_i32_0 = arith.constant 0 : i32
    %c0_i32_1 = arith.constant 0 : i32
    %c0_i32_2 = arith.constant 0 : i32
    return %arg0, %c0_i32, %c0_i32_0, %c0_i32_1 : i32, i32, i32, i32
  }
  func.func @transform_4(%arg0: i32) -> (i32, i32, i32) {
    %c0_i32 = arith.constant 0 : i32
    %c0_i32_0 = arith.constant 0 : i32
    %c0_i32_1 = arith.constant 0 : i32
    return %arg0, %c0_i32, %c0_i32_0 : i32, i32, i32
  }
}

</mosaic_0001>

<llo_original>
// kernel: triplet_unit_forward.3
$region0: #{triplet_unit_forward.3}
  #allocation0 [shape = 'u32[]', space=smem, size = 0x4, offset = 0x4, fixed_abs, tag = 'smem constant byte address 0x4 - core index']
  #allocation1 [shape = 'u32[144,128]{1,0:T(1,128)}', space=vmem, size = 0x12000, scoped, tag = 'internal scratch']
  %s0 = inlined_call_operand.vmem [shape: f32[2,2,128], index: 0, kind: input, shape index: {}]
  %s1 = inlined_call_operand.vmem [shape: f32[1,128], index: 1, kind: input, shape index: {}]
  %s2 = inlined_call_operand.vmem [shape: f32[1,128], index: 2, kind: input, shape index: {}]
  %s3 = inlined_call_operand.vmem [shape: f32[2,16,16,128], index: 3, kind: input, shape index: {}, may-alias: {3,4}]
  %s4 = inlined_call_operand.vmem [shape: f32[2,16,16,128], index: 4, kind: output, shape index: {}, may-alias: {3,4}]
  %s5 = sld [smem:[#allocation0]]
  $region49: #{triplet_unit_forward.3} parent=0
    _
  %s7 = ssub.s32 1, %s5
  %s8 = scalar_select 0, %s7, %s5
  loop: start=0, step=1, limit=4
  $region2: #{triplet_unit_forward.3} parent=0 // loop_pre_header
    _
  $region3: #{triplet_unit_forward.3} parent=0 // loop_header
    %s10 = sphi 0, %s14
    %p11 = scmp.ge.s32.totalorder %s10, 4
    %s18 = sphi 0, %s18
    %s20 = sphi 0, %s18
    %s21 = sphi 0, %s20
    %s35 = sphi 0, %s21
    %s39 = sphi 0, %s39
    %s41 = sphi 0, %s39
    %s42 = sphi 0, %s41
    %s56 = sphi 0, %s42
    %s60 = sphi 0, %s60
    %s62 = sphi 0, %s60
    %s63 = sphi 0, %s62
    %s77 = sphi 0, %s63
    %s83 = sphi 0, %s85
    %s86 = sphi 0, %s83
    %s87 = sphi 0, %s86
    %s103 = sphi 0, %s87
    %s109 = sphi 0, %s111
    %s112 = sphi 0, %s109
    %s113 = sphi 0, %s112
    %s129 = sphi 0, %s113
  $region4: #{triplet_unit_forward.3} parent=0 // loop_header_branch
    %13 = sbr.rel (%p11) target = $region8
  $region5: #{triplet_unit_forward.3} parent=0 // loop_body
    %s15 = ssub.s32 %s10, 1
    %s16 = ssub.s32 %s10, 2
    %s17 = sadd.s32 %s10, 1
    %s19 = sadd.s32 %s18, 1
    %p22 = scmp.eq.s32.totalorder %s10, 1
    %p23 = scmp.ne.s32.totalorder %s18, %s20
    %p24 = scmp.eq.s32.totalorder %s10, 0
    %p25 = por %p23, %p24
    %p26 = scmp.ne.s32.totalorder %s18, %s20
    %p27 = scmp.eq.s32.totalorder %s15, 1
    %p28 = por %p26, %p27
    %p29 = scmp.ne.s32.totalorder %s20, %s21
    %p30 = scmp.eq.s32.totalorder %s15, 0
    %p31 = por %p29, %p30
    %p32 = scmp.ne.s32.totalorder %s20, %s21
    %p33 = scmp.eq.s32.totalorder %s16, 1
    %p34 = por %p32, %p33
    %p36 = scmp.ne.s32.totalorder %s21, %s35
    %p37 = scmp.eq.s32.totalorder %s16, 0
    %p38 = por %p36, %p37
    %s40 = sadd.s32 %s39, 1
    %p43 = scmp.eq.s32.totalorder %s10, 1
    %p44 = scmp.ne.s32.totalorder %s39, %s41
    %p45 = scmp.eq.s32.totalorder %s10, 0
    %p46 = por %p44, %p45
    %p47 = scmp.ne.s32.totalorder %s39, %s41
    %p48 = scmp.eq.s32.totalorder %s15, 1
    %p49 = por %p47, %p48
    %p50 = scmp.ne.s32.totalorder %s41, %s42
    %p51 = scmp.eq.s32.totalorder %s15, 0
    %p52 = por %p50, %p51
    %p53 = scmp.ne.s32.totalorder %s41, %s42
    %p54 = scmp.eq.s32.totalorder %s16, 1
    %p55 = por %p53, %p54
    %p57 = scmp.ne.s32.totalorder %s42, %s56
    %p58 = scmp.eq.s32.totalorder %s16, 0
    %p59 = por %p57, %p58
    %s61 = sadd.s32 %s60, 1
    %p64 = scmp.eq.s32.totalorder %s10, 1
    %p65 = scmp.ne.s32.totalorder %s60, %s62
    %p66 = scmp.eq.s32.totalorder %s10, 0
    %p67 = por %p65, %p66
    %p68 = scmp.ne.s32.totalorder %s60, %s62
    %p69 = scmp.eq.s32.totalorder %s15, 1
    %p70 = por %p68, %p69
    %p71 = scmp.ne.s32.totalorder %s62, %s63
    %p72 = scmp.eq.s32.totalorder %s15, 0
    %p73 = por %p71, %p72
    %p74 = scmp.ne.s32.totalorder %s62, %s63
    %p75 = scmp.eq.s32.totalorder %s16, 1
    %p76 = por %p74, %p75
    %p78 = scmp.ne.s32.totalorder %s63, %s77
    %p79 = scmp.eq.s32.totalorder %s16, 0
    %p80 = por %p78, %p79
    %s81 = ssub.s32 %s10, %s17
    %p82 = scmp.eq.s32.totalorder %s81, 0
    %s84 = sadd.s32 %s83, 1
    %s85 = scalar_select %p82, %s83, %s84
    %p88 = pneg %p82
    %p89 = scmp.eq.s32.totalorder %s10, 1
    %p90 = por %p88, %p89
    %p91 = scmp.ne.s32.totalorder %s83, %s86
    %p92 = scmp.eq.s32.totalorder %s10, 0
    %p93 = por %p91, %p92
    %p94 = scmp.ne.s32.totalorder %s83, %s86
    %p95 = scmp.eq.s32.totalorder %s15, 1
    %p96 = por %p94, %p95
    %p97 = scmp.ne.s32.totalorder %s86, %s87
    %p98 = scmp.eq.s32.totalorder %s15, 0
    %p99 = por %p97, %p98
    %p100 = scmp.ne.s32.totalorder %s86, %s87
    %p101 = scmp.eq.s32.totalorder %s16, 1
    %p102 = por %p100, %p101
    %p104 = scmp.ne.s32.totalorder %s87, %s103
    %p105 = scmp.eq.s32.totalorder %s16, 0
    %p106 = por %p104, %p105
    %s107 = ssub.s32 %s10, %s17
    %p108 = scmp.eq.s32.totalorder %s107, 0
    %s110 = sadd.s32 %s109, 1
    %s111 = scalar_select %p108, %s109, %s110
    %p114 = pneg %p108
    %p115 = scmp.eq.s32.totalorder %s10, 1
    %p116 = por %p114, %p115
    %p117 = scmp.ne.s32.totalorder %s109, %s112
    %p118 = scmp.eq.s32.totalorder %s10, 0
    %p119 = por %p117, %p118
    %p120 = scmp.ne.s32.totalorder %s109, %s112
    %p121 = scmp.eq.s32.totalorder %s15, 1
    %p122 = por %p120, %p121
    %p123 = scmp.ne.s32.totalorder %s112, %s113
    %p124 = scmp.eq.s32.totalorder %s15, 0
    %p125 = por %p123, %p124
    %p126 = scmp.ne.s32.totalorder %s112, %s113
    %p127 = scmp.eq.s32.totalorder %s16, 1
    %p128 = por %p126, %p127
    %p130 = scmp.ne.s32.totalorder %s113, %s129
    %p131 = scmp.eq.s32.totalorder %s16, 0
    %p132 = por %p130, %p131
    %p133 = scmp.le.s32.totalorder 1, %s10
    %p134 = scmp.lt.s32.totalorder %s10, 3
    %p135 = pnand %p133, %p134
    %p136 = pneg %p135
    // Predicated region
    $region9: #{triplet_unit_forward.3} parent=5 // pred_check
      _
    $region10: #{triplet_unit_forward.3} parent=5 // pred_check_branch
      %138 = sbr.rel (%p135) target = $region12
    $region11: #{triplet_unit_forward.3} parent=5 // pred_region
      %s139 = ssub.s32 %s10, 1
      // Predicated region
      $region13: #{triplet_unit_forward.3} parent=11 // pred_check
        %p140 = pneg %p31
      $region14: #{triplet_unit_forward.3} parent=11 // pred_check_branch
        %142 = sbr.rel (%p140) target = $region16
      $region15: #{triplet_unit_forward.3} parent=11 // pred_region
        _
      $region16: #{triplet_unit_forward.3} parent=11 // pred_fallthru
        _
      // Predicated region
      $region17: #{triplet_unit_forward.3} parent=11 // pred_check
        %p143 = pneg %p52
      $region18: #{triplet_unit_forward.3} parent=11 // pred_check_branch
        %145 = sbr.rel (%p143) target = $region20
      $region19: #{triplet_unit_forward.3} parent=11 // pred_region
        _
      $region20: #{triplet_unit_forward.3} parent=11 // pred_fallthru
        _
      // Predicated region
      $region21: #{triplet_unit_forward.3} parent=11 // pred_check
        %p146 = pneg %p73
      $region22: #{triplet_unit_forward.3} parent=11 // pred_check_branch
        %148 = sbr.rel (%p146) target = $region24
      $region23: #{triplet_unit_forward.3} parent=11 // pred_region
        _
      $region24: #{triplet_unit_forward.3} parent=11 // pred_fallthru
        _
    $region12: #{triplet_unit_forward.3} parent=5 // pred_fallthru
      _
    %p149 = scmp.lt.s32.totalorder %s10, 2
    // Predicated region
    $region25: #{triplet_unit_forward.3} parent=5 // pred_check
      %p150 = pneg %p149
    $region26: #{triplet_unit_forward.3} parent=5 // pred_check_branch
      %152 = sbr.rel (%p150) target = $region28
    $region27: #{triplet_unit_forward.3} parent=5 // pred_region
      // Predicated region
      $region29: #{triplet_unit_forward.3} parent=27 // pred_check
        %p153 = pneg %p93
      $region30: #{triplet_unit_forward.3} parent=27 // pred_check_branch
        %155 = sbr.rel (%p153) target = $region32
      $region31: #{triplet_unit_forward.3} parent=27 // pred_region
        %p156 = scmp.lt.s32.totalorder %s10, 1
        %s157 = scalar_select %p156, %s10, 1
        %s158 = smul.addr %s157, 32
        %s159 = smul.addr %s158, 8
        %s160 = scalar_lea.vmem %s3, %s159
      $region32: #{triplet_unit_forward.3} parent=27 // pred_fallthru
        _
    $region28: #{triplet_unit_forward.3} parent=5 // pred_fallthru
      _
    %p161 = scmp.le.s32.totalorder 1, %s10
    %p162 = scmp.lt.s32.totalorder %s10, 3
    %p163 = pnand %p161, %p162
    %p164 = pneg %p163
    // Predicated region
    $region33: #{triplet_unit_forward.3} parent=5 // pred_check
      _
    $region34: #{triplet_unit_forward.3} parent=5 // pred_check_branch
      %166 = sbr.rel (%p163) target = $region36
    $region35: #{triplet_unit_forward.3} parent=5 // pred_region
      %s167 = ssub.s32 %s10, 1
      %p168 = pneg %p31
      %p169 = pneg %p28
      %p170 = pneg %p52
      %p171 = pneg %p49
      %p172 = pneg %p73
      %p173 = pneg %p70
      %p174 = scmp.lt.s32.totalorder %s15, 1
      %s175 = scalar_select %p174, %s15, 1
      %s176 = smul.addr %s175, 32
      %s177 = smul.addr %s176, 8
      %s178 = scalar_lea.vmem %s3, %s177
      %p179 = pneg %p99
      %p180 = pneg %p96
      %p181 = pneg %p125
      %p182 = pneg %p122
      %p183 = scmp.lt.s32.totalorder %s15, 1
      %s184 = scalar_select %p183, %s15, 1
      %s185 = smul.addr %s184, 32
      %s186 = smul.addr %s185, 8
      %s187 = scalar_lea.vmem %s4, %s186
      %p188 = scmp.lt.s32.totalorder %s15, 1
      %s189 = scalar_select %p188, %s15, 1
      %s190 = smul.addr %s189, 32
      %s191 = smul.addr %s190, 8
      %s192 = scalar_lea.vmem %s3, %s191
      %p193 = scmp.lt.s32.totalorder %s15, 1
      %s194 = scalar_select %p193, %s15, 1
      %s195 = smul.addr %s194, 32
      %s196 = smul.addr %s195, 8
      %s197 = scalar_lea.vmem %s4, %s196
      %v198 = vld [vmem:[%s0] sm:$0x3]
      %v199 = vld [vmem:[%s0 + $0x2] sm:$0x3]
      %vm200 = vcmask 1041408
      %v201 = vsel %vm200, %v198, 0.0
      %v202 = vsel %vm200, %v199, 0.0
      %v203 = vadd.f32 %v201, %v202
      %v204 = vmul.f32 %v203, 0.001953125
      %v205 = vmul.f32 %v204, %v204
      %v207 = vrot.slane %v205, 7
      %v209 = vsub.f32 %v204, %v207
      %v210 = vld [vmem:[%s1] sm:$0x1]
      %v211 = vadd.f32 %v209, 1e-05
      %v212 = vrsqrt.pop %v211
      %v215 = vunpack.c.l.s4 1966171168
      %v216 = vunpack.c.0.s8 %v215
      %v217 = vlaneseq
      %v218 = vshrl.u32 %v217, 7
      %v219 = vsub.s32 %v216, %v218
      %v220 = vrot.slane %v212, %v219
      %v221 = vcombine.high %v220, %v220
      %v223 = vunpack.c.l.s4 1966171168
      %v224 = vunpack.c.0.s8 %v223
      %v225 = vlaneseq
      %v226 = vshrl.u32 %v225, 7
      %v227 = vsub.s32 %v224, %v226
      %v228 = vrot.slane %v221, %v227
      %v230 = vmul.f32 %v210, %v228
      %v231 = vld [vmem:[%s2] sm:$0x1]
      %v232 = vmul.f32 %v204, %v230
      %v233 = vsub.f32 %v231, %v232
      %v234 = vld [vmem:[%s192] sm:$0xff]
      %v235 = vld [vmem:[%s192 + $0x8] sm:$0xff]
      %v236 = vld [vmem:[%s192 + $0x10] sm:$0xff]
      %v237 = vld [vmem:[%s192 + $0x18] sm:$0xff]
      %v238 = vld [vmem:[%s192 + $0x20] sm:$0xff]
      %v239 = vld [vmem:[%s192 + $0x28] sm:$0xff]
      %v240 = vld [vmem:[%s192 + $0x30] sm:$0xff]
      %v241 = vld [vmem:[%s192 + $0x38] sm:$0xff]
      %v242 = vld [vmem:[%s192 + $0x40] sm:$0xff]
      %v243 = vld [vmem:[%s192 + $0x48] sm:$0xff]
      %v244 = vld [vmem:[%s192 + $0x50] sm:$0xff]
      %v245 = vld [vmem:[%s192 + $0x58] sm:$0xff]
      %v246 = vld [vmem:[%s192 + $0x60] sm:$0xff]
      %v247 = vld [vmem:[%s192 + $0x68] sm:$0xff]
      %v248 = vld [vmem:[%s192 + $0x70] sm:$0xff]
      %v249 = vld [vmem:[%s192 + $0x78] sm:$0xff]
      %v250 = vld [vmem:[%s192 + $0x80] sm:$0xff]
      %v251 = vld [vmem:[%s192 + $0x88] sm:$0xff]
      %v252 = vld [vmem:[%s192 + $0x90] sm:$0xff]
      %v253 = vld [vmem:[%s192 + $0x98] sm:$0xff]
      %v254 = vld [vmem:[%s192 + $0xa0] sm:$0xff]
      %v255 = vld [vmem:[%s192 + $0xa8] sm:$0xff]
      %v256 = vld [vmem:[%s192 + $0xb0] sm:$0xff]
      %v257 = vld [vmem:[%s192 + $0xb8] sm:$0xff]
      %v258 = vld [vmem:[%s192 + $0xc0] sm:$0xff]
      %v259 = vld [vmem:[%s192 + $0xc8] sm:$0xff]
      %v260 = vld [vmem:[%s192 + $0xd0] sm:$0xff]
      %v261 = vld [vmem:[%s192 + $0xd8] sm:$0xff]
      %v262 = vld [vmem:[%s192 + $0xe0] sm:$0xff]
      %v263 = vld [vmem:[%s192 + $0xe8] sm:$0xff]
      %v264 = vld [vmem:[%s192 + $0xf0] sm:$0xff]
      %v265 = vld [vmem:[%s192 + $0xf8] sm:$0xff]
      %v267 = vlaneseq
      %v268 = vshrl.u32 %v267, 7
      %v269 = vsub.s32 0, %v268
      %v270 = vrot.slane %v230, %v269
      %v272 = vmul.f32 %v234, %v270
      %v273 = vmul.f32 %v235, %v270
      %v274 = vmul.f32 %v236, %v270
      %v275 = vmul.f32 %v237, %v270
      %v276 = vmul.f32 %v238, %v270
      %v277 = vmul.f32 %v239, %v270
      %v278 = vmul.f32 %v240, %v270
      %v279 = vmul.f32 %v241, %v270
      %v280 = vmul.f32 %v242, %v270
      %v281 = vmul.f32 %v243, %v270
      %v282 = vmul.f32 %v244, %v270
      %v283 = vmul.f32 %v245, %v270
      %v284 = vmul.f32 %v246, %v270
      %v285 = vmul.f32 %v247, %v270
      %v286 = vmul.f32 %v248, %v270
      %v287 = vmul.f32 %v249, %v270
      %v288 = vmul.f32 %v250, %v270
      %v289 = vmul.f32 %v251, %v270
      %v290 = vmul.f32 %v252, %v270
      %v291 = vmul.f32 %v253, %v270
      %v292 = vmul.f32 %v254, %v270
      %v293 = vmul.f32 %v255, %v270
      %v294 = vmul.f32 %v256, %v270
      %v295 = vmul.f32 %v257, %v270
      %v296 = vmul.f32 %v258, %v270
      %v297 = vmul.f32 %v259, %v270
      %v298 = vmul.f32 %v260, %v270
      %v299 = vmul.f32 %v261, %v270
      %v300 = vmul.f32 %v262, %v270
      %v301 = vmul.f32 %v263, %v270
      %v302 = vmul.f32 %v264, %v270
      %v303 = vmul.f32 %v265, %v270
      %v305 = vlaneseq
      %v306 = vshrl.u32 %v305, 7
      %v307 = vsub.s32 0, %v306
      %v308 = vrot.slane %v233, %v307
      %v310 = vadd.f32 %v272, %v308
      %v311 = vadd.f32 %v273, %v308
      %v312 = vadd.f32 %v274, %v308
      %v313 = vadd.f32 %v275, %v308
      %v314 = vadd.f32 %v276, %v308
      %v315 = vadd.f32 %v277, %v308
      %v316 = vadd.f32 %v278, %v308
      %v317 = vadd.f32 %v279, %v308
      %v318 = vadd.f32 %v280, %v308
      %v319 = vadd.f32 %v281, %v308
      %v320 = vadd.f32 %v282, %v308
      %v321 = vadd.f32 %v283, %v308
      %v322 = vadd.f32 %v284, %v308
      %v323 = vadd.f32 %v285, %v308
      %v324 = vadd.f32 %v286, %v308
      %v325 = vadd.f32 %v287, %v308
      %v326 = vadd.f32 %v288, %v308
      %v327 = vadd.f32 %v289, %v308
      %v328 = vadd.f32 %v290, %v308
      %v329 = vadd.f32 %v291, %v308
      %v330 = vadd.f32 %v292, %v308
      %v331 = vadd.f32 %v293, %v308
      %v332 = vadd.f32 %v294, %v308
      %v333 = vadd.f32 %v295, %v308
      %v334 = vadd.f32 %v296, %v308
      %v335 = vadd.f32 %v297, %v308
      %v336 = vadd.f32 %v298, %v308
      %v337 = vadd.f32 %v299, %v308
      %v338 = vadd.f32 %v300, %v308
      %v339 = vadd.f32 %v301, %v308
      %v340 = vadd.f32 %v302, %v308
      %v341 = vadd.f32 %v303, %v308
      %342 = vst [vmem:[%s197] sm:$0xff] %v310
      %343 = vst [vmem:[%s197 + $0x8] sm:$0xff] %v311
      %344 = vst [vmem:[%s197 + $0x10] sm:$0xff] %v312
      %345 = vst [vmem:[%s197 + $0x18] sm:$0xff] %v313
      %346 = vst [vmem:[%s197 + $0x20] sm:$0xff] %v314
      %347 = vst [vmem:[%s197 + $0x28] sm:$0xff] %v315
      %348 = vst [vmem:[%s197 + $0x30] sm:$0xff] %v316
      %349 = vst [vmem:[%s197 + $0x38] sm:$0xff] %v317
      %350 = vst [vmem:[%s197 + $0x40] sm:$0xff] %v318
      %351 = vst [vmem:[%s197 + $0x48] sm:$0xff] %v319
      %352 = vst [vmem:[%s197 + $0x50] sm:$0xff] %v320
      %353 = vst [vmem:[%s197 + $0x58] sm:$0xff] %v321
      %354 = vst [vmem:[%s197 + $0x60] sm:$0xff] %v322
      %355 = vst [vmem:[%s197 + $0x68] sm:$0xff] %v323
      %356 = vst [vmem:[%s197 + $0x70] sm:$0xff] %v324
      %357 = vst [vmem:[%s197 + $0x78] sm:$0xff] %v325
      %358 = vst [vmem:[%s197 + $0x80] sm:$0xff] %v326
      %359 = vst [vmem:[%s197 + $0x88] sm:$0xff] %v327
      %360 = vst [vmem:[%s197 + $0x90] sm:$0xff] %v328
      %361 = vst [vmem:[%s197 + $0x98] sm:$0xff] %v329
      %362 = vst [vmem:[%s197 + $0xa0] sm:$0xff] %v330
      %363 = vst [vmem:[%s197 + $0xa8] sm:$0xff] %v331
      %364 = vst [vmem:[%s197 + $0xb0] sm:$0xff] %v332
      %365 = vst [vmem:[%s197 + $0xb8] sm:$0xff] %v333
      %366 = vst [vmem:[%s197 + $0xc0] sm:$0xff] %v334
      %367 = vst [vmem:[%s197 + $0xc8] sm:$0xff] %v335
      %368 = vst [vmem:[%s197 + $0xd0] sm:$0xff] %v336
      %369 = vst [vmem:[%s197 + $0xd8] sm:$0xff] %v337
      %370 = vst [vmem:[%s197 + $0xe0] sm:$0xff] %v338
      %371 = vst [vmem:[%s197 + $0xe8] sm:$0xff] %v339
      %372 = vst [vmem:[%s197 + $0xf0] sm:$0xff] %v340
      %373 = vst [vmem:[%s197 + $0xf8] sm:$0xff] %v341
      %p374 = scmp.lt.s32.totalorder %s15, 1
      %s375 = scalar_select %p374, %s15, 1
      %s376 = smul.addr %s375, 32
      %s377 = smul.addr %s376, 8
      %s378 = scalar_lea.vmem %s4, %s377
      // Predicated region
      $region37: #{triplet_unit_forward.3} parent=35 // pred_check
        %p379 = pneg %p122
      $region38: #{triplet_unit_forward.3} parent=35 // pred_check_branch
        %381 = sbr.rel (%p379) target = $region40
      $region39: #{triplet_unit_forward.3} parent=35 // pred_region
        _
      $region40: #{triplet_unit_forward.3} parent=35 // pred_fallthru
        _
    $region36: #{triplet_unit_forward.3} parent=5 // pred_fallthru
      _
    %p382 = scmp.le.s32.totalorder 2, %s10
    // Predicated region
    $region41: #{triplet_unit_forward.3} parent=5 // pred_check
      %p383 = pneg %p382
    $region42: #{triplet_unit_forward.3} parent=5 // pred_check_branch
      %385 = sbr.rel (%p383) target = $region44
    $region43: #{triplet_unit_forward.3} parent=5 // pred_region
      %s386 = ssub.s32 %s10, 2
      // Predicated region
      $region45: #{triplet_unit_forward.3} parent=43 // pred_check
        %p387 = pneg %p128
      $region46: #{triplet_unit_forward.3} parent=43 // pred_check_branch
        %389 = sbr.rel (%p387) target = $region48
      $region47: #{triplet_unit_forward.3} parent=43 // pred_region
        %p390 = scmp.lt.s32.totalorder %s16, 1
        %s391 = scalar_select %p390, %s16, 1
        %s392 = smul.addr %s391, 32
        %s393 = smul.addr %s392, 8
        %s394 = scalar_lea.vmem %s4, %s393
      $region48: #{triplet_unit_forward.3} parent=43 // pred_fallthru
        _
    $region44: #{triplet_unit_forward.3} parent=5 // pred_fallthru
      _
  $region6: #{triplet_unit_forward.3} parent=0 // loop_footer
    %s14 = sadd.s32 1, %s10
  $region7: #{triplet_unit_forward.3} parent=0 // loop_footer_branch
    %9 = sbr.rel target = $region3
  $region8: #{triplet_unit_forward.3} parent=0 // loop_exit
    _

// kernel: triplet_unit_forward.2
$region0: #{triplet_unit_forward.2}
  #allocation0 [shape = 'u32[]', space=smem, size = 0x4, offset = 0x4, fixed_abs, tag = 'smem constant byte address 0x4 - core index']
  #allocation1 [shape = 'u32[144,128]{1,0:T(1,128)}', space=vmem, size = 0x12000, scoped, tag = 'internal scratch']
  %s0 = inlined_call_operand.vmem [shape: f32[2,3,18,16,128], index: 0, kind: input, shape index: {}]
  %s1 = inlined_call_operand.vmem [shape: f32[9,128,128], index: 1, kind: input, shape index: {}]
  %s2 = inlined_call_operand.vmem [shape: f32[1,128], index: 2, kind: input, shape index: {}]
  %s3 = inlined_call_operand.vmem [shape: f32[2,16,16,128], index: 3, kind: output, shape index: {0}]
  %s4 = inlined_call_operand.vmem [shape: f32[2,2,128], index: 4, kind: output, shape index: {1}]
  %5 = xla_tuple %s3, %s4
  %s6 = sld [smem:[#allocation0]]
  $region53: #{triplet_unit_forward.2} parent=0
    _
  %s8 = ssub.s32 1, %s6
  %s9 = scalar_select 0, %s8, %s6
  loop: start=0, step=1, limit=4
  $region2: #{triplet_unit_forward.2} parent=0 // loop_pre_header
    _
  $region3: #{triplet_unit_forward.2} parent=0 // loop_header
    %s11 = sphi 0, %s15
    %p12 = scmp.ge.s32.totalorder %s11, 4
    %s21 = sphi 0, %s23
    %s24 = sphi 0, %s21
    %s25 = sphi 0, %s24
    %s41 = sphi 0, %s25
    %s45 = sphi 0, %s45
    %s47 = sphi 0, %s45
    %s48 = sphi 0, %s47
    %s62 = sphi 0, %s48
    %s66 = sphi 0, %s66
    %s68 = sphi 0, %s66
    %s69 = sphi 0, %s68
    %s83 = sphi 0, %s69
    %s89 = sphi 0, %s91
    %s92 = sphi 0, %s89
    %s93 = sphi 0, %s92
    %s109 = sphi 0, %s93
    %s115 = sphi 0, %s117
    %s118 = sphi 0, %s115
    %s119 = sphi 0, %s118
    %s135 = sphi 0, %s119
  $region4: #{triplet_unit_forward.2} parent=0 // loop_header_branch
    %14 = sbr.rel (%p12) target = $region8
  $region5: #{triplet_unit_forward.2} parent=0 // loop_body
    %s16 = ssub.s32 %s11, 1
    %s17 = ssub.s32 %s11, 2
    %s18 = sadd.s32 %s11, 1
    %s19 = ssub.s32 %s11, %s18
    %p20 = scmp.eq.s32.totalorder %s19, 0
    %s22 = sadd.s32 %s21, 1
    %s23 = scalar_select %p20, %s21, %s22
    %p26 = pneg %p20
    %p27 = scmp.eq.s32.totalorder %s11, 1
    %p28 = por %p26, %p27
    %p29 = scmp.ne.s32.totalorder %s21, %s24
    %p30 = scmp.eq.s32.totalorder %s11, 0
    %p31 = por %p29, %p30
    %p32 = scmp.ne.s32.totalorder %s21, %s24
    %p33 = scmp.eq.s32.totalorder %s16, 1
    %p34 = por %p32, %p33
    %p35 = scmp.ne.s32.totalorder %s24, %s25
    %p36 = scmp.eq.s32.totalorder %s16, 0
    %p37 = por %p35, %p36
    %p38 = scmp.ne.s32.totalorder %s24, %s25
    %p39 = scmp.eq.s32.totalorder %s17, 1
    %p40 = por %p38, %p39
    %p42 = scmp.ne.s32.totalorder %s25, %s41
    %p43 = scmp.eq.s32.totalorder %s17, 0
    %p44 = por %p42, %p43
    %s46 = sadd.s32 %s45, 1
    %p49 = scmp.eq.s32.totalorder %s11, 1
    %p50 = scmp.ne.s32.totalorder %s45, %s47
    %p51 = scmp.eq.s32.totalorder %s11, 0
    %p52 = por %p50, %p51
    %p53 = scmp.ne.s32.totalorder %s45, %s47
    %p54 = scmp.eq.s32.totalorder %s16, 1
    %p55 = por %p53, %p54
    %p56 = scmp.ne.s32.totalorder %s47, %s48
    %p57 = scmp.eq.s32.totalorder %s16, 0
    %p58 = por %p56, %p57
    %p59 = scmp.ne.s32.totalorder %s47, %s48
    %p60 = scmp.eq.s32.totalorder %s17, 1
    %p61 = por %p59, %p60
    %p63 = scmp.ne.s32.totalorder %s48, %s62
    %p64 = scmp.eq.s32.totalorder %s17, 0
    %p65 = por %p63, %p64
    %s67 = sadd.s32 %s66, 1
    %p70 = scmp.eq.s32.totalorder %s11, 1
    %p71 = scmp.ne.s32.totalorder %s66, %s68
    %p72 = scmp.eq.s32.totalorder %s11, 0
    %p73 = por %p71, %p72
    %p74 = scmp.ne.s32.totalorder %s66, %s68
    %p75 = scmp.eq.s32.totalorder %s16, 1
    %p76 = por %p74, %p75
    %p77 = scmp.ne.s32.totalorder %s68, %s69
    %p78 = scmp.eq.s32.totalorder %s16, 0
    %p79 = por %p77, %p78
    %p80 = scmp.ne.s32.totalorder %s68, %s69
    %p81 = scmp.eq.s32.totalorder %s17, 1
    %p82 = por %p80, %p81
    %p84 = scmp.ne.s32.totalorder %s69, %s83
    %p85 = scmp.eq.s32.totalorder %s17, 0
    %p86 = por %p84, %p85
    %s87 = ssub.s32 %s11, %s18
    %p88 = scmp.eq.s32.totalorder %s87, 0
    %s90 = sadd.s32 %s89, 1
    %s91 = scalar_select %p88, %s89, %s90
    %p94 = pneg %p88
    %p95 = scmp.eq.s32.totalorder %s11, 1
    %p96 = por %p94, %p95
    %p97 = scmp.ne.s32.totalorder %s89, %s92
    %p98 = scmp.eq.s32.totalorder %s11, 0
    %p99 = por %p97, %p98
    %p100 = scmp.ne.s32.totalorder %s89, %s92
    %p101 = scmp.eq.s32.totalorder %s16, 1
    %p102 = por %p100, %p101
    %p103 = scmp.ne.s32.totalorder %s92, %s93
    %p104 = scmp.eq.s32.totalorder %s16, 0
    %p105 = por %p103, %p104
    %p106 = scmp.ne.s32.totalorder %s92, %s93
    %p107 = scmp.eq.s32.totalorder %s17, 1
    %p108 = por %p106, %p107
    %p110 = scmp.ne.s32.totalorder %s93, %s109
    %p111 = scmp.eq.s32.totalorder %s17, 0
    %p112 = por %p110, %p111
    %s113 = ssub.s32 %s11, %s18
    %p114 = scmp.eq.s32.totalorder %s113, 0
    %s116 = sadd.s32 %s115, 1
    %s117 = scalar_select %p114, %s115, %s116
    %p120 = pneg %p114
    %p121 = scmp.eq.s32.totalorder %s11, 1
    %p122 = por %p120, %p121
    %p123 = scmp.ne.s32.totalorder %s115, %s118
    %p124 = scmp.eq.s32.totalorder %s11, 0
    %p125 = por %p123, %p124
    %p126 = scmp.ne.s32.totalorder %s115, %s118
    %p127 = scmp.eq.s32.totalorder %s16, 1
    %p128 = por %p126, %p127
    %p129 = scmp.ne.s32.totalorder %s118, %s119
    %p130 = scmp.eq.s32.totalorder %s16, 0
    %p131 = por %p129, %p130
    %p132 = scmp.ne.s32.totalorder %s118, %s119
    %p133 = scmp.eq.s32.totalorder %s17, 1
    %p134 = por %p132, %p133
    %p136 = scmp.ne.s32.totalorder %s119, %s135
    %p137 = scmp.eq.s32.totalorder %s17, 0
    %p138 = por %p136, %p137
    %p139 = scmp.le.s32.totalorder 1, %s11
    %p140 = scmp.lt.s32.totalorder %s11, 3
    %p141 = pnand %p139, %p140
    %p142 = pneg %p141
    // Predicated region
    $region9: #{triplet_unit_forward.2} parent=5 // pred_check
      _
    $region10: #{triplet_unit_forward.2} parent=5 // pred_check_branch
      %144 = sbr.rel (%p141) target = $region12
    $region11: #{triplet_unit_forward.2} parent=5 // pred_region
      %s145 = ssub.s32 %s11, 1
      // Predicated region
      $region13: #{triplet_unit_forward.2} parent=11 // pred_check
        %p146 = pneg %p58
      $region14: #{triplet_unit_forward.2} parent=11 // pred_check_branch
        %148 = sbr.rel (%p146) target = $region16
      $region15: #{triplet_unit_forward.2} parent=11 // pred_region
        _
      $region16: #{triplet_unit_forward.2} parent=11 // pred_fallthru
        _
      // Predicated region
      $region17: #{triplet_unit_forward.2} parent=11 // pred_check
        %p149 = pneg %p79
      $region18: #{triplet_unit_forward.2} parent=11 // pred_check_branch
        %151 = sbr.rel (%p149) target = $region20
      $region19: #{triplet_unit_forward.2} parent=11 // pred_region
        _
      $region20: #{triplet_unit_forward.2} parent=11 // pred_fallthru
        _
    $region12: #{triplet_unit_forward.2} parent=5 // pred_fallthru
      _
    %p152 = scmp.lt.s32.totalorder %s11, 2
    // Predicated region
    $region21: #{triplet_unit_forward.2} parent=5 // pred_check
      %p153 = pneg %p152
    $region22: #{triplet_unit_forward.2} parent=5 // pred_check_branch
      %155 = sbr.rel (%p153) target = $region24
    $region23: #{triplet_unit_forward.2} parent=5 // pred_region
      // Predicated region
      $region25: #{triplet_unit_forward.2} parent=23 // pred_check
        %p156 = pneg %p31
      $region26: #{triplet_unit_forward.2} parent=23 // pred_check_branch
        %158 = sbr.rel (%p156) target = $region28
      $region27: #{triplet_unit_forward.2} parent=23 // pred_region
        %p159 = scmp.lt.s32.totalorder %s11, 1
        %s160 = scalar_select %p159, %s11, 1
        %s161 = smul.addr %s160, 108
        %s162 = smul.addr %s161, 8
        %s163 = scalar_lea.vmem %s0, %s162
      $region28: #{triplet_unit_forward.2} parent=23 // pred_fallthru
        _
    $region24: #{triplet_unit_forward.2} parent=5 // pred_fallthru
      _
    %p164 = scmp.le.s32.totalorder 1, %s11
    %p165 = scmp.lt.s32.totalorder %s11, 3
    %p166 = pnand %p164, %p165
    %p167 = pneg %p166
    // Predicated region
    $region29: #{triplet_unit_forward.2} parent=5 // pred_check
      _
    $region30: #{triplet_unit_forward.2} parent=5 // pred_check_branch
      %169 = sbr.rel (%p166) target = $region32
    $region31: #{triplet_unit_forward.2} parent=5 // pred_region
      %s170 = ssub.s32 %s11, 1
      %p171 = scmp.lt.s32.totalorder %s16, 1
      %s172 = scalar_select %p171, %s16, 1
      %s173 = smul.addr %s172, 108
      %s174 = smul.addr %s173, 8
      %s175 = scalar_lea.vmem %s0, %s174
      %p176 = pneg %p37
      %p177 = pneg %p34
      %p178 = pneg %p58
      %p179 = pneg %p55
      %p180 = pneg %p79
      %p181 = pneg %p76
      %p182 = pneg %p105
      %p183 = pneg %p102
      %p184 = scmp.lt.s32.totalorder %s16, 1
      %s185 = scalar_select %p184, %s16, 1
      %s186 = smul.addr %s185, 32
      %s187 = smul.addr %s186, 8
      %s188 = scalar_lea.vmem %s3, %s187
      %p189 = pneg %p131
      %p190 = pneg %p128
      %p191 = scmp.lt.s32.totalorder %s16, 1
      %s192 = scalar_select %p191, %s16, 1
      %s193 = smul.addr %s192, 2
      %s194 = scalar_lea.vmem %s4, %s193
      %p195 = scmp.lt.s32.totalorder %s16, 1
      %s196 = scalar_select %p195, %s16, 1
      %s197 = smul.addr %s196, 108
      %s198 = smul.addr %s197, 8
      %s199 = scalar_lea.vmem %s0, %s198
      %p200 = scmp.lt.s32.totalorder %s16, 1
      %s201 = scalar_select %p200, %s16, 1
      %s202 = smul.addr %s201, 32
      %s203 = smul.addr %s202, 8
      %s204 = scalar_lea.vmem %s3, %s203
      %p205 = scmp.lt.s32.totalorder %s16, 1
      %s206 = scalar_select %p205, %s16, 1
      %s207 = smul.addr %s206, 2
      %s208 = scalar_lea.vmem %s4, %s207
      %v209 = vld [vmem:[%s199] sm:$0xff]
      %v210 = vld [vmem:[%s199 + $0x8] sm:$0xff]
      %v211 = vld [vmem:[%s199 + $0x10] sm:$0xff]
      %v212 = vld [vmem:[%s199 + $0x18] sm:$0xff]
      %v213 = vld [vmem:[%s199 + $0x20] sm:$0xff]
      %v214 = vld [vmem:[%s199 + $0x28] sm:$0xff]
      %v215 = vld [vmem:[%s199 + $0x30] sm:$0xff]
      %v216 = vld [vmem:[%s199 + $0x38] sm:$0xff]
      %v217 = vld [vmem:[%s199 + $0x40] sm:$0xff]
      %v218 = vld [vmem:[%s199 + $0x48] sm:$0xff]
      %v219 = vld [vmem:[%s199 + $0x50] sm:$0xff]
      %v220 = vld [vmem:[%s199 + $0x58] sm:$0xff]
      %v221 = vld [vmem:[%s199 + $0x60] sm:$0xff]
      %v222 = vld [vmem:[%s199 + $0x68] sm:$0xff]
      %v223 = vld [vmem:[%s199 + $0x70] sm:$0xff]
      %v224 = vld [vmem:[%s199 + $0x78] sm:$0xff]
      %v225 = vld [vmem:[%s199 + $0x80] sm:$0xff]
      %v226 = vld [vmem:[%s199 + $0x88] sm:$0xff]
      %v227 = vld [vmem:[%s199 + $0x90] sm:$0xff]
      %v228 = vld [vmem:[%s199 + $0x98] sm:$0xff]
      %v229 = vld [vmem:[%s199 + $0xa0] sm:$0xff]
      %v230 = vld [vmem:[%s199 + $0xa8] sm:$0xff]
      %v231 = vld [vmem:[%s199 + $0xb0] sm:$0xff]
      %v232 = vld [vmem:[%s199 + $0xb8] sm:$0xff]
      %v233 = vld [vmem:[%s199 + $0xc0] sm:$0xff]
      %v234 = vld [vmem:[%s199 + $0xc8] sm:$0xff]
      %v235 = vld [vmem:[%s199 + $0xd0] sm:$0xff]
      %v236 = vld [vmem:[%s199 + $0xd8] sm:$0xff]
      %v237 = vld [vmem:[%s199 + $0xe0] sm:$0xff]
      %v238 = vld [vmem:[%s199 + $0xe8] sm:$0xff]
      %v239 = vld [vmem:[%s199 + $0xf0] sm:$0xff]
      %v240 = vld [vmem:[%s199 + $0xf8] sm:$0xff]
      %v241 = vmax.f32 %v209, 0.0
      %v242 = vmax.f32 %v210, 0.0
      %v243 = vmax.f32 %v211, 0.0
      %v244 = vmax.f32 %v212, 0.0
      %v245 = vmax.f32 %v213, 0.0
      %v246 = vmax.f32 %v214, 0.0
      %v247 = vmax.f32 %v215, 0.0
      %v248 = vmax.f32 %v216, 0.0
      %v249 = vmax.f32 %v217, 0.0
      %v250 = vmax.f32 %v218, 0.0
      %v251 = vmax.f32 %v219, 0.0
      %v252 = vmax.f32 %v220, 0.0
      %v253 = vmax.f32 %v221, 0.0
      %v254 = vmax.f32 %v222, 0.0
      %v255 = vmax.f32 %v223, 0.0
      %v256 = vmax.f32 %v224, 0.0
      %v257 = vmax.f32 %v225, 0.0
      %v258 = vmax.f32 %v226, 0.0
      %v259 = vmax.f32 %v227, 0.0
      %v260 = vmax.f32 %v228, 0.0
      %v261 = vmax.f32 %v229, 0.0
      %v262 = vmax.f32 %v230, 0.0
      %v263 = vmax.f32 %v231, 0.0
      %v264 = vmax.f32 %v232, 0.0
      %v265 = vmax.f32 %v233, 0.0
      %v266 = vmax.f32 %v234, 0.0
      %v267 = vmax.f32 %v235, 0.0
      %v268 = vmax.f32 %v236, 0.0
      %v269 = vmax.f32 %v237, 0.0
      %v270 = vmax.f32 %v238, 0.0
      %v271 = vmax.f32 %v239, 0.0
      %v272 = vmax.f32 %v240, 0.0
      %v273 = vld [vmem:[%s1] sm:$0xff]
      %v274 = vld [vmem:[%s1 + $0x8] sm:$0xff]
      %v275 = vld [vmem:[%s1 + $0x10] sm:$0xff]
      %v276 = vld [vmem:[%s1 + $0x18] sm:$0xff]
      %v277 = vld [vmem:[%s1 + $0x20] sm:$0xff]
      %v278 = vld [vmem:[%s1 + $0x28] sm:$0xff]
      %v279 = vld [vmem:[%s1 + $0x30] sm:$0xff]
      %v280 = vld [vmem:[%s1 + $0x38] sm:$0xff]
      %v281 = vld [vmem:[%s1 + $0x40] sm:$0xff]
      %v282 = vld [vmem:[%s1 + $0x48] sm:$0xff]
      %v283 = vld [vmem:[%s1 + $0x50] sm:$0xff]
      %v284 = vld [vmem:[%s1 + $0x58] sm:$0xff]
      %v285 = vld [vmem:[%s1 + $0x60] sm:$0xff]
      %v286 = vld [vmem:[%s1 + $0x68] sm:$0xff]
      %v287 = vld [vmem:[%s1 + $0x70] sm:$0xff]
      %v288 = vld [vmem:[%s1 + $0x78] sm:$0xff]
      %s289 = scalar_lea.vmem %s199, 288
      %v290 = vld [vmem:[%s289] sm:$0xff]
      %v291 = vld [vmem:[%s289 + $0x8] sm:$0xff]
      %v292 = vld [vmem:[%s289 + $0x10] sm:$0xff]
      %v293 = vld [vmem:[%s289 + $0x18] sm:$0xff]
      %v294 = vld [vmem:[%s289 + $0x20] sm:$0xff]
      %v295 = vld [vmem:[%s289 + $0x28] sm:$0xff]
      %v296 = vld [vmem:[%s289 + $0x30] sm:$0xff]
      %v297 = vld [vmem:[%s289 + $0x38] sm:$0xff]
      %v298 = vld [vmem:[%s289 + $0x40] sm:$0xff]
      %v299 = vld [vmem:[%s289 + $0x48] sm:$0xff]
      %v300 = vld [vmem:[%s289 + $0x50] sm:$0xff]
      %v301 = vld [vmem:[%s289 + $0x58] sm:$0xff]
      %v302 = vld [vmem:[%s289 + $0x60] sm:$0xff]
      %v303 = vld [vmem:[%s289 + $0x68] sm:$0xff]
      %v304 = vld [vmem:[%s289 + $0x70] sm:$0xff]
      %v305 = vld [vmem:[%s289 + $0x78] sm:$0xff]
      %v306 = vld [vmem:[%s289 + $0x80] sm:$0xff]
      %v307 = vld [vmem:[%s289 + $0x88] sm:$0xff]
      %v308 = vld [vmem:[%s289 + $0x90] sm:$0xff]
      %v309 = vld [vmem:[%s289 + $0x98] sm:$0xff]
      %v310 = vld [vmem:[%s289 + $0xa0] sm:$0xff]
      %v311 = vld [vmem:[%s289 + $0xa8] sm:$0xff]
      %v312 = vld [vmem:[%s289 + $0xb0] sm:$0xff]
      %v313 = vld [vmem:[%s289 + $0xb8] sm:$0xff]
      %v314 = vld [vmem:[%s289 + $0xc0] sm:$0xff]
      %v315 = vld [vmem:[%s289 + $0xc8] sm:$0xff]
      %v316 = vld [vmem:[%s289 + $0xd0] sm:$0xff]
      %v317 = vld [vmem:[%s289 + $0xd8] sm:$0xff]
      %v318 = vld [vmem:[%s289 + $0xe0] sm:$0xff]
      %v319 = vld [vmem:[%s289 + $0xe8] sm:$0xff]
      %v320 = vld [vmem:[%s289 + $0xf0] sm:$0xff]
      %v321 = vld [vmem:[%s289 + $0xf8] sm:$0xff]
      %v322 = vmax.f32 %v290, 0.0
      %v323 = vmax.f32 %v291, 0.0
      %v324 = vmax.f32 %v292, 0.0
      %v325 = vmax.f32 %v293, 0.0
      %v326 = vmax.f32 %v294, 0.0
      %v327 = vmax.f32 %v295, 0.0
      %v328 = vmax.f32 %v296, 0.0
      %v329 = vmax.f32 %v297, 0.0
      %v330 = vmax.f32 %v298, 0.0
      %v331 = vmax.f32 %v299, 0.0
      %v332 = vmax.f32 %v300, 0.0
      %v333 = vmax.f32 %v301, 0.0
      %v334 = vmax.f32 %v302, 0.0
      %v335 = vmax.f32 %v303, 0.0
      %v336 = vmax.f32 %v304, 0.0
      %v337 = vmax.f32 %v305, 0.0
      %v338 = vmax.f32 %v306, 0.0
      %v339 = vmax.f32 %v307, 0.0
      %v340 = vmax.f32 %v308, 0.0
      %v341 = vmax.f32 %v309, 0.0
      %v342 = vmax.f32 %v310, 0.0
      %v343 = vmax.f32 %v311, 0.0
      %v344 = vmax.f32 %v312, 0.0
      %v345 = vmax.f32 %v313, 0.0
      %v346 = vmax.f32 %v314, 0.0
      %v347 = vmax.f32 %v315, 0.0
      %v348 = vmax.f32 %v316, 0.0
      %v349 = vmax.f32 %v317, 0.0
      %v350 = vmax.f32 %v318, 0.0
      %v351 = vmax.f32 %v319, 0.0
      %v352 = vmax.f32 %v320, 0.0
      %v353 = vmax.f32 %v321, 0.0
      %s354 = scalar_lea.vmem %s1, 128
      %v355 = vld [vmem:[%s354] sm:$0xff]
      %v356 = vld [vmem:[%s354 + $0x8] sm:$0xff]
      %v357 = vld [vmem:[%s354 + $0x10] sm:$0xff]
      %v358 = vld [vmem:[%s354 + $0x18] sm:$0xff]
      %v359 = vld [vmem:[%s354 + $0x20] sm:$0xff]
      %v360 = vld [vmem:[%s354 + $0x28] sm:$0xff]
      %v361 = vld [vmem:[%s354 + $0x30] sm:$0xff]
      %v362 = vld [vmem:[%s354 + $0x38] sm:$0xff]
      %v363 = vld [vmem:[%s354 + $0x40] sm:$0xff]
      %v364 = vld [vmem:[%s354 + $0x48] sm:$0xff]
      %v365 = vld [vmem:[%s354 + $0x50] sm:$0xff]
      %v366 = vld [vmem:[%s354 + $0x58] sm:$0xff]
      %v367 = vld [vmem:[%s354 + $0x60] sm:$0xff]
      %v368 = vld [vmem:[%s354 + $0x68] sm:$0xff]
      %v369 = vld [vmem:[%s354 + $0x70] sm:$0xff]
      %v370 = vld [vmem:[%s354 + $0x78] sm:$0xff]
      %371 = vmatprep.subr.mxu0 0.0
      %372 = vmatpush1.msra.mxu0 %v370
      %373 = vmatprep.subr.mxu0 0.0
      %374 = vmatpush1.msra.mxu0 %v369
      %375 = vmatprep.subr.mxu0 0.0
      %376 = vmatpush1.msra.mxu0 %v368
      %377 = vmatprep.subr.mxu0 0.0
      %378 = vmatpush1.msra.mxu0 %v367
      %379 = vmatprep.subr.mxu0 0.0
      %380 = vmatpush1.msra.mxu0 %v366
      %381 = vmatprep.subr.mxu0 0.0
      %382 = vmatpush1.msra.mxu0 %v365
      %383 = vmatprep.subr.mxu0 0.0
      %384 = vmatpush1.msra.mxu0 %v364
      %385 = vmatprep.subr.mxu0 0.0
      %386 = vmatpush1.msra.mxu0 %v363
      %387 = vmatprep.subr.mxu0 0.0
      %388 = vmatpush1.msra.mxu0 %v362
      %389 = vmatprep.subr.mxu0 0.0
      %390 = vmatpush1.msra.mxu0 %v361
      %391 = vmatprep.subr.mxu0 0.0
      %392 = vmatpush1.msra.mxu0 %v360
      %393 = vmatprep.subr.mxu0 0.0
      %394 = vmatpush1.msra.mxu0 %v359
      %395 = vmatprep.subr.mxu0 0.0
      %396 = vmatpush1.msra.mxu0 %v358
      %397 = vmatprep.subr.mxu0 0.0
      %398 = vmatpush1.msra.mxu0 %v357
      %399 = vmatprep.subr.mxu0 0.0
      %400 = vmatpush1.msra.mxu0 %v356
      %401 = vmatprep.subr.mxu0 0.0
      %402 = vmatpush1.msra.mxu0 %v355
      %403 = vmatprep.subr.mxu0 0.0
      %404 = vmatpush2.msra.mxu0 0.0
      %405 = vmatprep.subr.mxu0 0.0
      %406 = vmatpush2.msra.mxu0 0.0
      %407 = vmatprep.subr.mxu0 0.0
      %408 = vmatpush2.msra.mxu0 0.0
      %409 = vmatprep.subr.mxu0 0.0
      %410 = vmatpush2.msra.mxu0 0.0
      %411 = vmatprep.subr.mxu0 0.0
      %412 = vmatpush2.msra.mxu0 0.0
      %413 = vmatprep.subr.mxu0 0.0
      %414 = vmatpush2.msra.mxu0 0.0
      %415 = vmatprep.subr.mxu0 0.0
      %416 = vmatpush2.msra.mxu0 0.0
      %417 = vmatprep.subr.mxu0 0.0
      %418 = vmatpush2.msra.mxu0 0.0
      %419 = vmatprep.subr.mxu0 0.0
      %420 = vmatpush2.msra.mxu0 0.0
      %421 = vmatprep.subr.mxu0 0.0
      %422 = vmatpush2.msra.mxu0 0.0
      %423 = vmatprep.subr.mxu0 0.0
      %424 = vmatpush2.msra.mxu0 0.0
      %425 = vmatprep.subr.mxu0 0.0
      %426 = vmatpush2.msra.mxu0 0.0
      %427 = vmatprep.subr.mxu0 0.0
      %428 = vmatpush2.msra.mxu0 0.0
      %429 = vmatprep.subr.mxu0 0.0
      %430 = vmatpush2.msra.mxu0 0.0
      %431 = vmatprep.subr.mxu0 0.0
      %432 = vmatpush2.msra.mxu0 0.0
      %433 = vmatprep.subr.mxu0 0.0
      %434 = vmatpush2.msra.mxu0 0.0
      %435 = vmatprep.mubr.f32.mxu0 0.0
      %436 = vmatmul.mubr.f32.gmra.mxu0 %v322
      %v437 = vpop.f32.mrf.mxu0
      %v438 = vadd.f32 0.0, %v437
      %v439 = vpop.f32.mrf.mxu0
      %440 = vmatprep.mubr.f32.mxu0 0.0
      %441 = vmatmul.mubr.f32.gmra.mxu0 %v323
      %v442 = vpop.f32.mrf.mxu0
      %v443 = vadd.f32 0.0, %v442
      %v444 = vpop.f32.mrf.mxu0
      %445 = vmatprep.mubr.f32.mxu0 0.0
      %446 = vmatmul.mubr.f32.gmra.mxu0 %v324
      %v447 = vpop.f32.mrf.mxu0
      %v448 = vadd.f32 0.0, %v447
      %v449 = vpop.f32.mrf.mxu0
      %450 = vmatprep.mubr.f32.mxu0 0.0
      %451 = vmatmul.mubr.f32.gmra.mxu0 %v325
      %v452 = vpop.f32.mrf.mxu0
      %v453 = vadd.f32 0.0, %v452
      %v454 = vpop.f32.mrf.mxu0
      %455 = vmatprep.mubr.f32.mxu0 0.0
      %456 = vmatmul.mubr.f32.gmra.mxu0 %v326
      %v457 = vpop.f32.mrf.mxu0
      %v458 = vadd.f32 0.0, %v457
      %v459 = vpop.f32.mrf.mxu0
      %460 = vmatprep.mubr.f32.mxu0 0.0
      %461 = vmatmul.mubr.f32.gmra.mxu0 %v327
      %v462 = vpop.f32.mrf.mxu0
      %v463 = vadd.f32 0.0, %v462
      %v464 = vpop.f32.mrf.mxu0
      %465 = vmatprep.mubr.f32.mxu0 0.0
      %466 = vmatmul.mubr.f32.gmra.mxu0 %v328
      %v467 = vpop.f32.mrf.mxu0
      %v468 = vadd.f32 0.0, %v467
      %v469 = vpop.f32.mrf.mxu0
      %470 = vmatprep.mubr.f32.mxu0 0.0
      %471 = vmatmul.mubr.f32.gmra.mxu0 %v329
      %v472 = vpop.f32.mrf.mxu0
      %v473 = vadd.f32 0.0, %v472
      %v474 = vpop.f32.mrf.mxu0
      %475 = vmatprep.mubr.f32.mxu0 0.0
      %476 = vmatmul.mubr.f32.gmra.mxu0 %v330
      %v477 = vpop.f32.mrf.mxu0
      %v478 = vadd.f32 0.0, %v477
      %v479 = vpop.f32.mrf.mxu0
      %480 = vmatprep.mubr.f32.mxu0 0.0
      %481 = vmatmul.mubr.f32.gmra.mxu0 %v331
      %v482 = vpop.f32.mrf.mxu0
      %v483 = vadd.f32 0.0, %v482
      %v484 = vpop.f32.mrf.mxu0
      %485 = vmatprep.mubr.f32.mxu0 0.0
      %486 = vmatmul.mubr.f32.gmra.mxu0 %v332
      %v487 = vpop.f32.mrf.mxu0
      %v488 = vadd.f32 0.0, %v487
      %v489 = vpop.f32.mrf.mxu0
      %490 = vmatprep.mubr.f32.mxu0 0.0
      %491 = vmatmul.mubr.f32.gmra.mxu0 %v333
      %v492 = vpop.f32.mrf.mxu0
      %v493 = vadd.f32 0.0, %v492
      %v494 = vpop.f32.mrf.mxu0
      %495 = vmatprep.mubr.f32.mxu0 0.0
      %496 = vmatmul.mubr.f32.gmra.mxu0 %v334
      %v497 = vpop.f32.mrf.mxu0
      %v498 = vadd.f32 0.0, %v497
      %v499 = vpop.f32.mrf.mxu0
      %500 = vmatprep.mubr.f32.mxu0 0.0
      %501 = vmatmul.mubr.f32.gmra.mxu0 %v335
      %v502 = vpop.f32.mrf.mxu0
      %v503 = vadd.f32 0.0, %v502
      %v504 = vpop.f32.mrf.mxu0
      %505 = vmatprep.mubr.f32.mxu0 0.0
      %506 = vmatmul.mubr.f32.gmra.mxu0 %v336
      %v507 = vpop.f32.mrf.mxu0
      %v508 = vadd.f32 0.0, %v507
      %v509 = vpop.f32.mrf.mxu0
      %510 = vmatprep.mubr.f32.mxu0 0.0
      %511 = vmatmul.mubr.f32.gmra.mxu0 %v337
      %v512 = vpop.f32.mrf.mxu0
      %v513 = vadd.f32 0.0, %v512
      %v514 = vpop.f32.mrf.mxu0
      %515 = vmatprep.mubr.f32.mxu0 0.0
      %516 = vmatmul.mubr.f32.gmra.mxu0 %v338
      %v517 = vpop.f32.mrf.mxu0
      %v518 = vadd.f32 0.0, %v517
      %v519 = vpop.f32.mrf.mxu0
      %520 = vmatprep.mubr.f32.mxu0 0.0
      %521 = vmatmul.mubr.f32.gmra.mxu0 %v339
      %v522 = vpop.f32.mrf.mxu0
      %v523 = vadd.f32 0.0, %v522
      %v524 = vpop.f32.mrf.mxu0
      %525 = vmatprep.mubr.f32.mxu0 0.0
      %526 = vmatmul.mubr.f32.gmra.mxu0 %v340
      %v527 = vpop.f32.mrf.mxu0
      %v528 = vadd.f32 0.0, %v527
      %v529 = vpop.f32.mrf.mxu0
      %530 = vmatprep.mubr.f32.mxu0 0.0
      %531 = vmatmul.mubr.f32.gmra.mxu0 %v341
      %v532 = vpop.f32.mrf.mxu0
      %v533 = vadd.f32 0.0, %v532
      %v534 = vpop.f32.mrf.mxu0
      %535 = vmatprep.mubr.f32.mxu0 0.0
      %536 = vmatmul.mubr.f32.gmra.mxu0 %v342
      %v537 = vpop.f32.mrf.mxu0
      %v538 = vadd.f32 0.0, %v537
      %v539 = vpop.f32.mrf.mxu0
      %540 = vmatprep.mubr.f32.mxu0 0.0
      %541 = vmatmul.mubr.f32.gmra.mxu0 %v343
      %v542 = vpop.f32.mrf.mxu0
      %v543 = vadd.f32 0.0, %v542
      %v544 = vpop.f32.mrf.mxu0
      %545 = vmatprep.mubr.f32.mxu0 0.0
      %546 = vmatmul.mubr.f32.gmra.mxu0 %v344
      %v547 = vpop.f32.mrf.mxu0
      %v548 = vadd.f32 0.0, %v547
      %v549 = vpop.f32.mrf.mxu0
      %550 = vmatprep.mubr.f32.mxu0 0.0
      %551 = vmatmul.mubr.f32.gmra.mxu0 %v345
      %v552 = vpop.f32.mrf.mxu0
      %v553 = vadd.f32 0.0, %v552
      %v554 = vpop.f32.mrf.mxu0
      %555 = vmatprep.mubr.f32.mxu0 0.0
      %556 = vmatmul.mubr.f32.gmra.mxu0 %v346
      %v557 = vpop.f32.mrf.mxu0
      %v558 = vadd.f32 0.0, %v557
      %v559 = vpop.f32.mrf.mxu0
      %560 = vmatprep.mubr.f32.mxu0 0.0
      %561 = vmatmul.mubr.f32.gmra.mxu0 %v347
      %v562 = vpop.f32.mrf.mxu0
      %v563 = vadd.f32 0.0, %v562
      %v564 = vpop.f32.mrf.mxu0
      %565 = vmatprep.mubr.f32.mxu0 0.0
      %566 = vmatmul.mubr.f32.gmra.mxu0 %v348
      %v567 = vpop.f32.mrf.mxu0
      %v568 = vadd.f32 0.0, %v567
      %v569 = vpop.f32.mrf.mxu0
      %570 = vmatprep.mubr.f32.mxu0 0.0
      %571 = vmatmul.mubr.f32.gmra.mxu0 %v349
      %v572 = vpop.f32.mrf.mxu0
      %v573 = vadd.f32 0.0, %v572
      %v574 = vpop.f32.mrf.mxu0
      %575 = vmatprep.mubr.f32.mxu0 0.0
      %576 = vmatmul.mubr.f32.gmra.mxu0 %v350
      %v577 = vpop.f32.mrf.mxu0
      %v578 = vadd.f32 0.0, %v577
      %v579 = vpop.f32.mrf.mxu0
      %580 = vmatprep.mubr.f32.mxu0 0.0
      %581 = vmatmul.mubr.f32.gmra.mxu0 %v351
      %v582 = vpop.f32.mrf.mxu0
      %v583 = vadd.f32 0.0, %v582
      %v584 = vpop.f32.mrf.mxu0
      %585 = vmatprep.mubr.f32.mxu0 0.0
      %586 = vmatmul.mubr.f32.gmra.mxu0 %v352
      %v587 = vpop.f32.mrf.mxu0
      %v588 = vadd.f32 0.0, %v587
      %v589 = vpop.f32.mrf.mxu0
      %590 = vmatprep.mubr.f32.mxu0 0.0
      %591 = vmatmul.mubr.f32.gmra.mxu0 %v353
      %v592 = vpop.f32.mrf.mxu0
      %v593 = vadd.f32 0.0, %v592
      %v594 = vpop.f32.mrf.mxu0
      %595 = vdwg.mxu0
      %596 = vmatprep.subr.mxu0 0.0
      %597 = vmatpush1.msra.mxu0 %v288
      %598 = vmatprep.subr.mxu0 0.0
      %599 = vmatpush1.msra.mxu0 %v287
      %600 = vmatprep.subr.mxu0 0.0
      %601 = vmatpush1.msra.mxu0 %v286
      %602 = vmatprep.subr.mxu0 0.0
      %603 = vmatpush1.msra.mxu0 %v285
      %604 = vmatprep.subr.mxu0 0.0
      %605 = vmatpush1.msra.mxu0 %v284
      %606 = vmatprep.subr.mxu0 0.0
      %607 = vmatpush1.msra.mxu0 %v283
      %608 = vmatprep.subr.mxu0 0.0
      %609 = vmatpush1.msra.mxu0 %v282
      %610 = vmatprep.subr.mxu0 0.0
      %611 = vmatpush1.msra.mxu0 %v281
      %612 = vmatprep.subr.mxu0 0.0
      %613 = vmatpush1.msra.mxu0 %v280
      %614 = vmatprep.subr.mxu0 0.0
      %615 = vmatpush1.msra.mxu0 %v279
      %616 = vmatprep.subr.mxu0 0.0
      %617 = vmatpush1.msra.mxu0 %v278
      %618 = vmatprep.subr.mxu0 0.0
      %619 = vmatpush1.msra.mxu0 %v277
      %620 = vmatprep.subr.mxu0 0.0
      %621 = vmatpush1.msra.mxu0 %v276
      %622 = vmatprep.subr.mxu0 0.0
      %623 = vmatpush1.msra.mxu0 %v275
      %624 = vmatprep.subr.mxu0 0.0
      %625 = vmatpush1.msra.mxu0 %v274
      %626 = vmatprep.subr.mxu0 0.0
      %627 = vmatpush1.msra.mxu0 %v273
      %628 = vmatprep.subr.mxu0 0.0
      %629 = vmatpush2.msra.mxu0 0.0
      %630 = vmatprep.subr.mxu0 0.0
      %631 = vmatpush2.msra.mxu0 0.0
      %632 = vmatprep.subr.mxu0 0.0
      %633 = vmatpush2.msra.mxu0 0.0
      %634 = vmatprep.subr.mxu0 0.0
      %635 = vmatpush2.msra.mxu0 0.0
      %636 = vmatprep.subr.mxu0 0.0
      %637 = vmatpush2.msra.mxu0 0.0
      %638 = vmatprep.subr.mxu0 0.0
      %639 = vmatpush2.msra.mxu0 0.0
      %640 = vmatprep.subr.mxu0 0.0
      %641 = vmatpush2.msra.mxu0 0.0
      %642 = vmatprep.subr.mxu0 0.0
      %643 = vmatpush2.msra.mxu0 0.0
      %644 = vmatprep.subr.mxu0 0.0
      %645 = vmatpush2.msra.mxu0 0.0
      %646 = vmatprep.subr.mxu0 0.0
      %647 = vmatpush2.msra.mxu0 0.0
      %648 = vmatprep.subr.mxu0 0.0
      %649 = vmatpush2.msra.mxu0 0.0
      %650 = vmatprep.subr.mxu0 0.0
      %651 = vmatpush2.msra.mxu0 0.0
      %652 = vmatprep.subr.mxu0 0.0
      %653 = vmatpush2.msra.mxu0 0.0
      %654 = vmatprep.subr.mxu0 0.0
      %655 = vmatpush2.msra.mxu0 0.0
      %656 = vmatprep.subr.mxu0 0.0
      %657 = vmatpush2.msra.mxu0 0.0
      %658 = vmatprep.subr.mxu0 0.0
      %659 = vmatpush2.msra.mxu0 0.0
      %660 = vmatprep.mubr.f32.mxu0 0.0
      %661 = vmatmul.mubr.f32.gmra.mxu0 %v241
      %v662 = vpop.f32.mrf.mxu0
      %v663 = vadd.f32 %v438, %v662
      %v664 = vpop.f32.mrf.mxu0
      %665 = vmatprep.mubr.f32.mxu0 0.0
      %666 = vmatmul.mubr.f32.gmra.mxu0 %v242
      %v667 = vpop.f32.mrf.mxu0
      %v668 = vadd.f32 %v443, %v667
      %v669 = vpop.f32.mrf.mxu0
      %670 = vmatprep.mubr.f32.mxu0 0.0
      %671 = vmatmul.mubr.f32.gmra.mxu0 %v243
      %v672 = vpop.f32.mrf.mxu0
      %v673 = vadd.f32 %v448, %v672
      %v674 = vpop.f32.mrf.mxu0
      %675 = vmatprep.mubr.f32.mxu0 0.0
      %676 = vmatmul.mubr.f32.gmra.mxu0 %v244
      %v677 = vpop.f32.mrf.mxu0
      %v678 = vadd.f32 %v453, %v677
      %v679 = vpop.f32.mrf.mxu0
      %680 = vmatprep.mubr.f32.mxu0 0.0
      %681 = vmatmul.mubr.f32.gmra.mxu0 %v245
      %v682 = vpop.f32.mrf.mxu0
      %v683 = vadd.f32 %v458, %v682
      %v684 = vpop.f32.mrf.mxu0
      %685 = vmatprep.mubr.f32.mxu0 0.0
      %686 = vmatmul.mubr.f32.gmra.mxu0 %v246
      %v687 = vpop.f32.mrf.mxu0
      %v688 = vadd.f32 %v463, %v687
      %v689 = vpop.f32.mrf.mxu0
      %690 = vmatprep.mubr.f32.mxu0 0.0
      %691 = vmatmul.mubr.f32.gmra.mxu0 %v247
      %v692 = vpop.f32.mrf.mxu0
      %v693 = vadd.f32 %v468, %v692
      %v694 = vpop.f32.mrf.mxu0
      %695 = vmatprep.mubr.f32.mxu0 0.0
      %696 = vmatmul.mubr.f32.gmra.mxu0 %v248
      %v697 = vpop.f32.mrf.mxu0
      %v698 = vadd.f32 %v473, %v697
      %v699 = vpop.f32.mrf.mxu0
      %700 = vmatprep.mubr.f32.mxu0 0.0
      %701 = vmatmul.mubr.f32.gmra.mxu0 %v249
      %v702 = vpop.f32.mrf.mxu0
      %v703 = vadd.f32 %v478, %v702
      %v704 = vpop.f32.mrf.mxu0
      %705 = vmatprep.mubr.f32.mxu0 0.0
      %706 = vmatmul.mubr.f32.gmra.mxu0 %v250
      %v707 = vpop.f32.mrf.mxu0
      %v708 = vadd.f32 %v483, %v707
      %v709 = vpop.f32.mrf.mxu0
      %710 = vmatprep.mubr.f32.mxu0 0.0
      %711 = vmatmul.mubr.f32.gmra.mxu0 %v251
      %v712 = vpop.f32.mrf.mxu0
      %v713 = vadd.f32 %v488, %v712
      %v714 = vpop.f32.mrf.mxu0
      %715 = vmatprep.mubr.f32.mxu0 0.0
      %716 = vmatmul.mubr.f32.gmra.mxu0 %v252
      %v717 = vpop.f32.mrf.mxu0
      %v718 = vadd.f32 %v493, %v717
      %v719 = vpop.f32.mrf.mxu0
      %720 = vmatprep.mubr.f32.mxu0 0.0
      %721 = vmatmul.mubr.f32.gmra.mxu0 %v253
      %v722 = vpop.f32.mrf.mxu0
      %v723 = vadd.f32 %v498, %v722
      %v724 = vpop.f32.mrf.mxu0
      %725 = vmatprep.mubr.f32.mxu0 0.0
      %726 = vmatmul.mubr.f32.gmra.mxu0 %v254
      %v727 = vpop.f32.mrf.mxu0
      %v728 = vadd.f32 %v503, %v727
      %v729 = vpop.f32.mrf.mxu0
      %730 = vmatprep.mubr.f32.mxu0 0.0
      %731 = vmatmul.mubr.f32.gmra.mxu0 %v255
      %v732 = vpop.f32.mrf.mxu0
      %v733 = vadd.f32 %v508, %v732
      %v734 = vpop.f32.mrf.mxu0
      %735 = vmatprep.mubr.f32.mxu0 0.0
      %736 = vmatmul.mubr.f32.gmra.mxu0 %v256
      %v737 = vpop.f32.mrf.mxu0
      %v738 = vadd.f32 %v513, %v737
      %v739 = vpop.f32.mrf.mxu0
      %740 = vmatprep.mubr.f32.mxu0 0.0
      %741 = vmatmul.mubr.f32.gmra.mxu0 %v257
      %v742 = vpop.f32.mrf.mxu0
      %v743 = vadd.f32 %v518, %v742
      %v744 = vpop.f32.mrf.mxu0
      %745 = vmatprep.mubr.f32.mxu0 0.0
      %746 = vmatmul.mubr.f32.gmra.mxu0 %v258
      %v747 = vpop.f32.mrf.mxu0
      %v748 = vadd.f32 %v523, %v747
      %v749 = vpop.f32.mrf.mxu0
      %750 = vmatprep.mubr.f32.mxu0 0.0
      %751 = vmatmul.mubr.f32.gmra.mxu0 %v259
      %v752 = vpop.f32.mrf.mxu0
      %v753 = vadd.f32 %v528, %v752
      %v754 = vpop.f32.mrf.mxu0
      %755 = vmatprep.mubr.f32.mxu0 0.0
      %756 = vmatmul.mubr.f32.gmra.mxu0 %v260
      %v757 = vpop.f32.mrf.mxu0
      %v758 = vadd.f32 %v533, %v757
      %v759 = vpop.f32.mrf.mxu0
      %760 = vmatprep.mubr.f32.mxu0 0.0
      %761 = vmatmul.mubr.f32.gmra.mxu0 %v261
      %v762 = vpop.f32.mrf.mxu0
      %v763 = vadd.f32 %v538, %v762
      %v764 = vpop.f32.mrf.mxu0
      %765 = vmatprep.mubr.f32.mxu0 0.0
      %766 = vmatmul.mubr.f32.gmra.mxu0 %v262
      %v767 = vpop.f32.mrf.mxu0
      %v768 = vadd.f32 %v543, %v767
      %v769 = vpop.f32.mrf.mxu0
      %770 = vmatprep.mubr.f32.mxu0 0.0
      %771 = vmatmul.mubr.f32.gmra.mxu0 %v263
      %v772 = vpop.f32.mrf.mxu0
      %v773 = vadd.f32 %v548, %v772
      %v774 = vpop.f32.mrf.mxu0
      %775 = vmatprep.mubr.f32.mxu0 0.0
      %776 = vmatmul.mubr.f32.gmra.mxu0 %v264
      %v777 = vpop.f32.mrf.mxu0
      %v778 = vadd.f32 %v553, %v777
      %v779 = vpop.f32.mrf.mxu0
      %780 = vmatprep.mubr.f32.mxu0 0.0
      %781 = vmatmul.mubr.f32.gmra.mxu0 %v265
      %v782 = vpop.f32.mrf.mxu0
      %v783 = vadd.f32 %v558, %v782
      %v784 = vpop.f32.mrf.mxu0
      %785 = vmatprep.mubr.f32.mxu0 0.0
      %786 = vmatmul.mubr.f32.gmra.mxu0 %v266
      %v787 = vpop.f32.mrf.mxu0
      %v788 = vadd.f32 %v563, %v787
      %v789 = vpop.f32.mrf.mxu0
      %790 = vmatprep.mubr.f32.mxu0 0.0
      %791 = vmatmul.mubr.f32.gmra.mxu0 %v267
      %v792 = vpop.f32.mrf.mxu0
      %v793 = vadd.f32 %v568, %v792
      %v794 = vpop.f32.mrf.mxu0
      %795 = vmatprep.mubr.f32.mxu0 0.0
      %796 = vmatmul.mubr.f32.gmra.mxu0 %v268
      %v797 = vpop.f32.mrf.mxu0
      %v798 = vadd.f32 %v573, %v797
      %v799 = vpop.f32.mrf.mxu0
      %800 = vmatprep.mubr.f32.mxu0 0.0
      %801 = vmatmul.mubr.f32.gmra.mxu0 %v269
      %v802 = vpop.f32.mrf.mxu0
      %v803 = vadd.f32 %v578, %v802
      %v804 = vpop.f32.mrf.mxu0
      %805 = vmatprep.mubr.f32.mxu0 0.0
      %806 = vmatmul.mubr.f32.gmra.mxu0 %v270
      %v807 = vpop.f32.mrf.mxu0
      %v808 = vadd.f32 %v583, %v807
      %v809 = vpop.f32.mrf.mxu0
      %810 = vmatprep.mubr.f32.mxu0 0.0
      %811 = vmatmul.mubr.f32.gmra.mxu0 %v271
      %v812 = vpop.f32.mrf.mxu0
      %v813 = vadd.f32 %v588, %v812
      %v814 = vpop.f32.mrf.mxu0
      %815 = vmatprep.mubr.f32.mxu0 0.0
      %816 = vmatmul.mubr.f32.gmra.mxu0 %v272
      %v817 = vpop.f32.mrf.mxu0
      %v818 = vadd.f32 %v593, %v817
      %v819 = vpop.f32.mrf.mxu0
      %820 = vdwg.mxu0
      %s821 = scalar_lea.vmem %s199, 576
      %v822 = vld [vmem:[%s821] sm:$0xff]
      %v823 = vld [vmem:[%s821 + $0x8] sm:$0xff]
      %v824 = vld [vmem:[%s821 + $0x10] sm:$0xff]
      %v825 = vld [vmem:[%s821 + $0x18] sm:$0xff]
      %v826 = vld [vmem:[%s821 + $0x20] sm:$0xff]
      %v827 = vld [vmem:[%s821 + $0x28] sm:$0xff]
      %v828 = vld [vmem:[%s821 + $0x30] sm:$0xff]
      %v829 = vld [vmem:[%s821 + $0x38] sm:$0xff]
      %v830 = vld [vmem:[%s821 + $0x40] sm:$0xff]
      %v831 = vld [vmem:[%s821 + $0x48] sm:$0xff]
      %v832 = vld [vmem:[%s821 + $0x50] sm:$0xff]
      %v833 = vld [vmem:[%s821 + $0x58] sm:$0xff]
      %v834 = vld [vmem:[%s821 + $0x60] sm:$0xff]
      %v835 = vld [vmem:[%s821 + $0x68] sm:$0xff]
      %v836 = vld [vmem:[%s821 + $0x70] sm:$0xff]
      %v837 = vld [vmem:[%s821 + $0x78] sm:$0xff]
      %v838 = vld [vmem:[%s821 + $0x80] sm:$0xff]
      %v839 = vld [vmem:[%s821 + $0x88] sm:$0xff]
      %v840 = vld [vmem:[%s821 + $0x90] sm:$0xff]
      %v841 = vld [vmem:[%s821 + $0x98] sm:$0xff]
      %v842 = vld [vmem:[%s821 + $0xa0] sm:$0xff]
      %v843 = vld [vmem:[%s821 + $0xa8] sm:$0xff]
      %v844 = vld [vmem:[%s821 + $0xb0] sm:$0xff]
      %v845 = vld [vmem:[%s821 + $0xb8] sm:$0xff]
      %v846 = vld [vmem:[%s821 + $0xc0] sm:$0xff]
      %v847 = vld [vmem:[%s821 + $0xc8] sm:$0xff]
      %v848 = vld [vmem:[%s821 + $0xd0] sm:$0xff]
      %v849 = vld [vmem:[%s821 + $0xd8] sm:$0xff]
      %v850 = vld [vmem:[%s821 + $0xe0] sm:$0xff]
      %v851 = vld [vmem:[%s821 + $0xe8] sm:$0xff]
      %v852 = vld [vmem:[%s821 + $0xf0] sm:$0xff]
      %v853 = vld [vmem:[%s821 + $0xf8] sm:$0xff]
      %v854 = vmax.f32 %v822, 0.0
      %v855 = vmax.f32 %v823, 0.0
      %v856 = vmax.f32 %v824, 0.0
      %v857 = vmax.f32 %v825, 0.0
      %v858 = vmax.f32 %v826, 0.0
      %v859 = vmax.f32 %v827, 0.0
      %v860 = vmax.f32 %v828, 0.0
      %v861 = vmax.f32 %v829, 0.0
      %v862 = vmax.f32 %v830, 0.0
      %v863 = vmax.f32 %v831, 0.0
      %v864 = vmax.f32 %v832, 0.0
      %v865 = vmax.f32 %v833, 0.0
      %v866 = vmax.f32 %v834, 0.0
      %v867 = vmax.f32 %v835, 0.0
      %v868 = vmax.f32 %v836, 0.0
      %v869 = vmax.f32 %v837, 0.0
      %v870 = vmax.f32 %v838, 0.0
      %v871 = vmax.f32 %v839, 0.0
      %v872 = vmax.f32 %v840, 0.0
      %v873 = vmax.f32 %v841, 0.0
      %v874 = vmax.f32 %v842, 0.0
      %v875 = vmax.f32 %v843, 0.0
      %v876 = vmax.f32 %v844, 0.0
      %v877 = vmax.f32 %v845, 0.0
      %v878 = vmax.f32 %v846, 0.0
      %v879 = vmax.f32 %v847, 0.0
      %v880 = vmax.f32 %v848, 0.0
      %v881 = vmax.f32 %v849, 0.0
      %v882 = vmax.f32 %v850, 0.0
      %v883 = vmax.f32 %v851, 0.0
      %v884 = vmax.f32 %v852, 0.0
      %v885 = vmax.f32 %v853, 0.0
      %s886 = scalar_lea.vmem %s1, 256
      %v887 = vld [vmem:[%s886] sm:$0xff]
      %v888 = vld [vmem:[%s886 + $0x8] sm:$0xff]
      %v889 = vld [vmem:[%s886 + $0x10] sm:$0xff]
      %v890 = vld [vmem:[%s886 + $0x18] sm:$0xff]
      %v891 = vld [vmem:[%s886 + $0x20] sm:$0xff]
      %v892 = vld [vmem:[%s886 + $0x28] sm:$0xff]
      %v893 = vld [vmem:[%s886 + $0x30] sm:$0xff]
      %v894 = vld [vmem:[%s886 + $0x38] sm:$0xff]
      %v895 = vld [vmem:[%s886 + $0x40] sm:$0xff]
      %v896 = vld [vmem:[%s886 + $0x48] sm:$0xff]
      %v897 = vld [vmem:[%s886 + $0x50] sm:$0xff]
      %v898 = vld [vmem:[%s886 + $0x58] sm:$0xff]
      %v899 = vld [vmem:[%s886 + $0x60] sm:$0xff]
      %v900 = vld [vmem:[%s886 + $0x68] sm:$0xff]
      %v901 = vld [vmem:[%s886 + $0x70] sm:$0xff]
      %v902 = vld [vmem:[%s886 + $0x78] sm:$0xff]
      %903 = vmatprep.subr.mxu0 0.0
      %904 = vmatpush1.msra.mxu0 %v902
      %905 = vmatprep.subr.mxu0 0.0
      %906 = vmatpush1.msra.mxu0 %v901
      %907 = vmatprep.subr.mxu0 0.0
      %908 = vmatpush1.msra.mxu0 %v900
      %909 = vmatprep.subr.mxu0 0.0
      %910 = vmatpush1.msra.mxu0 %v899
      %911 = vmatprep.subr.mxu0 0.0
      %912 = vmatpush1.msra.mxu0 %v898
      %913 = vmatprep.subr.mxu0 0.0
      %914 = vmatpush1.msra.mxu0 %v897
      %915 = vmatprep.subr.mxu0 0.0
      %916 = vmatpush1.msra.mxu0 %v896
      %917 = vmatprep.subr.mxu0 0.0
      %918 = vmatpush1.msra.mxu0 %v895
      %919 = vmatprep.subr.mxu0 0.0
      %920 = vmatpush1.msra.mxu0 %v894
      %921 = vmatprep.subr.mxu0 0.0
      %922 = vmatpush1.msra.mxu0 %v893
      %923 = vmatprep.subr.mxu0 0.0
      %924 = vmatpush1.msra.mxu0 %v892
      %925 = vmatprep.subr.mxu0 0.0
      %926 = vmatpush1.msra.mxu0 %v891
      %927 = vmatprep.subr.mxu0 0.0
      %928 = vmatpush1.msra.mxu0 %v890
      %929 = vmatprep.subr.mxu0 0.0
      %930 = vmatpush1.msra.mxu0 %v889
      %931 = vmatprep.subr.mxu0 0.0
      %932 = vmatpush1.msra.mxu0 %v888
      %933 = vmatprep.subr.mxu0 0.0
      %934 = vmatpush1.msra.mxu0 %v887
      %935 = vmatprep.subr.mxu0 0.0
      %936 = vmatpush2.msra.mxu0 0.0
      %937 = vmatprep.subr.mxu0 0.0
      %938 = vmatpush2.msra.mxu0 0.0
      %939 = vmatprep.subr.mxu0 0.0
      %940 = vmatpush2.msra.mxu0 0.0
      %941 = vmatprep.subr.mxu0 0.0
      %942 = vmatpush2.msra.mxu0 0.0
      %943 = vmatprep.subr.mxu0 0.0
      %944 = vmatpush2.msra.mxu0 0.0
      %945 = vmatprep.subr.mxu0 0.0
      %946 = vmatpush2.msra.mxu0 0.0
      %947 = vmatprep.subr.mxu0 0.0
      %948 = vmatpush2.msra.mxu0 0.0
      %949 = vmatprep.subr.mxu0 0.0
      %950 = vmatpush2.msra.mxu0 0.0
      %951 = vmatprep.subr.mxu0 0.0
      %952 = vmatpush2.msra.mxu0 0.0
      %953 = vmatprep.subr.mxu0 0.0
      %954 = vmatpush2.msra.mxu0 0.0
      %955 = vmatprep.subr.mxu0 0.0
      %956 = vmatpush2.msra.mxu0 0.0
      %957 = vmatprep.subr.mxu0 0.0
      %958 = vmatpush2.msra.mxu0 0.0
      %959 = vmatprep.subr.mxu0 0.0
      %960 = vmatpush2.msra.mxu0 0.0
      %961 = vmatprep.subr.mxu0 0.0
      %962 = vmatpush2.msra.mxu0 0.0
      %963 = vmatprep.subr.mxu0 0.0
      %964 = vmatpush2.msra.mxu0 0.0
      %965 = vmatprep.subr.mxu0 0.0
      %966 = vmatpush2.msra.mxu0 0.0
      %967 = vmatprep.mubr.f32.mxu0 0.0
      %968 = vmatmul.mubr.f32.gmra.mxu0 %v854
      %v969 = vpop.f32.mrf.mxu0
      %v970 = vadd.f32 0.0, %v969
      %v971 = vpop.f32.mrf.mxu0
      %972 = vmatprep.mubr.f32.mxu0 0.0
      %973 = vmatmul.mubr.f32.gmra.mxu0 %v855
      %v974 = vpop.f32.mrf.mxu0
      %v975 = vadd.f32 0.0, %v974
      %v976 = vpop.f32.mrf.mxu0
      %977 = vmatprep.mubr.f32.mxu0 0.0
      %978 = vmatmul.mubr.f32.gmra.mxu0 %v856
      %v979 = vpop.f32.mrf.mxu0
      %v980 = vadd.f32 0.0, %v979
      %v981 = vpop.f32.mrf.mxu0
      %982 = vmatprep.mubr.f32.mxu0 0.0
      %983 = vmatmul.mubr.f32.gmra.mxu0 %v857
      %v984 = vpop.f32.mrf.mxu0
      %v985 = vadd.f32 0.0, %v984
      %v986 = vpop.f32.mrf.mxu0
      %987 = vmatprep.mubr.f32.mxu0 0.0
      %988 = vmatmul.mubr.f32.gmra.mxu0 %v858
      %v989 = vpop.f32.mrf.mxu0
      %v990 = vadd.f32 0.0, %v989
      %v991 = vpop.f32.mrf.mxu0
      %992 = vmatprep.mubr.f32.mxu0 0.0
      %993 = vmatmul.mubr.f32.gmra.mxu0 %v859
      %v994 = vpop.f32.mrf.mxu0
      %v995 = vadd.f32 0.0, %v994
      %v996 = vpop.f32.mrf.mxu0
      %997 = vmatprep.mubr.f32.mxu0 0.0
      %998 = vmatmul.mubr.f32.gmra.mxu0 %v860
      %v999 = vpop.f32.mrf.mxu0
      %v1000 = vadd.f32 0.0, %v999
      %v1001 = vpop.f32.mrf.mxu0
      %1002 = vmatprep.mubr.f32.mxu0 0.0
      %1003 = vmatmul.mubr.f32.gmra.mxu0 %v861
      %v1004 = vpop.f32.mrf.mxu0
      %v1005 = vadd.f32 0.0, %v1004
      %v1006 = vpop.f32.mrf.mxu0
      %1007 = vmatprep.mubr.f32.mxu0 0.0
      %1008 = vmatmul.mubr.f32.gmra.mxu0 %v862
      %v1009 = vpop.f32.mrf.mxu0
      %v1010 = vadd.f32 0.0, %v1009
      %v1011 = vpop.f32.mrf.mxu0
      %1012 = vmatprep.mubr.f32.mxu0 0.0
      %1013 = vmatmul.mubr.f32.gmra.mxu0 %v863
      %v1014 = vpop.f32.mrf.mxu0
      %v1015 = vadd.f32 0.0, %v1014
      %v1016 = vpop.f32.mrf.mxu0
      %1017 = vmatprep.mubr.f32.mxu0 0.0
      %1018 = vmatmul.mubr.f32.gmra.mxu0 %v864
      %v1019 = vpop.f32.mrf.mxu0
      %v1020 = vadd.f32 0.0, %v1019
      %v1021 = vpop.f32.mrf.mxu0
      %1022 = vmatprep.mubr.f32.mxu0 0.0
      %1023 = vmatmul.mubr.f32.gmra.mxu0 %v865
      %v1024 = vpop.f32.mrf.mxu0
      %v1025 = vadd.f32 0.0, %v1024
      %v1026 = vpop.f32.mrf.mxu0
      %1027 = vmatprep.mubr.f32.mxu0 0.0
      %1028 = vmatmul.mubr.f32.gmra.mxu0 %v866
      %v1029 = vpop.f32.mrf.mxu0
      %v1030 = vadd.f32 0.0, %v1029
      %v1031 = vpop.f32.mrf.mxu0
      %1032 = vmatprep.mubr.f32.mxu0 0.0
      %1033 = vmatmul.mubr.f32.gmra.mxu0 %v867
      %v1034 = vpop.f32.mrf.mxu0
      %v1035 = vadd.f32 0.0, %v1034
      %v1036 = vpop.f32.mrf.mxu0
      %1037 = vmatprep.mubr.f32.mxu0 0.0
      %1038 = vmatmul.mubr.f32.gmra.mxu0 %v868
      %v1039 = vpop.f32.mrf.mxu0
      %v1040 = vadd.f32 0.0, %v1039
      %v1041 = vpop.f32.mrf.mxu0
      %1042 = vmatprep.mubr.f32.mxu0 0.0
      %1043 = vmatmul.mubr.f32.gmra.mxu0 %v869
      %v1044 = vpop.f32.mrf.mxu0
      %v1045 = vadd.f32 0.0, %v1044
      %v1046 = vpop.f32.mrf.mxu0
      %1047 = vmatprep.mubr.f32.mxu0 0.0
      %1048 = vmatmul.mubr.f32.gmra.mxu0 %v870
      %v1049 = vpop.f32.mrf.mxu0
      %v1050 = vadd.f32 0.0, %v1049
      %v1051 = vpop.f32.mrf.mxu0
      %1052 = vmatprep.mubr.f32.mxu0 0.0
      %1053 = vmatmul.mubr.f32.gmra.mxu0 %v871
      %v1054 = vpop.f32.mrf.mxu0
      %v1055 = vadd.f32 0.0, %v1054
      %v1056 = vpop.f32.mrf.mxu0
      %1057 = vmatprep.mubr.f32.mxu0 0.0
      %1058 = vmatmul.mubr.f32.gmra.mxu0 %v872
      %v1059 = vpop.f32.mrf.mxu0
      %v1060 = vadd.f32 0.0, %v1059
      %v1061 = vpop.f32.mrf.mxu0
      %1062 = vmatprep.mubr.f32.mxu0 0.0
      %1063 = vmatmul.mubr.f32.gmra.mxu0 %v873
      %v1064 = vpop.f32.mrf.mxu0
      %v1065 = vadd.f32 0.0, %v1064
      %v1066 = vpop.f32.mrf.mxu0
      %1067 = vmatprep.mubr.f32.mxu0 0.0
      %1068 = vmatmul.mubr.f32.gmra.mxu0 %v874
      %v1069 = vpop.f32.mrf.mxu0
      %v1070 = vadd.f32 0.0, %v1069
      %v1071 = vpop.f32.mrf.mxu0
      %1072 = vmatprep.mubr.f32.mxu0 0.0
      %1073 = vmatmul.mubr.f32.gmra.mxu0 %v875
      %v1074 = vpop.f32.mrf.mxu0
      %v1075 = vadd.f32 0.0, %v1074
      %v1076 = vpop.f32.mrf.mxu0
      %1077 = vmatprep.mubr.f32.mxu0 0.0
      %1078 = vmatmul.mubr.f32.gmra.mxu0 %v876
      %v1079 = vpop.f32.mrf.mxu0
      %v1080 = vadd.f32 0.0, %v1079
      %v1081 = vpop.f32.mrf.mxu0
      %1082 = vmatprep.mubr.f32.mxu0 0.0
      %1083 = vmatmul.mubr.f32.gmra.mxu0 %v877
      %v1084 = vpop.f32.mrf.mxu0
      %v1085 = vadd.f32 0.0, %v1084
      %v1086 = vpop.f32.mrf.mxu0
      %1087 = vmatprep.mubr.f32.mxu0 0.0
      %1088 = vmatmul.mubr.f32.gmra.mxu0 %v878
      %v1089 = vpop.f32.mrf.mxu0
      %v1090 = vadd.f32 0.0, %v1089
      %v1091 = vpop.f32.mrf.mxu0
      %1092 = vmatprep.mubr.f32.mxu0 0.0
      %1093 = vmatmul.mubr.f32.gmra.mxu0 %v879
      %v1094 = vpop.f32.mrf.mxu0
      %v1095 = vadd.f32 0.0, %v1094
      %v1096 = vpop.f32.mrf.mxu0
      %1097 = vmatprep.mubr.f32.mxu0 0.0
      %1098 = vmatmul.mubr.f32.gmra.mxu0 %v880
      %v1099 = vpop.f32.mrf.mxu0
      %v1100 = vadd.f32 0.0, %v1099
      %v1101 = vpop.f32.mrf.mxu0
      %1102 = vmatprep.mubr.f32.mxu0 0.0
      %1103 = vmatmul.mubr.f32.gmra.mxu0 %v881
      %v1104 = vpop.f32.mrf.mxu0
      %v1105 = vadd.f32 0.0, %v1104
      %v1106 = vpop.f32.mrf.mxu0
      %1107 = vmatprep.mubr.f32.mxu0 0.0
      %1108 = vmatmul.mubr.f32.gmra.mxu0 %v882
      %v1109 = vpop.f32.mrf.mxu0
      %v1110 = vadd.f32 0.0, %v1109
      %v1111 = vpop.f32.mrf.mxu0
      %1112 = vmatprep.mubr.f32.mxu0 0.0
      %1113 = vmatmul.mubr.f32.gmra.mxu0 %v883
      %v1114 = vpop.f32.mrf.mxu0
      %v1115 = vadd.f32 0.0, %v1114
      %v1116 = vpop.f32.mrf.mxu0
      %1117 = vmatprep.mubr.f32.mxu0 0.0
      %1118 = vmatmul.mubr.f32.gmra.mxu0 %v884
      %v1119 = vpop.f32.mrf.mxu0
      %v1120 = vadd.f32 0.0, %v1119
      %v1121 = vpop.f32.mrf.mxu0
      %1122 = vmatprep.mubr.f32.mxu0 0.0
      %1123 = vmatmul.mubr.f32.gmra.mxu0 %v885
      %v1124 = vpop.f32.mrf.mxu0
      %v1125 = vadd.f32 0.0, %v1124
      %v1126 = vpop.f32.mrf.mxu0
      %1127 = vdwg.mxu0
      %v1128 = vadd.f32 %v663, %v970
      %v1129 = vadd.f32 %v668, %v975
      %v1130 = vadd.f32 %v673, %v980
      %v1131 = vadd.f32 %v678, %v985
      %v1132 = vadd.f32 %v683, %v990
      %v1133 = vadd.f32 %v688, %v995
      %v1134 = vadd.f32 %v693, %v1000
      %v1135 = vadd.f32 %v698, %v1005
      %v1136 = vadd.f32 %v703, %v1010
      %v1137 = vadd.f32 %v708, %v1015
      %v1138 = vadd.f32 %v713, %v1020
      %v1139 = vadd.f32 %v718, %v1025
      %v1140 = vadd.f32 %v723, %v1030
      %v1141 = vadd.f32 %v728, %v1035
      %v1142 = vadd.f32 %v733, %v1040
      %v1143 = vadd.f32 %v738, %v1045
      %v1144 = vadd.f32 %v743, %v1050
      %v1145 = vadd.f32 %v748, %v1055
      %v1146 = vadd.f32 %v753, %v1060
      %v1147 = vadd.f32 %v758, %v1065
      %v1148 = vadd.f32 %v763, %v1070
      %v1149 = vadd.f32 %v768, %v1075
      %v1150 = vadd.f32 %v773, %v1080
      %v1151 = vadd.f32 %v778, %v1085
      %v1152 = vadd.f32 %v783, %v1090
      %v1153 = vadd.f32 %v788, %v1095
      %v1154 = vadd.f32 %v793, %v1100
      %v1155 = vadd.f32 %v798, %v1105
      %v1156 = vadd.f32 %v803, %v1110
      %v1157 = vadd.f32 %v808, %v1115
      %v1158 = vadd.f32 %v813, %v1120
      %v1159 = vadd.f32 %v818, %v1125
      %s1160 = scalar_lea.vmem %s199, 16
      %v1161 = vld [vmem:[%s1160] sm:$0xff]
      %v1162 = vld [vmem:[%s1160 + $0x8] sm:$0xff]
      %v1163 = vld [vmem:[%s1160 + $0x10] sm:$0xff]
      %v1164 = vld [vmem:[%s1160 + $0x18] sm:$0xff]
      %v1165 = vld [vmem:[%s1160 + $0x20] sm:$0xff]
      %v1166 = vld [vmem:[%s1160 + $0x28] sm:$0xff]
      %v1167 = vld [vmem:[%s1160 + $0x30] sm:$0xff]
      %v1168 = vld [vmem:[%s1160 + $0x38] sm:$0xff]
      %v1169 = vld [vmem:[%s1160 + $0x40] sm:$0xff]
      %v1170 = vld [vmem:[%s1160 + $0x48] sm:$0xff]
      %v1171 = vld [vmem:[%s1160 + $0x50] sm:$0xff]
      %v1172 = vld [vmem:[%s1160 + $0x58] sm:$0xff]
      %v1173 = vld [vmem:[%s1160 + $0x60] sm:$0xff]
      %v1174 = vld [vmem:[%s1160 + $0x68] sm:$0xff]
      %v1175 = vld [vmem:[%s1160 + $0x70] sm:$0xff]
      %v1176 = vld [vmem:[%s1160 + $0x78] sm:$0xff]
      %v1177 = vld [vmem:[%s1160 + $0x80] sm:$0xff]
      %v1178 = vld [vmem:[%s1160 + $0x88] sm:$0xff]
      %v1179 = vld [vmem:[%s1160 + $0x90] sm:$0xff]
      %v1180 = vld [vmem:[%s1160 + $0x98] sm:$0xff]
      %v1181 = vld [vmem:[%s1160 + $0xa0] sm:$0xff]
      %v1182 = vld [vmem:[%s1160 + $0xa8] sm:$0xff]
      %v1183 = vld [vmem:[%s1160 + $0xb0] sm:$0xff]
      %v1184 = vld [vmem:[%s1160 + $0xb8] sm:$0xff]
      %v1185 = vld [vmem:[%s1160 + $0xc0] sm:$0xff]
      %v1186 = vld [vmem:[%s1160 + $0xc8] sm:$0xff]
      %v1187 = vld [vmem:[%s1160 + $0xd0] sm:$0xff]
      %v1188 = vld [vmem:[%s1160 + $0xd8] sm:$0xff]
      %v1189 = vld [vmem:[%s1160 + $0xe0] sm:$0xff]
      %v1190 = vld [vmem:[%s1160 + $0xe8] sm:$0xff]
      %v1191 = vld [vmem:[%s1160 + $0xf0] sm:$0xff]
      %v1192 = vld [vmem:[%s1160 + $0xf8] sm:$0xff]
      %v1193 = vmax.f32 %v1161, 0.0
      %v1194 = vmax.f32 %v1162, 0.0
      %v1195 = vmax.f32 %v1163, 0.0
      %v1196 = vmax.f32 %v1164, 0.0
      %v1197 = vmax.f32 %v1165, 0.0
      %v1198 = vmax.f32 %v1166, 0.0
      %v1199 = vmax.f32 %v1167, 0.0
      %v1200 = vmax.f32 %v1168, 0.0
      %v1201 = vmax.f32 %v1169, 0.0
      %v1202 = vmax.f32 %v1170, 0.0
      %v1203 = vmax.f32 %v1171, 0.0
      %v1204 = vmax.f32 %v1172, 0.0
      %v1205 = vmax.f32 %v1173, 0.0
      %v1206 = vmax.f32 %v1174, 0.0
      %v1207 = vmax.f32 %v1175, 0.0
      %v1208 = vmax.f32 %v1176, 0.0
      %v1209 = vmax.f32 %v1177, 0.0
      %v1210 = vmax.f32 %v1178, 0.0
      %v1211 = vmax.f32 %v1179, 0.0
      %v1212 = vmax.f32 %v1180, 0.0
      %v1213 = vmax.f32 %v1181, 0.0
      %v1214 = vmax.f32 %v1182, 0.0
      %v1215 = vmax.f32 %v1183, 0.0
      %v1216 = vmax.f32 %v1184, 0.0
      %v1217 = vmax.f32 %v1185, 0.0
      %v1218 = vmax.f32 %v1186, 0.0
      %v1219 = vmax.f32 %v1187, 0.0
      %v1220 = vmax.f32 %v1188, 0.0
      %v1221 = vmax.f32 %v1189, 0.0
      %v1222 = vmax.f32 %v1190, 0.0
      %v1223 = vmax.f32 %v1191, 0.0
      %v1224 = vmax.f32 %v1192, 0.0
      %s1225 = scalar_lea.vmem %s1, 384
      %v1226 = vld [vmem:[%s1225] sm:$0xff]
      %v1227 = vld [vmem:[%s1225 + $0x8] sm:$0xff]
      %v1228 = vld [vmem:[%s1225 + $0x10] sm:$0xff]
      %v1229 = vld [vmem:[%s1225 + $0x18] sm:$0xff]
      %v1230 = vld [vmem:[%s1225 + $0x20] sm:$0xff]
      %v1231 = vld [vmem:[%s1225 + $0x28] sm:$0xff]
      %v1232 = vld [vmem:[%s1225 + $0x30] sm:$0xff]
      %v1233 = vld [vmem:[%s1225 + $0x38] sm:$0xff]
      %v1234 = vld [vmem:[%s1225 + $0x40] sm:$0xff]
      %v1235 = vld [vmem:[%s1225 + $0x48] sm:$0xff]
      %v1236 = vld [vmem:[%s1225 + $0x50] sm:$0xff]
      %v1237 = vld [vmem:[%s1225 + $0x58] sm:$0xff]
      %v1238 = vld [vmem:[%s1225 + $0x60] sm:$0xff]
      %v1239 = vld [vmem:[%s1225 + $0x68] sm:$0xff]
      %v1240 = vld [vmem:[%s1225 + $0x70] sm:$0xff]
      %v1241 = vld [vmem:[%s1225 + $0x78] sm:$0xff]
      %1242 = vmatprep.subr.mxu0 0.0
      %1243 = vmatpush1.msra.mxu0 %v1241
      %1244 = vmatprep.subr.mxu0 0.0
      %1245 = vmatpush1.msra.mxu0 %v1240
      %1246 = vmatprep.subr.mxu0 0.0
      %1247 = vmatpush1.msra.mxu0 %v1239
      %1248 = vmatprep.subr.mxu0 0.0
      %1249 = vmatpush1.msra.mxu0 %v1238
      %1250 = vmatprep.subr.mxu0 0.0
      %1251 = vmatpush1.msra.mxu0 %v1237
      %1252 = vmatprep.subr.mxu0 0.0
      %1253 = vmatpush1.msra.mxu0 %v1236
      %1254 = vmatprep.subr.mxu0 0.0
      %1255 = vmatpush1.msra.mxu0 %v1235
      %1256 = vmatprep.subr.mxu0 0.0
      %1257 = vmatpush1.msra.mxu0 %v1234
      %1258 = vmatprep.subr.mxu0 0.0
      %1259 = vmatpush1.msra.mxu0 %v1233
      %1260 = vmatprep.subr.mxu0 0.0
      %1261 = vmatpush1.msra.mxu0 %v1232
      %1262 = vmatprep.subr.mxu0 0.0
      %1263 = vmatpush1.msra.mxu0 %v1231
      %1264 = vmatprep.subr.mxu0 0.0
      %1265 = vmatpush1.msra.mxu0 %v1230
      %1266 = vmatprep.subr.mxu0 0.0
      %1267 = vmatpush1.msra.mxu0 %v1229
      %1268 = vmatprep.subr.mxu0 0.0
      %1269 = vmatpush1.msra.mxu0 %v1228
      %1270 = vmatprep.subr.mxu0 0.0
      %1271 = vmatpush1.msra.mxu0 %v1227
      %1272 = vmatprep.subr.mxu0 0.0
      %1273 = vmatpush1.msra.mxu0 %v1226
      %1274 = vmatprep.subr.mxu0 0.0
      %1275 = vmatpush2.msra.mxu0 0.0
      %1276 = vmatprep.subr.mxu0 0.0
      %1277 = vmatpush2.msra.mxu0 0.0
      %1278 = vmatprep.subr.mxu0 0.0
      %1279 = vmatpush2.msra.mxu0 0.0
      %1280 = vmatprep.subr.mxu0 0.0
      %1281 = vmatpush2.msra.mxu0 0.0
      %1282 = vmatprep.subr.mxu0 0.0
      %1283 = vmatpush2.msra.mxu0 0.0
      %1284 = vmatprep.subr.mxu0 0.0
      %1285 = vmatpush2.msra.mxu0 0.0
      %1286 = vmatprep.subr.mxu0 0.0
      %1287 = vmatpush2.msra.mxu0 0.0
      %1288 = vmatprep.subr.mxu0 0.0
      %1289 = vmatpush2.msra.mxu0 0.0
      %1290 = vmatprep.subr.mxu0 0.0
      %1291 = vmatpush2.msra.mxu0 0.0
      %1292 = vmatprep.subr.mxu0 0.0
      %1293 = vmatpush2.msra.mxu0 0.0
      %1294 = vmatprep.subr.mxu0 0.0
      %1295 = vmatpush2.msra.mxu0 0.0
      %1296 = vmatprep.subr.mxu0 0.0
      %1297 = vmatpush2.msra.mxu0 0.0
      %1298 = vmatprep.subr.mxu0 0.0
      %1299 = vmatpush2.msra.mxu0 0.0
      %1300 = vmatprep.subr.mxu0 0.0
      %1301 = vmatpush2.msra.mxu0 0.0
      %1302 = vmatprep.subr.mxu0 0.0
      %1303 = vmatpush2.msra.mxu0 0.0
      %1304 = vmatprep.subr.mxu0 0.0
      %1305 = vmatpush2.msra.mxu0 0.0
      %1306 = vmatprep.mubr.f32.mxu0 0.0
      %1307 = vmatmul.mubr.f32.gmra.mxu0 %v1193
      %v1308 = vpop.f32.mrf.mxu0
      %v1309 = vadd.f32 0.0, %v1308
      %v1310 = vpop.f32.mrf.mxu0
      %1311 = vmatprep.mubr.f32.mxu0 0.0
      %1312 = vmatmul.mubr.f32.gmra.mxu0 %v1194
      %v1313 = vpop.f32.mrf.mxu0
      %v1314 = vadd.f32 0.0, %v1313
      %v1315 = vpop.f32.mrf.mxu0
      %1316 = vmatprep.mubr.f32.mxu0 0.0
      %1317 = vmatmul.mubr.f32.gmra.mxu0 %v1195
      %v1318 = vpop.f32.mrf.mxu0
      %v1319 = vadd.f32 0.0, %v1318
      %v1320 = vpop.f32.mrf.mxu0
      %1321 = vmatprep.mubr.f32.mxu0 0.0
      %1322 = vmatmul.mubr.f32.gmra.mxu0 %v1196
      %v1323 = vpop.f32.mrf.mxu0
      %v1324 = vadd.f32 0.0, %v1323
      %v1325 = vpop.f32.mrf.mxu0
      %1326 = vmatprep.mubr.f32.mxu0 0.0
      %1327 = vmatmul.mubr.f32.gmra.mxu0 %v1197
      %v1328 = vpop.f32.mrf.mxu0
      %v1329 = vadd.f32 0.0, %v1328
      %v1330 = vpop.f32.mrf.mxu0
      %1331 = vmatprep.mubr.f32.mxu0 0.0
      %1332 = vmatmul.mubr.f32.gmra.mxu0 %v1198
      %v1333 = vpop.f32.mrf.mxu0
      %v1334 = vadd.f32 0.0, %v1333
      %v1335 = vpop.f32.mrf.mxu0
      %1336 = vmatprep.mubr.f32.mxu0 0.0
      %1337 = vmatmul.mubr.f32.gmra.mxu0 %v1199
      %v1338 = vpop.f32.mrf.mxu0
      %v1339 = vadd.f32 0.0, %v1338
      %v1340 = vpop.f32.mrf.mxu0
      %1341 = vmatprep.mubr.f32.mxu0 0.0
      %1342 = vmatmul.mubr.f32.gmra.mxu0 %v1200
      %v1343 = vpop.f32.mrf.mxu0
      %v1344 = vadd.f32 0.0, %v1343
      %v1345 = vpop.f32.mrf.mxu0
      %1346 = vmatprep.mubr.f32.mxu0 0.0
      %1347 = vmatmul.mubr.f32.gmra.mxu0 %v1201
      %v1348 = vpop.f32.mrf.mxu0
      %v1349 = vadd.f32 0.0, %v1348
      %v1350 = vpop.f32.mrf.mxu0
      %1351 = vmatprep.mubr.f32.mxu0 0.0
      %1352 = vmatmul.mubr.f32.gmra.mxu0 %v1202
      %v1353 = vpop.f32.mrf.mxu0
      %v1354 = vadd.f32 0.0, %v1353
      %v1355 = vpop.f32.mrf.mxu0
      %1356 = vmatprep.mubr.f32.mxu0 0.0
      %1357 = vmatmul.mubr.f32.gmra.mxu0 %v1203
      %v1358 = vpop.f32.mrf.mxu0
      %v1359 = vadd.f32 0.0, %v1358
      %v1360 = vpop.f32.mrf.mxu0
      %1361 = vmatprep.mubr.f32.mxu0 0.0
      %1362 = vmatmul.mubr.f32.gmra.mxu0 %v1204
      %v1363 = vpop.f32.mrf.mxu0
      %v1364 = vadd.f32 0.0, %v1363
      %v1365 = vpop.f32.mrf.mxu0
      %1366 = vmatprep.mubr.f32.mxu0 0.0
      %1367 = vmatmul.mubr.f32.gmra.mxu0 %v1205
      %v1368 = vpop.f32.mrf.mxu0
      %v1369 = vadd.f32 0.0, %v1368
      %v1370 = vpop.f32.mrf.mxu0
      %1371 = vmatprep.mubr.f32.mxu0 0.0
      %1372 = vmatmul.mubr.f32.gmra.mxu0 %v1206
      %v1373 = vpop.f32.mrf.mxu0
      %v1374 = vadd.f32 0.0, %v1373
      %v1375 = vpop.f32.mrf.mxu0
      %1376 = vmatprep.mubr.f32.mxu0 0.0
      %1377 = vmatmul.mubr.f32.gmra.mxu0 %v1207
      %v1378 = vpop.f32.mrf.mxu0
      %v1379 = vadd.f32 0.0, %v1378
      %v1380 = vpop.f32.mrf.mxu0
      %1381 = vmatprep.mubr.f32.mxu0 0.0
      %1382 = vmatmul.mubr.f32.gmra.mxu0 %v1208
      %v1383 = vpop.f32.mrf.mxu0
      %v1384 = vadd.f32 0.0, %v1383
      %v1385 = vpop.f32.mrf.mxu0
      %1386 = vmatprep.mubr.f32.mxu0 0.0
      %1387 = vmatmul.mubr.f32.gmra.mxu0 %v1209
      %v1388 = vpop.f32.mrf.mxu0
      %v1389 = vadd.f32 0.0, %v1388
      %v1390 = vpop.f32.mrf.mxu0
      %1391 = vmatprep.mubr.f32.mxu0 0.0
      %1392 = vmatmul.mubr.f32.gmra.mxu0 %v1210
      %v1393 = vpop.f32.mrf.mxu0
      %v1394 = vadd.f32 0.0, %v1393
      %v1395 = vpop.f32.mrf.mxu0
      %1396 = vmatprep.mubr.f32.mxu0 0.0
      %1397 = vmatmul.mubr.f32.gmra.mxu0 %v1211
      %v1398 = vpop.f32.mrf.mxu0
      %v1399 = vadd.f32 0.0, %v1398
      %v1400 = vpop.f32.mrf.mxu0
      %1401 = vmatprep.mubr.f32.mxu0 0.0
      %1402 = vmatmul.mubr.f32.gmra.mxu0 %v1212
      %v1403 = vpop.f32.mrf.mxu0
      %v1404 = vadd.f32 0.0, %v1403
      %v1405 = vpop.f32.mrf.mxu0
      %1406 = vmatprep.mubr.f32.mxu0 0.0
      %1407 = vmatmul.mubr.f32.gmra.mxu0 %v1213
      %v1408 = vpop.f32.mrf.mxu0
      %v1409 = vadd.f32 0.0, %v1408
      %v1410 = vpop.f32.mrf.mxu0
      %1411 = vmatprep.mubr.f32.mxu0 0.0
      %1412 = vmatmul.mubr.f32.gmra.mxu0 %v1214
      %v1413 = vpop.f32.mrf.mxu0
      %v1414 = vadd.f32 0.0, %v1413
      %v1415 = vpop.f32.mrf.mxu0
      %1416 = vmatprep.mubr.f32.mxu0 0.0
      %1417 = vmatmul.mubr.f32.gmra.mxu0 %v1215
      %v1418 = vpop.f32.mrf.mxu0
      %v1419 = vadd.f32 0.0, %v1418
      %v1420 = vpop.f32.mrf.mxu0
      %1421 = vmatprep.mubr.f32.mxu0 0.0
      %1422 = vmatmul.mubr.f32.gmra.mxu0 %v1216
      %v1423 = vpop.f32.mrf.mxu0
      %v1424 = vadd.f32 0.0, %v1423
      %v1425 = vpop.f32.mrf.mxu0
      %1426 = vmatprep.mubr.f32.mxu0 0.0
      %1427 = vmatmul.mubr.f32.gmra.mxu0 %v1217
      %v1428 = vpop.f32.mrf.mxu0
      %v1429 = vadd.f32 0.0, %v1428
      %v1430 = vpop.f32.mrf.mxu0
      %1431 = vmatprep.mubr.f32.mxu0 0.0
      %1432 = vmatmul.mubr.f32.gmra.mxu0 %v1218
      %v1433 = vpop.f32.mrf.mxu0
      %v1434 = vadd.f32 0.0, %v1433
      %v1435 = vpop.f32.mrf.mxu0
      %1436 = vmatprep.mubr.f32.mxu0 0.0
      %1437 = vmatmul.mubr.f32.gmra.mxu0 %v1219
      %v1438 = vpop.f32.mrf.mxu0
      %v1439 = vadd.f32 0.0, %v1438
      %v1440 = vpop.f32.mrf.mxu0
      %1441 = vmatprep.mubr.f32.mxu0 0.0
      %1442 = vmatmul.mubr.f32.gmra.mxu0 %v1220
      %v1443 = vpop.f32.mrf.mxu0
      %v1444 = vadd.f32 0.0, %v1443
      %v1445 = vpop.f32.mrf.mxu0
      %1446 = vmatprep.mubr.f32.mxu0 0.0
      %1447 = vmatmul.mubr.f32.gmra.mxu0 %v1221
      %v1448 = vpop.f32.mrf.mxu0
      %v1449 = vadd.f32 0.0, %v1448
      %v1450 = vpop.f32.mrf.mxu0
      %1451 = vmatprep.mubr.f32.mxu0 0.0
      %1452 = vmatmul.mubr.f32.gmra.mxu0 %v1222
      %v1453 = vpop.f32.mrf.mxu0
      %v1454 = vadd.f32 0.0, %v1453
      %v1455 = vpop.f32.mrf.mxu0
      %1456 = vmatprep.mubr.f32.mxu0 0.0
      %1457 = vmatmul.mubr.f32.gmra.mxu0 %v1223
      %v1458 = vpop.f32.mrf.mxu0
      %v1459 = vadd.f32 0.0, %v1458
      %v1460 = vpop.f32.mrf.mxu0
      %1461 = vmatprep.mubr.f32.mxu0 0.0
      %1462 = vmatmul.mubr.f32.gmra.mxu0 %v1224
      %v1463 = vpop.f32.mrf.mxu0
      %v1464 = vadd.f32 0.0, %v1463
      %v1465 = vpop.f32.mrf.mxu0
      %1466 = vdwg.mxu0
      %v1467 = vadd.f32 %v1128, %v1309
      %v1468 = vadd.f32 %v1129, %v1314
      %v1469 = vadd.f32 %v1130, %v1319
      %v1470 = vadd.f32 %v1131, %v1324
      %v1471 = vadd.f32 %v1132, %v1329
      %v1472 = vadd.f32 %v1133, %v1334
      %v1473 = vadd.f32 %v1134, %v1339
      %v1474 = vadd.f32 %v1135, %v1344
      %v1475 = vadd.f32 %v1136, %v1349
      %v1476 = vadd.f32 %v1137, %v1354
      %v1477 = vadd.f32 %v1138, %v1359
      %v1478 = vadd.f32 %v1139, %v1364
      %v1479 = vadd.f32 %v1140, %v1369
      %v1480 = vadd.f32 %v1141, %v1374
      %v1481 = vadd.f32 %v1142, %v1379
      %v1482 = vadd.f32 %v1143, %v1384
      %v1483 = vadd.f32 %v1144, %v1389
      %v1484 = vadd.f32 %v1145, %v1394
      %v1485 = vadd.f32 %v1146, %v1399
      %v1486 = vadd.f32 %v1147, %v1404
      %v1487 = vadd.f32 %v1148, %v1409
      %v1488 = vadd.f32 %v1149, %v1414
      %v1489 = vadd.f32 %v1150, %v1419
      %v1490 = vadd.f32 %v1151, %v1424
      %v1491 = vadd.f32 %v1152, %v1429
      %v1492 = vadd.f32 %v1153, %v1434
      %v1493 = vadd.f32 %v1154, %v1439
      %v1494 = vadd.f32 %v1155, %v1444
      %v1495 = vadd.f32 %v1156, %v1449
      %v1496 = vadd.f32 %v1157, %v1454
      %v1497 = vadd.f32 %v1158, %v1459
      %v1498 = vadd.f32 %v1159, %v1464
      %s1499 = scalar_lea.vmem %s199, 304
      %v1500 = vld [vmem:[%s1499] sm:$0xff]
      %v1501 = vld [vmem:[%s1499 + $0x8] sm:$0xff]
      %v1502 = vld [vmem:[%s1499 + $0x10] sm:$0xff]
      %v1503 = vld [vmem:[%s1499 + $0x18] sm:$0xff]
      %v1504 = vld [vmem:[%s1499 + $0x20] sm:$0xff]
      %v1505 = vld [vmem:[%s1499 + $0x28] sm:$0xff]
      %v1506 = vld [vmem:[%s1499 + $0x30] sm:$0xff]
      %v1507 = vld [vmem:[%s1499 + $0x38] sm:$0xff]
      %v1508 = vld [vmem:[%s1499 + $0x40] sm:$0xff]
      %v1509 = vld [vmem:[%s1499 + $0x48] sm:$0xff]
      %v1510 = vld [vmem:[%s1499 + $0x50] sm:$0xff]
      %v1511 = vld [vmem:[%s1499 + $0x58] sm:$0xff]
      %v1512 = vld [vmem:[%s1499 + $0x60] sm:$0xff]
      %v1513 = vld [vmem:[%s1499 + $0x68] sm:$0xff]
      %v1514 = vld [vmem:[%s1499 + $0x70] sm:$0xff]
      %v1515 = vld [vmem:[%s1499 + $0x78] sm:$0xff]
      %v1516 = vld [vmem:[%s1499 + $0x80] sm:$0xff]
      %v1517 = vld [vmem:[%s1499 + $0x88] sm:$0xff]
      %v1518 = vld [vmem:[%s1499 + $0x90] sm:$0xff]
      %v1519 = vld [vmem:[%s1499 + $0x98] sm:$0xff]
      %v1520 = vld [vmem:[%s1499 + $0xa0] sm:$0xff]
      %v1521 = vld [vmem:[%s1499 + $0xa8] sm:$0xff]
      %v1522 = vld [vmem:[%s1499 + $0xb0] sm:$0xff]
      %v1523 = vld [vmem:[%s1499 + $0xb8] sm:$0xff]
      %v1524 = vld [vmem:[%s1499 + $0xc0] sm:$0xff]
      %v1525 = vld [vmem:[%s1499 + $0xc8] sm:$0xff]
      %v1526 = vld [vmem:[%s1499 + $0xd0] sm:$0xff]
      %v1527 = vld [vmem:[%s1499 + $0xd8] sm:$0xff]
      %v1528 = vld [vmem:[%s1499 + $0xe0] sm:$0xff]
      %v1529 = vld [vmem:[%s1499 + $0xe8] sm:$0xff]
      %v1530 = vld [vmem:[%s1499 + $0xf0] sm:$0xff]
      %v1531 = vld [vmem:[%s1499 + $0xf8] sm:$0xff]
      %v1532 = vmax.f32 %v1500, 0.0
      %v1533 = vmax.f32 %v1501, 0.0
      %v1534 = vmax.f32 %v1502, 0.0
      %v1535 = vmax.f32 %v1503, 0.0
      %v1536 = vmax.f32 %v1504, 0.0
      %v1537 = vmax.f32 %v1505, 0.0
      %v1538 = vmax.f32 %v1506, 0.0
      %v1539 = vmax.f32 %v1507, 0.0
      %v1540 = vmax.f32 %v1508, 0.0
      %v1541 = vmax.f32 %v1509, 0.0
      %v1542 = vmax.f32 %v1510, 0.0
      %v1543 = vmax.f32 %v1511, 0.0
      %v1544 = vmax.f32 %v1512, 0.0
      %v1545 = vmax.f32 %v1513, 0.0
      %v1546 = vmax.f32 %v1514, 0.0
      %v1547 = vmax.f32 %v1515, 0.0
      %v1548 = vmax.f32 %v1516, 0.0
      %v1549 = vmax.f32 %v1517, 0.0
      %v1550 = vmax.f32 %v1518, 0.0
      %v1551 = vmax.f32 %v1519, 0.0
      %v1552 = vmax.f32 %v1520, 0.0
      %v1553 = vmax.f32 %v1521, 0.0
      %v1554 = vmax.f32 %v1522, 0.0
      %v1555 = vmax.f32 %v1523, 0.0
      %v1556 = vmax.f32 %v1524, 0.0
      %v1557 = vmax.f32 %v1525, 0.0
      %v1558 = vmax.f32 %v1526, 0.0
      %v1559 = vmax.f32 %v1527, 0.0
      %v1560 = vmax.f32 %v1528, 0.0
      %v1561 = vmax.f32 %v1529, 0.0
      %v1562 = vmax.f32 %v1530, 0.0
      %v1563 = vmax.f32 %v1531, 0.0
      %s1564 = scalar_lea.vmem %s1, 512
      %v1565 = vld [vmem:[%s1564] sm:$0xff]
      %v1566 = vld [vmem:[%s1564 + $0x8] sm:$0xff]
      %v1567 = vld [vmem:[%s1564 + $0x10] sm:$0xff]
      %v1568 = vld [vmem:[%s1564 + $0x18] sm:$0xff]
      %v1569 = vld [vmem:[%s1564 + $0x20] sm:$0xff]
      %v1570 = vld [vmem:[%s1564 + $0x28] sm:$0xff]
      %v1571 = vld [vmem:[%s1564 + $0x30] sm:$0xff]
      %v1572 = vld [vmem:[%s1564 + $0x38] sm:$0xff]
      %v1573 = vld [vmem:[%s1564 + $0x40] sm:$0xff]
      %v1574 = vld [vmem:[%s1564 + $0x48] sm:$0xff]
      %v1575 = vld [vmem:[%s1564 + $0x50] sm:$0xff]
      %v1576 = vld [vmem:[%s1564 + $0x58] sm:$0xff]
      %v1577 = vld [vmem:[%s1564 + $0x60] sm:$0xff]
      %v1578 = vld [vmem:[%s1564 + $0x68] sm:$0xff]
      %v1579 = vld [vmem:[%s1564 + $0x70] sm:$0xff]
      %v1580 = vld [vmem:[%s1564 + $0x78] sm:$0xff]
      %1581 = vmatprep.subr.mxu0 0.0
      %1582 = vmatpush1.msra.mxu0 %v1580
      %1583 = vmatprep.subr.mxu0 0.0
      %1584 = vmatpush1.msra.mxu0 %v1579
      %1585 = vmatprep.subr.mxu0 0.0
      %1586 = vmatpush1.msra.mxu0 %v1578
      %1587 = vmatprep.subr.mxu0 0.0
      %1588 = vmatpush1.msra.mxu0 %v1577
      %1589 = vmatprep.subr.mxu0 0.0
      %1590 = vmatpush1.msra.mxu0 %v1576
      %1591 = vmatprep.subr.mxu0 0.0
      %1592 = vmatpush1.msra.mxu0 %v1575
      %1593 = vmatprep.subr.mxu0 0.0
      %1594 = vmatpush1.msra.mxu0 %v1574
      %1595 = vmatprep.subr.mxu0 0.0
      %1596 = vmatpush1.msra.mxu0 %v1573
      %1597 = vmatprep.subr.mxu0 0.0
      %1598 = vmatpush1.msra.mxu0 %v1572
      %1599 = vmatprep.subr.mxu0 0.0
      %1600 = vmatpush1.msra.mxu0 %v1571
      %1601 = vmatprep.subr.mxu0 0.0
      %1602 = vmatpush1.msra.mxu0 %v1570
      %1603 = vmatprep.subr.mxu0 0.0
      %1604 = vmatpush1.msra.mxu0 %v1569
      %1605 = vmatprep.subr.mxu0 0.0
      %1606 = vmatpush1.msra.mxu0 %v1568
      %1607 = vmatprep.subr.mxu0 0.0
      %1608 = vmatpush1.msra.mxu0 %v1567
      %1609 = vmatprep.subr.mxu0 0.0
      %1610 = vmatpush1.msra.mxu0 %v1566
      %1611 = vmatprep.subr.mxu0 0.0
      %1612 = vmatpush1.msra.mxu0 %v1565
      %1613 = vmatprep.subr.mxu0 0.0
      %1614 = vmatpush2.msra.mxu0 0.0
      %1615 = vmatprep.subr.mxu0 0.0
      %1616 = vmatpush2.msra.mxu0 0.0
      %1617 = vmatprep.subr.mxu0 0.0
      %1618 = vmatpush2.msra.mxu0 0.0
      %1619 = vmatprep.subr.mxu0 0.0
      %1620 = vmatpush2.msra.mxu0 0.0
      %1621 = vmatprep.subr.mxu0 0.0
      %1622 = vmatpush2.msra.mxu0 0.0
      %1623 = vmatprep.subr.mxu0 0.0
      %1624 = vmatpush2.msra.mxu0 0.0
      %1625 = vmatprep.subr.mxu0 0.0
      %1626 = vmatpush2.msra.mxu0 0.0
      %1627 = vmatprep.subr.mxu0 0.0
      %1628 = vmatpush2.msra.mxu0 0.0
      %1629 = vmatprep.subr.mxu0 0.0
      %1630 = vmatpush2.msra.mxu0 0.0
      %1631 = vmatprep.subr.mxu0 0.0
      %1632 = vmatpush2.msra.mxu0 0.0
      %1633 = vmatprep.subr.mxu0 0.0
      %1634 = vmatpush2.msra.mxu0 0.0
      %1635 = vmatprep.subr.mxu0 0.0
      %1636 = vmatpush2.msra.mxu0 0.0
      %1637 = vmatprep.subr.mxu0 0.0
      %1638 = vmatpush2.msra.mxu0 0.0
      %1639 = vmatprep.subr.mxu0 0.0
      %1640 = vmatpush2.msra.mxu0 0.0
      %1641 = vmatprep.subr.mxu0 0.0
      %1642 = vmatpush2.msra.mxu0 0.0
      %1643 = vmatprep.subr.mxu0 0.0
      %1644 = vmatpush2.msra.mxu0 0.0
      %1645 = vmatprep.mubr.f32.mxu0 0.0
      %1646 = vmatmul.mubr.f32.gmra.mxu0 %v1532
      %v1647 = vpop.f32.mrf.mxu0
      %v1648 = vadd.f32 0.0, %v1647
      %v1649 = vpop.f32.mrf.mxu0
      %1650 = vmatprep.mubr.f32.mxu0 0.0
      %1651 = vmatmul.mubr.f32.gmra.mxu0 %v1533
      %v1652 = vpop.f32.mrf.mxu0
      %v1653 = vadd.f32 0.0, %v1652
      %v1654 = vpop.f32.mrf.mxu0
      %1655 = vmatprep.mubr.f32.mxu0 0.0
      %1656 = vmatmul.mubr.f32.gmra.mxu0 %v1534
      %v1657 = vpop.f32.mrf.mxu0
      %v1658 = vadd.f32 0.0, %v1657
      %v1659 = vpop.f32.mrf.mxu0
      %1660 = vmatprep.mubr.f32.mxu0 0.0
      %1661 = vmatmul.mubr.f32.gmra.mxu0 %v1535
      %v1662 = vpop.f32.mrf.mxu0
      %v1663 = vadd.f32 0.0, %v1662
      %v1664 = vpop.f32.mrf.mxu0
      %1665 = vmatprep.mubr.f32.mxu0 0.0
      %1666 = vmatmul.mubr.f32.gmra.mxu0 %v1536
      %v1667 = vpop.f32.mrf.mxu0
      %v1668 = vadd.f32 0.0, %v1667
      %v1669 = vpop.f32.mrf.mxu0
      %1670 = vmatprep.mubr.f32.mxu0 0.0
      %1671 = vmatmul.mubr.f32.gmra.mxu0 %v1537
      %v1672 = vpop.f32.mrf.mxu0
      %v1673 = vadd.f32 0.0, %v1672
      %v1674 = vpop.f32.mrf.mxu0
      %1675 = vmatprep.mubr.f32.mxu0 0.0
      %1676 = vmatmul.mubr.f32.gmra.mxu0 %v1538
      %v1677 = vpop.f32.mrf.mxu0
      %v1678 = vadd.f32 0.0, %v1677
      %v1679 = vpop.f32.mrf.mxu0
      %1680 = vmatprep.mubr.f32.mxu0 0.0
      %1681 = vmatmul.mubr.f32.gmra.mxu0 %v1539
      %v1682 = vpop.f32.mrf.mxu0
      %v1683 = vadd.f32 0.0, %v1682
      %v1684 = vpop.f32.mrf.mxu0
      %1685 = vmatprep.mubr.f32.mxu0 0.0
      %1686 = vmatmul.mubr.f32.gmra.mxu0 %v1540
      %v1687 = vpop.f32.mrf.mxu0
      %v1688 = vadd.f32 0.0, %v1687
      %v1689 = vpop.f32.mrf.mxu0
      %1690 = vmatprep.mubr.f32.mxu0 0.0
      %1691 = vmatmul.mubr.f32.gmra.mxu0 %v1541
      %v1692 = vpop.f32.mrf.mxu0
      %v1693 = vadd.f32 0.0, %v1692
      %v1694 = vpop.f32.mrf.mxu0
      %1695 = vmatprep.mubr.f32.mxu0 0.0
      %1696 = vmatmul.mubr.f32.gmra.mxu0 %v1542
      %v1697 = vpop.f32.mrf.mxu0
      %v1698 = vadd.f32 0.0, %v1697
      %v1699 = vpop.f32.mrf.mxu0
      %1700 = vmatprep.mubr.f32.mxu0 0.0
      %1701 = vmatmul.mubr.f32.gmra.mxu0 %v1543
      %v1702 = vpop.f32.mrf.mxu0
      %v1703 = vadd.f32 0.0, %v1702
      %v1704 = vpop.f32.mrf.mxu0
      %1705 = vmatprep.mubr.f32.mxu0 0.0
      %1706 = vmatmul.mubr.f32.gmra.mxu0 %v1544
      %v1707 = vpop.f32.mrf.mxu0
      %v1708 = vadd.f32 0.0, %v1707
      %v1709 = vpop.f32.mrf.mxu0
      %1710 = vmatprep.mubr.f32.mxu0 0.0
      %1711 = vmatmul.mubr.f32.gmra.mxu0 %v1545
      %v1712 = vpop.f32.mrf.mxu0
      %v1713 = vadd.f32 0.0, %v1712
      %v1714 = vpop.f32.mrf.mxu0
      %1715 = vmatprep.mubr.f32.mxu0 0.0
      %1716 = vmatmul.mubr.f32.gmra.mxu0 %v1546
      %v1717 = vpop.f32.mrf.mxu0
      %v1718 = vadd.f32 0.0, %v1717
      %v1719 = vpop.f32.mrf.mxu0
      %1720 = vmatprep.mubr.f32.mxu0 0.0
      %1721 = vmatmul.mubr.f32.gmra.mxu0 %v1547
      %v1722 = vpop.f32.mrf.mxu0
      %v1723 = vadd.f32 0.0, %v1722
      %v1724 = vpop.f32.mrf.mxu0
      %1725 = vmatprep.mubr.f32.mxu0 0.0
      %1726 = vmatmul.mubr.f32.gmra.mxu0 %v1548
      %v1727 = vpop.f32.mrf.mxu0
      %v1728 = vadd.f32 0.0, %v1727
      %v1729 = vpop.f32.mrf.mxu0
      %1730 = vmatprep.mubr.f32.mxu0 0.0
      %1731 = vmatmul.mubr.f32.gmra.mxu0 %v1549
      %v1732 = vpop.f32.mrf.mxu0
      %v1733 = vadd.f32 0.0, %v1732
      %v1734 = vpop.f32.mrf.mxu0
      %1735 = vmatprep.mubr.f32.mxu0 0.0
      %1736 = vmatmul.mubr.f32.gmra.mxu0 %v1550
      %v1737 = vpop.f32.mrf.mxu0
      %v1738 = vadd.f32 0.0, %v1737
      %v1739 = vpop.f32.mrf.mxu0
      %1740 = vmatprep.mubr.f32.mxu0 0.0
      %1741 = vmatmul.mubr.f32.gmra.mxu0 %v1551
      %v1742 = vpop.f32.mrf.mxu0
      %v1743 = vadd.f32 0.0, %v1742
      %v1744 = vpop.f32.mrf.mxu0
      %1745 = vmatprep.mubr.f32.mxu0 0.0
      %1746 = vmatmul.mubr.f32.gmra.mxu0 %v1552
      %v1747 = vpop.f32.mrf.mxu0
      %v1748 = vadd.f32 0.0, %v1747
      %v1749 = vpop.f32.mrf.mxu0
      %1750 = vmatprep.mubr.f32.mxu0 0.0
      %1751 = vmatmul.mubr.f32.gmra.mxu0 %v1553
      %v1752 = vpop.f32.mrf.mxu0
      %v1753 = vadd.f32 0.0, %v1752
      %v1754 = vpop.f32.mrf.mxu0
      %1755 = vmatprep.mubr.f32.mxu0 0.0
      %1756 = vmatmul.mubr.f32.gmra.mxu0 %v1554
      %v1757 = vpop.f32.mrf.mxu0
      %v1758 = vadd.f32 0.0, %v1757
      %v1759 = vpop.f32.mrf.mxu0
      %1760 = vmatprep.mubr.f32.mxu0 0.0
      %1761 = vmatmul.mubr.f32.gmra.mxu0 %v1555
      %v1762 = vpop.f32.mrf.mxu0
      %v1763 = vadd.f32 0.0, %v1762
      %v1764 = vpop.f32.mrf.mxu0
      %1765 = vmatprep.mubr.f32.mxu0 0.0
      %1766 = vmatmul.mubr.f32.gmra.mxu0 %v1556
      %v1767 = vpop.f32.mrf.mxu0
      %v1768 = vadd.f32 0.0, %v1767
      %v1769 = vpop.f32.mrf.mxu0
      %1770 = vmatprep.mubr.f32.mxu0 0.0
      %1771 = vmatmul.mubr.f32.gmra.mxu0 %v1557
      %v1772 = vpop.f32.mrf.mxu0
      %v1773 = vadd.f32 0.0, %v1772
      %v1774 = vpop.f32.mrf.mxu0
      %1775 = vmatprep.mubr.f32.mxu0 0.0
      %1776 = vmatmul.mubr.f32.gmra.mxu0 %v1558
      %v1777 = vpop.f32.mrf.mxu0
      %v1778 = vadd.f32 0.0, %v1777
      %v1779 = vpop.f32.mrf.mxu0
      %1780 = vmatprep.mubr.f32.mxu0 0.0
      %1781 = vmatmul.mubr.f32.gmra.mxu0 %v1559
      %v1782 = vpop.f32.mrf.mxu0
      %v1783 = vadd.f32 0.0, %v1782
      %v1784 = vpop.f32.mrf.mxu0
      %1785 = vmatprep.mubr.f32.mxu0 0.0
      %1786 = vmatmul.mubr.f32.gmra.mxu0 %v1560
      %v1787 = vpop.f32.mrf.mxu0
      %v1788 = vadd.f32 0.0, %v1787
      %v1789 = vpop.f32.mrf.mxu0
      %1790 = vmatprep.mubr.f32.mxu0 0.0
      %1791 = vmatmul.mubr.f32.gmra.mxu0 %v1561
      %v1792 = vpop.f32.mrf.mxu0
      %v1793 = vadd.f32 0.0, %v1792
      %v1794 = vpop.f32.mrf.mxu0
      %1795 = vmatprep.mubr.f32.mxu0 0.0
      %1796 = vmatmul.mubr.f32.gmra.mxu0 %v1562
      %v1797 = vpop.f32.mrf.mxu0
      %v1798 = vadd.f32 0.0, %v1797
      %v1799 = vpop.f32.mrf.mxu0
      %1800 = vmatprep.mubr.f32.mxu0 0.0
      %1801 = vmatmul.mubr.f32.gmra.mxu0 %v1563
      %v1802 = vpop.f32.mrf.mxu0
      %v1803 = vadd.f32 0.0, %v1802
      %v1804 = vpop.f32.mrf.mxu0
      %1805 = vdwg.mxu0
      %v1806 = vadd.f32 %v1467, %v1648
      %v1807 = vadd.f32 %v1468, %v1653
      %v1808 = vadd.f32 %v1469, %v1658
      %v1809 = vadd.f32 %v1470, %v1663
      %v1810 = vadd.f32 %v1471, %v1668
      %v1811 = vadd.f32 %v1472, %v1673
      %v1812 = vadd.f32 %v1473, %v1678
      %v1813 = vadd.f32 %v1474, %v1683
      %v1814 = vadd.f32 %v1475, %v1688
      %v1815 = vadd.f32 %v1476, %v1693
      %v1816 = vadd.f32 %v1477, %v1698
      %v1817 = vadd.f32 %v1478, %v1703
      %v1818 = vadd.f32 %v1479, %v1708
      %v1819 = vadd.f32 %v1480, %v1713
      %v1820 = vadd.f32 %v1481, %v1718
      %v1821 = vadd.f32 %v1482, %v1723
      %v1822 = vadd.f32 %v1483, %v1728
      %v1823 = vadd.f32 %v1484, %v1733
      %v1824 = vadd.f32 %v1485, %v1738
      %v1825 = vadd.f32 %v1486, %v1743
      %v1826 = vadd.f32 %v1487, %v1748
      %v1827 = vadd.f32 %v1488, %v1753
      %v1828 = vadd.f32 %v1489, %v1758
      %v1829 = vadd.f32 %v1490, %v1763
      %v1830 = vadd.f32 %v1491, %v1768
      %v1831 = vadd.f32 %v1492, %v1773
      %v1832 = vadd.f32 %v1493, %v1778
      %v1833 = vadd.f32 %v1494, %v1783
      %v1834 = vadd.f32 %v1495, %v1788
      %v1835 = vadd.f32 %v1496, %v1793
      %v1836 = vadd.f32 %v1497, %v1798
      %v1837 = vadd.f32 %v1498, %v1803
      %s1838 = scalar_lea.vmem %s199, 592
      %v1839 = vld [vmem:[%s1838] sm:$0xff]
      %v1840 = vld [vmem:[%s1838 + $0x8] sm:$0xff]
      %v1841 = vld [vmem:[%s1838 + $0x10] sm:$0xff]
      %v1842 = vld [vmem:[%s1838 + $0x18] sm:$0xff]
      %v1843 = vld [vmem:[%s1838 + $0x20] sm:$0xff]
      %v1844 = vld [vmem:[%s1838 + $0x28] sm:$0xff]
      %v1845 = vld [vmem:[%s1838 + $0x30] sm:$0xff]
      %v1846 = vld [vmem:[%s1838 + $0x38] sm:$0xff]
      %v1847 = vld [vmem:[%s1838 + $0x40] sm:$0xff]
      %v1848 = vld [vmem:[%s1838 + $0x48] sm:$0xff]
      %v1849 = vld [vmem:[%s1838 + $0x50] sm:$0xff]
      %v1850 = vld [vmem:[%s1838 + $0x58] sm:$0xff]
      %v1851 = vld [vmem:[%s1838 + $0x60] sm:$0xff]
      %v1852 = vld [vmem:[%s1838 + $0x68] sm:$0xff]
      %v1853 = vld [vmem:[%s1838 + $0x70] sm:$0xff]
      %v1854 = vld [vmem:[%s1838 + $0x78] sm:$0xff]
      %v1855 = vld [vmem:[%s1838 + $0x80] sm:$0xff]
      %v1856 = vld [vmem:[%s1838 + $0x88] sm:$0xff]
      %v1857 = vld [vmem:[%s1838 + $0x90] sm:$0xff]
      %v1858 = vld [vmem:[%s1838 + $0x98] sm:$0xff]
      %v1859 = vld [vmem:[%s1838 + $0xa0] sm:$0xff]
      %v1860 = vld [vmem:[%s1838 + $0xa8] sm:$0xff]
      %v1861 = vld [vmem:[%s1838 + $0xb0] sm:$0xff]
      %v1862 = vld [vmem:[%s1838 + $0xb8] sm:$0xff]
      %v1863 = vld [vmem:[%s1838 + $0xc0] sm:$0xff]
      %v1864 = vld [vmem:[%s1838 + $0xc8] sm:$0xff]
      %v1865 = vld [vmem:[%s1838 + $0xd0] sm:$0xff]
      %v1866 = vld [vmem:[%s1838 + $0xd8] sm:$0xff]
      %v1867 = vld [vmem:[%s1838 + $0xe0] sm:$0xff]
      %v1868 = vld [vmem:[%s1838 + $0xe8] sm:$0xff]
      %v1869 = vld [vmem:[%s1838 + $0xf0] sm:$0xff]
      %v1870 = vld [vmem:[%s1838 + $0xf8] sm:$0xff]
      %v1871 = vmax.f32 %v1839, 0.0
      %v1872 = vmax.f32 %v1840, 0.0
      %v1873 = vmax.f32 %v1841, 0.0
      %v1874 = vmax.f32 %v1842, 0.0
      %v1875 = vmax.f32 %v1843, 0.0
      %v1876 = vmax.f32 %v1844, 0.0
      %v1877 = vmax.f32 %v1845, 0.0
      %v1878 = vmax.f32 %v1846, 0.0
      %v1879 = vmax.f32 %v1847, 0.0
      %v1880 = vmax.f32 %v1848, 0.0
      %v1881 = vmax.f32 %v1849, 0.0
      %v1882 = vmax.f32 %v1850, 0.0
      %v1883 = vmax.f32 %v1851, 0.0
      %v1884 = vmax.f32 %v1852, 0.0
      %v1885 = vmax.f32 %v1853, 0.0
      %v1886 = vmax.f32 %v1854, 0.0
      %v1887 = vmax.f32 %v1855, 0.0
      %v1888 = vmax.f32 %v1856, 0.0
      %v1889 = vmax.f32 %v1857, 0.0
      %v1890 = vmax.f32 %v1858, 0.0
      %v1891 = vmax.f32 %v1859, 0.0
      %v1892 = vmax.f32 %v1860, 0.0
      %v1893 = vmax.f32 %v1861, 0.0
      %v1894 = vmax.f32 %v1862, 0.0
      %v1895 = vmax.f32 %v1863, 0.0
      %v1896 = vmax.f32 %v1864, 0.0
      %v1897 = vmax.f32 %v1865, 0.0
      %v1898 = vmax.f32 %v1866, 0.0
      %v1899 = vmax.f32 %v1867, 0.0
      %v1900 = vmax.f32 %v1868, 0.0
      %v1901 = vmax.f32 %v1869, 0.0
      %v1902 = vmax.f32 %v1870, 0.0
      %s1903 = scalar_lea.vmem %s1, 640
      %v1904 = vld [vmem:[%s1903] sm:$0xff]
      %v1905 = vld [vmem:[%s1903 + $0x8] sm:$0xff]
      %v1906 = vld [vmem:[%s1903 + $0x10] sm:$0xff]
      %v1907 = vld [vmem:[%s1903 + $0x18] sm:$0xff]
      %v1908 = vld [vmem:[%s1903 + $0x20] sm:$0xff]
      %v1909 = vld [vmem:[%s1903 + $0x28] sm:$0xff]
      %v1910 = vld [vmem:[%s1903 + $0x30] sm:$0xff]
      %v1911 = vld [vmem:[%s1903 + $0x38] sm:$0xff]
      %v1912 = vld [vmem:[%s1903 + $0x40] sm:$0xff]
      %v1913 = vld [vmem:[%s1903 + $0x48] sm:$0xff]
      %v1914 = vld [vmem:[%s1903 + $0x50] sm:$0xff]
      %v1915 = vld [vmem:[%s1903 + $0x58] sm:$0xff]
      %v1916 = vld [vmem:[%s1903 + $0x60] sm:$0xff]
      %v1917 = vld [vmem:[%s1903 + $0x68] sm:$0xff]
      %v1918 = vld [vmem:[%s1903 + $0x70] sm:$0xff]
      %v1919 = vld [vmem:[%s1903 + $0x78] sm:$0xff]
      %1920 = vmatprep.subr.mxu0 0.0
      %1921 = vmatpush1.msra.mxu0 %v1919
      %1922 = vmatprep.subr.mxu0 0.0
      %1923 = vmatpush1.msra.mxu0 %v1918
      %1924 = vmatprep.subr.mxu0 0.0
      %1925 = vmatpush1.msra.mxu0 %v1917
      %1926 = vmatprep.subr.mxu0 0.0
      %1927 = vmatpush1.msra.mxu0 %v1916
      %1928 = vmatprep.subr.mxu0 0.0
      %1929 = vmatpush1.msra.mxu0 %v1915
      %1930 = vmatprep.subr.mxu0 0.0
      %1931 = vmatpush1.msra.mxu0 %v1914
      %1932 = vmatprep.subr.mxu0 0.0
      %1933 = vmatpush1.msra.mxu0 %v1913
      %1934 = vmatprep.subr.mxu0 0.0
      %1935 = vmatpush1.msra.mxu0 %v1912
      %1936 = vmatprep.subr.mxu0 0.0
      %1937 = vmatpush1.msra.mxu0 %v1911
      %1938 = vmatprep.subr.mxu0 0.0
      %1939 = vmatpush1.msra.mxu0 %v1910
      %1940 = vmatprep.subr.mxu0 0.0
      %1941 = vmatpush1.msra.mxu0 %v1909
      %1942 = vmatprep.subr.mxu0 0.0
      %1943 = vmatpush1.msra.mxu0 %v1908
      %1944 = vmatprep.subr.mxu0 0.0
      %1945 = vmatpush1.msra.mxu0 %v1907
      %1946 = vmatprep.subr.mxu0 0.0
      %1947 = vmatpush1.msra.mxu0 %v1906
      %1948 = vmatprep.subr.mxu0 0.0
      %1949 = vmatpush1.msra.mxu0 %v1905
      %1950 = vmatprep.subr.mxu0 0.0
      %1951 = vmatpush1.msra.mxu0 %v1904
      %1952 = vmatprep.subr.mxu0 0.0
      %1953 = vmatpush2.msra.mxu0 0.0
      %1954 = vmatprep.subr.mxu0 0.0
      %1955 = vmatpush2.msra.mxu0 0.0
      %1956 = vmatprep.subr.mxu0 0.0
      %1957 = vmatpush2.msra.mxu0 0.0
      %1958 = vmatprep.subr.mxu0 0.0
      %1959 = vmatpush2.msra.mxu0 0.0
      %1960 = vmatprep.subr.mxu0 0.0
      %1961 = vmatpush2.msra.mxu0 0.0
      %1962 = vmatprep.subr.mxu0 0.0
      %1963 = vmatpush2.msra.mxu0 0.0
      %1964 = vmatprep.subr.mxu0 0.0
      %1965 = vmatpush2.msra.mxu0 0.0
      %1966 = vmatprep.subr.mxu0 0.0
      %1967 = vmatpush2.msra.mxu0 0.0
      %1968 = vmatprep.subr.mxu0 0.0
      %1969 = vmatpush2.msra.mxu0 0.0
      %1970 = vmatprep.subr.mxu0 0.0
      %1971 = vmatpush2.msra.mxu0 0.0
      %1972 = vmatprep.subr.mxu0 0.0
      %1973 = vmatpush2.msra.mxu0 0.0
      %1974 = vmatprep.subr.mxu0 0.0
      %1975 = vmatpush2.msra.mxu0 0.0
      %1976 = vmatprep.subr.mxu0 0.0
      %1977 = vmatpush2.msra.mxu0 0.0
      %1978 = vmatprep.subr.mxu0 0.0
      %1979 = vmatpush2.msra.mxu0 0.0
      %1980 = vmatprep.subr.mxu0 0.0
      %1981 = vmatpush2.msra.mxu0 0.0
      %1982 = vmatprep.subr.mxu0 0.0
      %1983 = vmatpush2.msra.mxu0 0.0
      %1984 = vmatprep.mubr.f32.mxu0 0.0
      %1985 = vmatmul.mubr.f32.gmra.mxu0 %v1871
      %v1986 = vpop.f32.mrf.mxu0
      %v1987 = vadd.f32 0.0, %v1986
      %v1988 = vpop.f32.mrf.mxu0
      %1989 = vmatprep.mubr.f32.mxu0 0.0
      %1990 = vmatmul.mubr.f32.gmra.mxu0 %v1872
      %v1991 = vpop.f32.mrf.mxu0
      %v1992 = vadd.f32 0.0, %v1991
      %v1993 = vpop.f32.mrf.mxu0
      %1994 = vmatprep.mubr.f32.mxu0 0.0
      %1995 = vmatmul.mubr.f32.gmra.mxu0 %v1873
      %v1996 = vpop.f32.mrf.mxu0
      %v1997 = vadd.f32 0.0, %v1996
      %v1998 = vpop.f32.mrf.mxu0
      %1999 = vmatprep.mubr.f32.mxu0 0.0
      %2000 = vmatmul.mubr.f32.gmra.mxu0 %v1874
      %v2001 = vpop.f32.mrf.mxu0
      %v2002 = vadd.f32 0.0, %v2001
      %v2003 = vpop.f32.mrf.mxu0
      %2004 = vmatprep.mubr.f32.mxu0 0.0
      %2005 = vmatmul.mubr.f32.gmra.mxu0 %v1875
      %v2006 = vpop.f32.mrf.mxu0
      %v2007 = vadd.f32 0.0, %v2006
      %v2008 = vpop.f32.mrf.mxu0
      %2009 = vmatprep.mubr.f32.mxu0 0.0
      %2010 = vmatmul.mubr.f32.gmra.mxu0 %v1876
      %v2011 = vpop.f32.mrf.mxu0
      %v2012 = vadd.f32 0.0, %v2011
      %v2013 = vpop.f32.mrf.mxu0
      %2014 = vmatprep.mubr.f32.mxu0 0.0
      %2015 = vmatmul.mubr.f32.gmra.mxu0 %v1877
      %v2016 = vpop.f32.mrf.mxu0
      %v2017 = vadd.f32 0.0, %v2016
      %v2018 = vpop.f32.mrf.mxu0
      %2019 = vmatprep.mubr.f32.mxu0 0.0
      %2020 = vmatmul.mubr.f32.gmra.mxu0 %v1878
      %v2021 = vpop.f32.mrf.mxu0
      %v2022 = vadd.f32 0.0, %v2021
      %v2023 = vpop.f32.mrf.mxu0
      %2024 = vmatprep.mubr.f32.mxu0 0.0
      %2025 = vmatmul.mubr.f32.gmra.mxu0 %v1879
      %v2026 = vpop.f32.mrf.mxu0
      %v2027 = vadd.f32 0.0, %v2026
      %v2028 = vpop.f32.mrf.mxu0
      %2029 = vmatprep.mubr.f32.mxu0 0.0
      %2030 = vmatmul.mubr.f32.gmra.mxu0 %v1880
      %v2031 = vpop.f32.mrf.mxu0
      %v2032 = vadd.f32 0.0, %v2031
      %v2033 = vpop.f32.mrf.mxu0
      %2034 = vmatprep.mubr.f32.mxu0 0.0
      %2035 = vmatmul.mubr.f32.gmra.mxu0 %v1881
      %v2036 = vpop.f32.mrf.mxu0
      %v2037 = vadd.f32 0.0, %v2036
      %v2038 = vpop.f32.mrf.mxu0
      %2039 = vmatprep.mubr.f32.mxu0 0.0
      %2040 = vmatmul.mubr.f32.gmra.mxu0 %v1882
      %v2041 = vpop.f32.mrf.mxu0
      %v2042 = vadd.f32 0.0, %v2041
      %v2043 = vpop.f32.mrf.mxu0
      %2044 = vmatprep.mubr.f32.mxu0 0.0
      %2045 = vmatmul.mubr.f32.gmra.mxu0 %v1883
      %v2046 = vpop.f32.mrf.mxu0
      %v2047 = vadd.f32 0.0, %v2046
      %v2048 = vpop.f32.mrf.mxu0
      %2049 = vmatprep.mubr.f32.mxu0 0.0
      %2050 = vmatmul.mubr.f32.gmra.mxu0 %v1884
      %v2051 = vpop.f32.mrf.mxu0
      %v2052 = vadd.f32 0.0, %v2051
      %v2053 = vpop.f32.mrf.mxu0
      %2054 = vmatprep.mubr.f32.mxu0 0.0
      %2055 = vmatmul.mubr.f32.gmra.mxu0 %v1885
      %v2056 = vpop.f32.mrf.mxu0
      %v2057 = vadd.f32 0.0, %v2056
      %v2058 = vpop.f32.mrf.mxu0
      %2059 = vmatprep.mubr.f32.mxu0 0.0
      %2060 = vmatmul.mubr.f32.gmra.mxu0 %v1886
      %v2061 = vpop.f32.mrf.mxu0
      %v2062 = vadd.f32 0.0, %v2061
      %v2063 = vpop.f32.mrf.mxu0
      %2064 = vmatprep.mubr.f32.mxu0 0.0
      %2065 = vmatmul.mubr.f32.gmra.mxu0 %v1887
      %v2066 = vpop.f32.mrf.mxu0
      %v2067 = vadd.f32 0.0, %v2066
      %v2068 = vpop.f32.mrf.mxu0
      %2069 = vmatprep.mubr.f32.mxu0 0.0
      %2070 = vmatmul.mubr.f32.gmra.mxu0 %v1888
      %v2071 = vpop.f32.mrf.mxu0
      %v2072 = vadd.f32 0.0, %v2071
      %v2073 = vpop.f32.mrf.mxu0
      %2074 = vmatprep.mubr.f32.mxu0 0.0
      %2075 = vmatmul.mubr.f32.gmra.mxu0 %v1889
      %v2076 = vpop.f32.mrf.mxu0
      %v2077 = vadd.f32 0.0, %v2076
      %v2078 = vpop.f32.mrf.mxu0
      %2079 = vmatprep.mubr.f32.mxu0 0.0
      %2080 = vmatmul.mubr.f32.gmra.mxu0 %v1890
      %v2081 = vpop.f32.mrf.mxu0
      %v2082 = vadd.f32 0.0, %v2081
      %v2083 = vpop.f32.mrf.mxu0
      %2084 = vmatprep.mubr.f32.mxu0 0.0
      %2085 = vmatmul.mubr.f32.gmra.mxu0 %v1891
      %v2086 = vpop.f32.mrf.mxu0
      %v2087 = vadd.f32 0.0, %v2086
      %v2088 = vpop.f32.mrf.mxu0
      %2089 = vmatprep.mubr.f32.mxu0 0.0
      %2090 = vmatmul.mubr.f32.gmra.mxu0 %v1892
      %v2091 = vpop.f32.mrf.mxu0
      %v2092 = vadd.f32 0.0, %v2091
      %v2093 = vpop.f32.mrf.mxu0
      %2094 = vmatprep.mubr.f32.mxu0 0.0
      %2095 = vmatmul.mubr.f32.gmra.mxu0 %v1893
      %v2096 = vpop.f32.mrf.mxu0
      %v2097 = vadd.f32 0.0, %v2096
      %v2098 = vpop.f32.mrf.mxu0
      %2099 = vmatprep.mubr.f32.mxu0 0.0
      %2100 = vmatmul.mubr.f32.gmra.mxu0 %v1894
      %v2101 = vpop.f32.mrf.mxu0
      %v2102 = vadd.f32 0.0, %v2101
      %v2103 = vpop.f32.mrf.mxu0
      %2104 = vmatprep.mubr.f32.mxu0 0.0
      %2105 = vmatmul.mubr.f32.gmra.mxu0 %v1895
      %v2106 = vpop.f32.mrf.mxu0
      %v2107 = vadd.f32 0.0, %v2106
      %v2108 = vpop.f32.mrf.mxu0
      %2109 = vmatprep.mubr.f32.mxu0 0.0
      %2110 = vmatmul.mubr.f32.gmra.mxu0 %v1896
      %v2111 = vpop.f32.mrf.mxu0
      %v2112 = vadd.f32 0.0, %v2111
      %v2113 = vpop.f32.mrf.mxu0
      %2114 = vmatprep.mubr.f32.mxu0 0.0
      %2115 = vmatmul.mubr.f32.gmra.mxu0 %v1897
      %v2116 = vpop.f32.mrf.mxu0
      %v2117 = vadd.f32 0.0, %v2116
      %v2118 = vpop.f32.mrf.mxu0
      %2119 = vmatprep.mubr.f32.mxu0 0.0
      %2120 = vmatmul.mubr.f32.gmra.mxu0 %v1898
      %v2121 = vpop.f32.mrf.mxu0
      %v2122 = vadd.f32 0.0, %v2121
      %v2123 = vpop.f32.mrf.mxu0
      %2124 = vmatprep.mubr.f32.mxu0 0.0
      %2125 = vmatmul.mubr.f32.gmra.mxu0 %v1899
      %v2126 = vpop.f32.mrf.mxu0
      %v2127 = vadd.f32 0.0, %v2126
      %v2128 = vpop.f32.mrf.mxu0
      %2129 = vmatprep.mubr.f32.mxu0 0.0
      %2130 = vmatmul.mubr.f32.gmra.mxu0 %v1900
      %v2131 = vpop.f32.mrf.mxu0
      %v2132 = vadd.f32 0.0, %v2131
      %v2133 = vpop.f32.mrf.mxu0
      %2134 = vmatprep.mubr.f32.mxu0 0.0
      %2135 = vmatmul.mubr.f32.gmra.mxu0 %v1901
      %v2136 = vpop.f32.mrf.mxu0
      %v2137 = vadd.f32 0.0, %v2136
      %v2138 = vpop.f32.mrf.mxu0
      %2139 = vmatprep.mubr.f32.mxu0 0.0
      %2140 = vmatmul.mubr.f32.gmra.mxu0 %v1902
      %v2141 = vpop.f32.mrf.mxu0
      %v2142 = vadd.f32 0.0, %v2141
      %v2143 = vpop.f32.mrf.mxu0
      %2144 = vdwg.mxu0
      %v2145 = vadd.f32 %v1806, %v1987
      %v2146 = vadd.f32 %v1807, %v1992
      %v2147 = vadd.f32 %v1808, %v1997
      %v2148 = vadd.f32 %v1809, %v2002
      %v2149 = vadd.f32 %v1810, %v2007
      %v2150 = vadd.f32 %v1811, %v2012
      %v2151 = vadd.f32 %v1812, %v2017
      %v2152 = vadd.f32 %v1813, %v2022
      %v2153 = vadd.f32 %v1814, %v2027
      %v2154 = vadd.f32 %v1815, %v2032
      %v2155 = vadd.f32 %v1816, %v2037
      %v2156 = vadd.f32 %v1817, %v2042
      %v2157 = vadd.f32 %v1818, %v2047
      %v2158 = vadd.f32 %v1819, %v2052
      %v2159 = vadd.f32 %v1820, %v2057
      %v2160 = vadd.f32 %v1821, %v2062
      %v2161 = vadd.f32 %v1822, %v2067
      %v2162 = vadd.f32 %v1823, %v2072
      %v2163 = vadd.f32 %v1824, %v2077
      %v2164 = vadd.f32 %v1825, %v2082
      %v2165 = vadd.f32 %v1826, %v2087
      %v2166 = vadd.f32 %v1827, %v2092
      %v2167 = vadd.f32 %v1828, %v2097
      %v2168 = vadd.f32 %v1829, %v2102
      %v2169 = vadd.f32 %v1830, %v2107
      %v2170 = vadd.f32 %v1831, %v2112
      %v2171 = vadd.f32 %v1832, %v2117
      %v2172 = vadd.f32 %v1833, %v2122
      %v2173 = vadd.f32 %v1834, %v2127
      %v2174 = vadd.f32 %v1835, %v2132
      %v2175 = vadd.f32 %v1836, %v2137
      %v2176 = vadd.f32 %v1837, %v2142
      %s2177 = scalar_lea.vmem %s199, 32
      %v2178 = vld [vmem:[%s2177] sm:$0xff]
      %v2179 = vld [vmem:[%s2177 + $0x8] sm:$0xff]
      %v2180 = vld [vmem:[%s2177 + $0x10] sm:$0xff]
      %v2181 = vld [vmem:[%s2177 + $0x18] sm:$0xff]
      %v2182 = vld [vmem:[%s2177 + $0x20] sm:$0xff]
      %v2183 = vld [vmem:[%s2177 + $0x28] sm:$0xff]
      %v2184 = vld [vmem:[%s2177 + $0x30] sm:$0xff]
      %v2185 = vld [vmem:[%s2177 + $0x38] sm:$0xff]
      %v2186 = vld [vmem:[%s2177 + $0x40] sm:$0xff]
      %v2187 = vld [vmem:[%s2177 + $0x48] sm:$0xff]
      %v2188 = vld [vmem:[%s2177 + $0x50] sm:$0xff]
      %v2189 = vld [vmem:[%s2177 + $0x58] sm:$0xff]
      %v2190 = vld [vmem:[%s2177 + $0x60] sm:$0xff]
      %v2191 = vld [vmem:[%s2177 + $0x68] sm:$0xff]
      %v2192 = vld [vmem:[%s2177 + $0x70] sm:$0xff]
      %v2193 = vld [vmem:[%s2177 + $0x78] sm:$0xff]
      %v2194 = vld [vmem:[%s2177 + $0x80] sm:$0xff]
      %v2195 = vld [vmem:[%s2177 + $0x88] sm:$0xff]
      %v2196 = vld [vmem:[%s2177 + $0x90] sm:$0xff]
      %v2197 = vld [vmem:[%s2177 + $0x98] sm:$0xff]
      %v2198 = vld [vmem:[%s2177 + $0xa0] sm:$0xff]
      %v2199 = vld [vmem:[%s2177 + $0xa8] sm:$0xff]
      %v2200 = vld [vmem:[%s2177 + $0xb0] sm:$0xff]
      %v2201 = vld [vmem:[%s2177 + $0xb8] sm:$0xff]
      %v2202 = vld [vmem:[%s2177 + $0xc0] sm:$0xff]
      %v2203 = vld [vmem:[%s2177 + $0xc8] sm:$0xff]
      %v2204 = vld [vmem:[%s2177 + $0xd0] sm:$0xff]
      %v2205 = vld [vmem:[%s2177 + $0xd8] sm:$0xff]
      %v2206 = vld [vmem:[%s2177 + $0xe0] sm:$0xff]
      %v2207 = vld [vmem:[%s2177 + $0xe8] sm:$0xff]
      %v2208 = vld [vmem:[%s2177 + $0xf0] sm:$0xff]
      %v2209 = vld [vmem:[%s2177 + $0xf8] sm:$0xff]
      %v2210 = vmax.f32 %v2178, 0.0
      %v2211 = vmax.f32 %v2179, 0.0
      %v2212 = vmax.f32 %v2180, 0.0
      %v2213 = vmax.f32 %v2181, 0.0
      %v2214 = vmax.f32 %v2182, 0.0
      %v2215 = vmax.f32 %v2183, 0.0
      %v2216 = vmax.f32 %v2184, 0.0
      %v2217 = vmax.f32 %v2185, 0.0
      %v2218 = vmax.f32 %v2186, 0.0
      %v2219 = vmax.f32 %v2187, 0.0
      %v2220 = vmax.f32 %v2188, 0.0
      %v2221 = vmax.f32 %v2189, 0.0
      %v2222 = vmax.f32 %v2190, 0.0
      %v2223 = vmax.f32 %v2191, 0.0
      %v2224 = vmax.f32 %v2192, 0.0
      %v2225 = vmax.f32 %v2193, 0.0
      %v2226 = vmax.f32 %v2194, 0.0
      %v2227 = vmax.f32 %v2195, 0.0
      %v2228 = vmax.f32 %v2196, 0.0
      %v2229 = vmax.f32 %v2197, 0.0
      %v2230 = vmax.f32 %v2198, 0.0
      %v2231 = vmax.f32 %v2199, 0.0
      %v2232 = vmax.f32 %v2200, 0.0
      %v2233 = vmax.f32 %v2201, 0.0
      %v2234 = vmax.f32 %v2202, 0.0
      %v2235 = vmax.f32 %v2203, 0.0
      %v2236 = vmax.f32 %v2204, 0.0
      %v2237 = vmax.f32 %v2205, 0.0
      %v2238 = vmax.f32 %v2206, 0.0
      %v2239 = vmax.f32 %v2207, 0.0
      %v2240 = vmax.f32 %v2208, 0.0
      %v2241 = vmax.f32 %v2209, 0.0
      %s2242 = scalar_lea.vmem %s1, 768
      %v2243 = vld [vmem:[%s2242] sm:$0xff]
      %v2244 = vld [vmem:[%s2242 + $0x8] sm:$0xff]
      %v2245 = vld [vmem:[%s2242 + $0x10] sm:$0xff]
      %v2246 = vld [vmem:[%s2242 + $0x18] sm:$0xff]
      %v2247 = vld [vmem:[%s2242 + $0x20] sm:$0xff]
      %v2248 = vld [vmem:[%s2242 + $0x28] sm:$0xff]
      %v2249 = vld [vmem:[%s2242 + $0x30] sm:$0xff]
      %v2250 = vld [vmem:[%s2242 + $0x38] sm:$0xff]
      %v2251 = vld [vmem:[%s2242 + $0x40] sm:$0xff]
      %v2252 = vld [vmem:[%s2242 + $0x48] sm:$0xff]
      %v2253 = vld [vmem:[%s2242 + $0x50] sm:$0xff]
      %v2254 = vld [vmem:[%s2242 + $0x58] sm:$0xff]
      %v2255 = vld [vmem:[%s2242 + $0x60] sm:$0xff]
      %v2256 = vld [vmem:[%s2242 + $0x68] sm:$0xff]
      %v2257 = vld [vmem:[%s2242 + $0x70] sm:$0xff]
      %v2258 = vld [vmem:[%s2242 + $0x78] sm:$0xff]
      %2259 = vmatprep.subr.mxu0 0.0
      %2260 = vmatpush1.msra.mxu0 %v2258
      %2261 = vmatprep.subr.mxu0 0.0
      %2262 = vmatpush1.msra.mxu0 %v2257
      %2263 = vmatprep.subr.mxu0 0.0
      %2264 = vmatpush1.msra.mxu0 %v2256
      %2265 = vmatprep.subr.mxu0 0.0
      %2266 = vmatpush1.msra.mxu0 %v2255
      %2267 = vmatprep.subr.mxu0 0.0
      %2268 = vmatpush1.msra.mxu0 %v2254
      %2269 = vmatprep.subr.mxu0 0.0
      %2270 = vmatpush1.msra.mxu0 %v2253
      %2271 = vmatprep.subr.mxu0 0.0
      %2272 = vmatpush1.msra.mxu0 %v2252
      %2273 = vmatprep.subr.mxu0 0.0
      %2274 = vmatpush1.msra.mxu0 %v2251
      %2275 = vmatprep.subr.mxu0 0.0
      %2276 = vmatpush1.msra.mxu0 %v2250
      %2277 = vmatprep.subr.mxu0 0.0
      %2278 = vmatpush1.msra.mxu0 %v2249
      %2279 = vmatprep.subr.mxu0 0.0
      %2280 = vmatpush1.msra.mxu0 %v2248
      %2281 = vmatprep.subr.mxu0 0.0
      %2282 = vmatpush1.msra.mxu0 %v2247
      %2283 = vmatprep.subr.mxu0 0.0
      %2284 = vmatpush1.msra.mxu0 %v2246
      %2285 = vmatprep.subr.mxu0 0.0
      %2286 = vmatpush1.msra.mxu0 %v2245
      %2287 = vmatprep.subr.mxu0 0.0
      %2288 = vmatpush1.msra.mxu0 %v2244
      %2289 = vmatprep.subr.mxu0 0.0
      %2290 = vmatpush1.msra.mxu0 %v2243
      %2291 = vmatprep.subr.mxu0 0.0
      %2292 = vmatpush2.msra.mxu0 0.0
      %2293 = vmatprep.subr.mxu0 0.0
      %2294 = vmatpush2.msra.mxu0 0.0
      %2295 = vmatprep.subr.mxu0 0.0
      %2296 = vmatpush2.msra.mxu0 0.0
      %2297 = vmatprep.subr.mxu0 0.0
      %2298 = vmatpush2.msra.mxu0 0.0
      %2299 = vmatprep.subr.mxu0 0.0
      %2300 = vmatpush2.msra.mxu0 0.0
      %2301 = vmatprep.subr.mxu0 0.0
      %2302 = vmatpush2.msra.mxu0 0.0
      %2303 = vmatprep.subr.mxu0 0.0
      %2304 = vmatpush2.msra.mxu0 0.0
      %2305 = vmatprep.subr.mxu0 0.0
      %2306 = vmatpush2.msra.mxu0 0.0
      %2307 = vmatprep.subr.mxu0 0.0
      %2308 = vmatpush2.msra.mxu0 0.0
      %2309 = vmatprep.subr.mxu0 0.0
      %2310 = vmatpush2.msra.mxu0 0.0
      %2311 = vmatprep.subr.mxu0 0.0
      %2312 = vmatpush2.msra.mxu0 0.0
      %2313 = vmatprep.subr.mxu0 0.0
      %2314 = vmatpush2.msra.mxu0 0.0
      %2315 = vmatprep.subr.mxu0 0.0
      %2316 = vmatpush2.msra.mxu0 0.0
      %2317 = vmatprep.subr.mxu0 0.0
      %2318 = vmatpush2.msra.mxu0 0.0
      %2319 = vmatprep.subr.mxu0 0.0
      %2320 = vmatpush2.msra.mxu0 0.0
      %2321 = vmatprep.subr.mxu0 0.0
      %2322 = vmatpush2.msra.mxu0 0.0
      %2323 = vmatprep.mubr.f32.mxu0 0.0
      %2324 = vmatmul.mubr.f32.gmra.mxu0 %v2210
      %v2325 = vpop.f32.mrf.mxu0
      %v2326 = vadd.f32 0.0, %v2325
      %v2327 = vpop.f32.mrf.mxu0
      %2328 = vmatprep.mubr.f32.mxu0 0.0
      %2329 = vmatmul.mubr.f32.gmra.mxu0 %v2211
      %v2330 = vpop.f32.mrf.mxu0
      %v2331 = vadd.f32 0.0, %v2330
      %v2332 = vpop.f32.mrf.mxu0
      %2333 = vmatprep.mubr.f32.mxu0 0.0
      %2334 = vmatmul.mubr.f32.gmra.mxu0 %v2212
      %v2335 = vpop.f32.mrf.mxu0
      %v2336 = vadd.f32 0.0, %v2335
      %v2337 = vpop.f32.mrf.mxu0
      %2338 = vmatprep.mubr.f32.mxu0 0.0
      %2339 = vmatmul.mubr.f32.gmra.mxu0 %v2213
      %v2340 = vpop.f32.mrf.mxu0
      %v2341 = vadd.f32 0.0, %v2340
      %v2342 = vpop.f32.mrf.mxu0
      %2343 = vmatprep.mubr.f32.mxu0 0.0
      %2344 = vmatmul.mubr.f32.gmra.mxu0 %v2214
      %v2345 = vpop.f32.mrf.mxu0
      %v2346 = vadd.f32 0.0, %v2345
      %v2347 = vpop.f32.mrf.mxu0
      %2348 = vmatprep.mubr.f32.mxu0 0.0
      %2349 = vmatmul.mubr.f32.gmra.mxu0 %v2215
      %v2350 = vpop.f32.mrf.mxu0
      %v2351 = vadd.f32 0.0, %v2350
      %v2352 = vpop.f32.mrf.mxu0
      %2353 = vmatprep.mubr.f32.mxu0 0.0
      %2354 = vmatmul.mubr.f32.gmra.mxu0 %v2216
      %v2355 = vpop.f32.mrf.mxu0
      %v2356 = vadd.f32 0.0, %v2355
      %v2357 = vpop.f32.mrf.mxu0
      %2358 = vmatprep.mubr.f32.mxu0 0.0
      %2359 = vmatmul.mubr.f32.gmra.mxu0 %v2217
      %v2360 = vpop.f32.mrf.mxu0
      %v2361 = vadd.f32 0.0, %v2360
      %v2362 = vpop.f32.mrf.mxu0
      %2363 = vmatprep.mubr.f32.mxu0 0.0
      %2364 = vmatmul.mubr.f32.gmra.mxu0 %v2218
      %v2365 = vpop.f32.mrf.mxu0
      %v2366 = vadd.f32 0.0, %v2365
      %v2367 = vpop.f32.mrf.mxu0
      %2368 = vmatprep.mubr.f32.mxu0 0.0
      %2369 = vmatmul.mubr.f32.gmra.mxu0 %v2219
      %v2370 = vpop.f32.mrf.mxu0
      %v2371 = vadd.f32 0.0, %v2370
      %v2372 = vpop.f32.mrf.mxu0
      %2373 = vmatprep.mubr.f32.mxu0 0.0
      %2374 = vmatmul.mubr.f32.gmra.mxu0 %v2220
      %v2375 = vpop.f32.mrf.mxu0
      %v2376 = vadd.f32 0.0, %v2375
      %v2377 = vpop.f32.mrf.mxu0
      %2378 = vmatprep.mubr.f32.mxu0 0.0
      %2379 = vmatmul.mubr.f32.gmra.mxu0 %v2221
      %v2380 = vpop.f32.mrf.mxu0
      %v2381 = vadd.f32 0.0, %v2380
      %v2382 = vpop.f32.mrf.mxu0
      %2383 = vmatprep.mubr.f32.mxu0 0.0
      %2384 = vmatmul.mubr.f32.gmra.mxu0 %v2222
      %v2385 = vpop.f32.mrf.mxu0
      %v2386 = vadd.f32 0.0, %v2385
      %v2387 = vpop.f32.mrf.mxu0
      %2388 = vmatprep.mubr.f32.mxu0 0.0
      %2389 = vmatmul.mubr.f32.gmra.mxu0 %v2223
      %v2390 = vpop.f32.mrf.mxu0
      %v2391 = vadd.f32 0.0, %v2390
      %v2392 = vpop.f32.mrf.mxu0
      %2393 = vmatprep.mubr.f32.mxu0 0.0
      %2394 = vmatmul.mubr.f32.gmra.mxu0 %v2224
      %v2395 = vpop.f32.mrf.mxu0
      %v2396 = vadd.f32 0.0, %v2395
      %v2397 = vpop.f32.mrf.mxu0
      %2398 = vmatprep.mubr.f32.mxu0 0.0
      %2399 = vmatmul.mubr.f32.gmra.mxu0 %v2225
      %v2400 = vpop.f32.mrf.mxu0
      %v2401 = vadd.f32 0.0, %v2400
      %v2402 = vpop.f32.mrf.mxu0
      %2403 = vmatprep.mubr.f32.mxu0 0.0
      %2404 = vmatmul.mubr.f32.gmra.mxu0 %v2226
      %v2405 = vpop.f32.mrf.mxu0
      %v2406 = vadd.f32 0.0, %v2405
      %v2407 = vpop.f32.mrf.mxu0
      %2408 = vmatprep.mubr.f32.mxu0 0.0
      %2409 = vmatmul.mubr.f32.gmra.mxu0 %v2227
      %v2410 = vpop.f32.mrf.mxu0
      %v2411 = vadd.f32 0.0, %v2410
      %v2412 = vpop.f32.mrf.mxu0
      %2413 = vmatprep.mubr.f32.mxu0 0.0
      %2414 = vmatmul.mubr.f32.gmra.mxu0 %v2228
      %v2415 = vpop.f32.mrf.mxu0
      %v2416 = vadd.f32 0.0, %v2415
      %v2417 = vpop.f32.mrf.mxu0
      %2418 = vmatprep.mubr.f32.mxu0 0.0
      %2419 = vmatmul.mubr.f32.gmra.mxu0 %v2229
      %v2420 = vpop.f32.mrf.mxu0
      %v2421 = vadd.f32 0.0, %v2420
      %v2422 = vpop.f32.mrf.mxu0
      %2423 = vmatprep.mubr.f32.mxu0 0.0
      %2424 = vmatmul.mubr.f32.gmra.mxu0 %v2230
      %v2425 = vpop.f32.mrf.mxu0
      %v2426 = vadd.f32 0.0, %v2425
      %v2427 = vpop.f32.mrf.mxu0
      %2428 = vmatprep.mubr.f32.mxu0 0.0
      %2429 = vmatmul.mubr.f32.gmra.mxu0 %v2231
      %v2430 = vpop.f32.mrf.mxu0
      %v2431 = vadd.f32 0.0, %v2430
      %v2432 = vpop.f32.mrf.mxu0
      %2433 = vmatprep.mubr.f32.mxu0 0.0
      %2434 = vmatmul.mubr.f32.gmra.mxu0 %v2232
      %v2435 = vpop.f32.mrf.mxu0
      %v2436 = vadd.f32 0.0, %v2435
      %v2437 = vpop.f32.mrf.mxu0
      %2438 = vmatprep.mubr.f32.mxu0 0.0
      %2439 = vmatmul.mubr.f32.gmra.mxu0 %v2233
      %v2440 = vpop.f32.mrf.mxu0
      %v2441 = vadd.f32 0.0, %v2440
      %v2442 = vpop.f32.mrf.mxu0
      %2443 = vmatprep.mubr.f32.mxu0 0.0
      %2444 = vmatmul.mubr.f32.gmra.mxu0 %v2234
      %v2445 = vpop.f32.mrf.mxu0
      %v2446 = vadd.f32 0.0, %v2445
      %v2447 = vpop.f32.mrf.mxu0
      %2448 = vmatprep.mubr.f32.mxu0 0.0
      %2449 = vmatmul.mubr.f32.gmra.mxu0 %v2235
      %v2450 = vpop.f32.mrf.mxu0
      %v2451 = vadd.f32 0.0, %v2450
      %v2452 = vpop.f32.mrf.mxu0
      %2453 = vmatprep.mubr.f32.mxu0 0.0
      %2454 = vmatmul.mubr.f32.gmra.mxu0 %v2236
      %v2455 = vpop.f32.mrf.mxu0
      %v2456 = vadd.f32 0.0, %v2455
      %v2457 = vpop.f32.mrf.mxu0
      %2458 = vmatprep.mubr.f32.mxu0 0.0
      %2459 = vmatmul.mubr.f32.gmra.mxu0 %v2237
      %v2460 = vpop.f32.mrf.mxu0
      %v2461 = vadd.f32 0.0, %v2460
      %v2462 = vpop.f32.mrf.mxu0
      %2463 = vmatprep.mubr.f32.mxu0 0.0
      %2464 = vmatmul.mubr.f32.gmra.mxu0 %v2238
      %v2465 = vpop.f32.mrf.mxu0
      %v2466 = vadd.f32 0.0, %v2465
      %v2467 = vpop.f32.mrf.mxu0
      %2468 = vmatprep.mubr.f32.mxu0 0.0
      %2469 = vmatmul.mubr.f32.gmra.mxu0 %v2239
      %v2470 = vpop.f32.mrf.mxu0
      %v2471 = vadd.f32 0.0, %v2470
      %v2472 = vpop.f32.mrf.mxu0
      %2473 = vmatprep.mubr.f32.mxu0 0.0
      %2474 = vmatmul.mubr.f32.gmra.mxu0 %v2240
      %v2475 = vpop.f32.mrf.mxu0
      %v2476 = vadd.f32 0.0, %v2475
      %v2477 = vpop.f32.mrf.mxu0
      %2478 = vmatprep.mubr.f32.mxu0 0.0
      %2479 = vmatmul.mubr.f32.gmra.mxu0 %v2241
      %v2480 = vpop.f32.mrf.mxu0
      %v2481 = vadd.f32 0.0, %v2480
      %v2482 = vpop.f32.mrf.mxu0
      %2483 = vdwg.mxu0
      %v2484 = vadd.f32 %v2145, %v2326
      %v2485 = vadd.f32 %v2146, %v2331
      %v2486 = vadd.f32 %v2147, %v2336
      %v2487 = vadd.f32 %v2148, %v2341
      %v2488 = vadd.f32 %v2149, %v2346
      %v2489 = vadd.f32 %v2150, %v2351
      %v2490 = vadd.f32 %v2151, %v2356
      %v2491 = vadd.f32 %v2152, %v2361
      %v2492 = vadd.f32 %v2153, %v2366
      %v2493 = vadd.f32 %v2154, %v2371
      %v2494 = vadd.f32 %v2155, %v2376
      %v2495 = vadd.f32 %v2156, %v2381
      %v2496 = vadd.f32 %v2157, %v2386
      %v2497 = vadd.f32 %v2158, %v2391
      %v2498 = vadd.f32 %v2159, %v2396
      %v2499 = vadd.f32 %v2160, %v2401
      %v2500 = vadd.f32 %v2161, %v2406
      %v2501 = vadd.f32 %v2162, %v2411
      %v2502 = vadd.f32 %v2163, %v2416
      %v2503 = vadd.f32 %v2164, %v2421
      %v2504 = vadd.f32 %v2165, %v2426
      %v2505 = vadd.f32 %v2166, %v2431
      %v2506 = vadd.f32 %v2167, %v2436
      %v2507 = vadd.f32 %v2168, %v2441
      %v2508 = vadd.f32 %v2169, %v2446
      %v2509 = vadd.f32 %v2170, %v2451
      %v2510 = vadd.f32 %v2171, %v2456
      %v2511 = vadd.f32 %v2172, %v2461
      %v2512 = vadd.f32 %v2173, %v2466
      %v2513 = vadd.f32 %v2174, %v2471
      %v2514 = vadd.f32 %v2175, %v2476
      %v2515 = vadd.f32 %v2176, %v2481
      %s2516 = scalar_lea.vmem %s199, 320
      %v2517 = vld [vmem:[%s2516] sm:$0xff]
      %v2518 = vld [vmem:[%s2516 + $0x8] sm:$0xff]
      %v2519 = vld [vmem:[%s2516 + $0x10] sm:$0xff]
      %v2520 = vld [vmem:[%s2516 + $0x18] sm:$0xff]
      %v2521 = vld [vmem:[%s2516 + $0x20] sm:$0xff]
      %v2522 = vld [vmem:[%s2516 + $0x28] sm:$0xff]
      %v2523 = vld [vmem:[%s2516 + $0x30] sm:$0xff]
      %v2524 = vld [vmem:[%s2516 + $0x38] sm:$0xff]
      %v2525 = vld [vmem:[%s2516 + $0x40] sm:$0xff]
      %v2526 = vld [vmem:[%s2516 + $0x48] sm:$0xff]
      %v2527 = vld [vmem:[%s2516 + $0x50] sm:$0xff]
      %v2528 = vld [vmem:[%s2516 + $0x58] sm:$0xff]
      %v2529 = vld [vmem:[%s2516 + $0x60] sm:$0xff]
      %v2530 = vld [vmem:[%s2516 + $0x68] sm:$0xff]
      %v2531 = vld [vmem:[%s2516 + $0x70] sm:$0xff]
      %v2532 = vld [vmem:[%s2516 + $0x78] sm:$0xff]
      %v2533 = vld [vmem:[%s2516 + $0x80] sm:$0xff]
      %v2534 = vld [vmem:[%s2516 + $0x88] sm:$0xff]
      %v2535 = vld [vmem:[%s2516 + $0x90] sm:$0xff]
      %v2536 = vld [vmem:[%s2516 + $0x98] sm:$0xff]
      %v2537 = vld [vmem:[%s2516 + $0xa0] sm:$0xff]
      %v2538 = vld [vmem:[%s2516 + $0xa8] sm:$0xff]
      %v2539 = vld [vmem:[%s2516 + $0xb0] sm:$0xff]
      %v2540 = vld [vmem:[%s2516 + $0xb8] sm:$0xff]
      %v2541 = vld [vmem:[%s2516 + $0xc0] sm:$0xff]
      %v2542 = vld [vmem:[%s2516 + $0xc8] sm:$0xff]
      %v2543 = vld [vmem:[%s2516 + $0xd0] sm:$0xff]
      %v2544 = vld [vmem:[%s2516 + $0xd8] sm:$0xff]
      %v2545 = vld [vmem:[%s2516 + $0xe0] sm:$0xff]
      %v2546 = vld [vmem:[%s2516 + $0xe8] sm:$0xff]
      %v2547 = vld [vmem:[%s2516 + $0xf0] sm:$0xff]
      %v2548 = vld [vmem:[%s2516 + $0xf8] sm:$0xff]
      %v2549 = vmax.f32 %v2517, 0.0
      %v2550 = vmax.f32 %v2518, 0.0
      %v2551 = vmax.f32 %v2519, 0.0
      %v2552 = vmax.f32 %v2520, 0.0
      %v2553 = vmax.f32 %v2521, 0.0
      %v2554 = vmax.f32 %v2522, 0.0
      %v2555 = vmax.f32 %v2523, 0.0
      %v2556 = vmax.f32 %v2524, 0.0
      %v2557 = vmax.f32 %v2525, 0.0
      %v2558 = vmax.f32 %v2526, 0.0
      %v2559 = vmax.f32 %v2527, 0.0
      %v2560 = vmax.f32 %v2528, 0.0
      %v2561 = vmax.f32 %v2529, 0.0
      %v2562 = vmax.f32 %v2530, 0.0
      %v2563 = vmax.f32 %v2531, 0.0
      %v2564 = vmax.f32 %v2532, 0.0
      %v2565 = vmax.f32 %v2533, 0.0
      %v2566 = vmax.f32 %v2534, 0.0
      %v2567 = vmax.f32 %v2535, 0.0
      %v2568 = vmax.f32 %v2536, 0.0
      %v2569 = vmax.f32 %v2537, 0.0
      %v2570 = vmax.f32 %v2538, 0.0
      %v2571 = vmax.f32 %v2539, 0.0
      %v2572 = vmax.f32 %v2540, 0.0
      %v2573 = vmax.f32 %v2541, 0.0
      %v2574 = vmax.f32 %v2542, 0.0
      %v2575 = vmax.f32 %v2543, 0.0
      %v2576 = vmax.f32 %v2544, 0.0
      %v2577 = vmax.f32 %v2545, 0.0
      %v2578 = vmax.f32 %v2546, 0.0
      %v2579 = vmax.f32 %v2547, 0.0
      %v2580 = vmax.f32 %v2548, 0.0
      %s2581 = scalar_lea.vmem %s1, 896
      %v2582 = vld [vmem:[%s2581] sm:$0xff]
      %v2583 = vld [vmem:[%s2581 + $0x8] sm:$0xff]
      %v2584 = vld [vmem:[%s2581 + $0x10] sm:$0xff]
      %v2585 = vld [vmem:[%s2581 + $0x18] sm:$0xff]
      %v2586 = vld [vmem:[%s2581 + $0x20] sm:$0xff]
      %v2587 = vld [vmem:[%s2581 + $0x28] sm:$0xff]
      %v2588 = vld [vmem:[%s2581 + $0x30] sm:$0xff]
      %v2589 = vld [vmem:[%s2581 + $0x38] sm:$0xff]
      %v2590 = vld [vmem:[%s2581 + $0x40] sm:$0xff]
      %v2591 = vld [vmem:[%s2581 + $0x48] sm:$0xff]
      %v2592 = vld [vmem:[%s2581 + $0x50] sm:$0xff]
      %v2593 = vld [vmem:[%s2581 + $0x58] sm:$0xff]
      %v2594 = vld [vmem:[%s2581 + $0x60] sm:$0xff]
      %v2595 = vld [vmem:[%s2581 + $0x68] sm:$0xff]
      %v2596 = vld [vmem:[%s2581 + $0x70] sm:$0xff]
      %v2597 = vld [vmem:[%s2581 + $0x78] sm:$0xff]
      %2598 = vmatprep.subr.mxu0 0.0
      %2599 = vmatpush1.msra.mxu0 %v2597
      %2600 = vmatprep.subr.mxu0 0.0
      %2601 = vmatpush1.msra.mxu0 %v2596
      %2602 = vmatprep.subr.mxu0 0.0
      %2603 = vmatpush1.msra.mxu0 %v2595
      %2604 = vmatprep.subr.mxu0 0.0
      %2605 = vmatpush1.msra.mxu0 %v2594
      %2606 = vmatprep.subr.mxu0 0.0
      %2607 = vmatpush1.msra.mxu0 %v2593
      %2608 = vmatprep.subr.mxu0 0.0
      %2609 = vmatpush1.msra.mxu0 %v2592
      %2610 = vmatprep.subr.mxu0 0.0
      %2611 = vmatpush1.msra.mxu0 %v2591
      %2612 = vmatprep.subr.mxu0 0.0
      %2613 = vmatpush1.msra.mxu0 %v2590
      %2614 = vmatprep.subr.mxu0 0.0
      %2615 = vmatpush1.msra.mxu0 %v2589
      %2616 = vmatprep.subr.mxu0 0.0
      %2617 = vmatpush1.msra.mxu0 %v2588
      %2618 = vmatprep.subr.mxu0 0.0
      %2619 = vmatpush1.msra.mxu0 %v2587
      %2620 = vmatprep.subr.mxu0 0.0
      %2621 = vmatpush1.msra.mxu0 %v2586
      %2622 = vmatprep.subr.mxu0 0.0
      %2623 = vmatpush1.msra.mxu0 %v2585
      %2624 = vmatprep.subr.mxu0 0.0
      %2625 = vmatpush1.msra.mxu0 %v2584
      %2626 = vmatprep.subr.mxu0 0.0
      %2627 = vmatpush1.msra.mxu0 %v2583
      %2628 = vmatprep.subr.mxu0 0.0
      %2629 = vmatpush1.msra.mxu0 %v2582
      %2630 = vmatprep.subr.mxu0 0.0
      %2631 = vmatpush2.msra.mxu0 0.0
      %2632 = vmatprep.subr.mxu0 0.0
      %2633 = vmatpush2.msra.mxu0 0.0
      %2634 = vmatprep.subr.mxu0 0.0
      %2635 = vmatpush2.msra.mxu0 0.0
      %2636 = vmatprep.subr.mxu0 0.0
      %2637 = vmatpush2.msra.mxu0 0.0
      %2638 = vmatprep.subr.mxu0 0.0
      %2639 = vmatpush2.msra.mxu0 0.0
      %2640 = vmatprep.subr.mxu0 0.0
      %2641 = vmatpush2.msra.mxu0 0.0
      %2642 = vmatprep.subr.mxu0 0.0
      %2643 = vmatpush2.msra.mxu0 0.0
      %2644 = vmatprep.subr.mxu0 0.0
      %2645 = vmatpush2.msra.mxu0 0.0
      %2646 = vmatprep.subr.mxu0 0.0
      %2647 = vmatpush2.msra.mxu0 0.0
      %2648 = vmatprep.subr.mxu0 0.0
      %2649 = vmatpush2.msra.mxu0 0.0
      %2650 = vmatprep.subr.mxu0 0.0
      %2651 = vmatpush2.msra.mxu0 0.0
      %2652 = vmatprep.subr.mxu0 0.0
      %2653 = vmatpush2.msra.mxu0 0.0
      %2654 = vmatprep.subr.mxu0 0.0
      %2655 = vmatpush2.msra.mxu0 0.0
      %2656 = vmatprep.subr.mxu0 0.0
      %2657 = vmatpush2.msra.mxu0 0.0
      %2658 = vmatprep.subr.mxu0 0.0
      %2659 = vmatpush2.msra.mxu0 0.0
      %2660 = vmatprep.subr.mxu0 0.0
      %2661 = vmatpush2.msra.mxu0 0.0
      %2662 = vmatprep.mubr.f32.mxu0 0.0
      %2663 = vmatmul.mubr.f32.gmra.mxu0 %v2549
      %v2664 = vpop.f32.mrf.mxu0
      %v2665 = vadd.f32 0.0, %v2664
      %v2666 = vpop.f32.mrf.mxu0
      %2667 = vmatprep.mubr.f32.mxu0 0.0
      %2668 = vmatmul.mubr.f32.gmra.mxu0 %v2550
      %v2669 = vpop.f32.mrf.mxu0
      %v2670 = vadd.f32 0.0, %v2669
      %v2671 = vpop.f32.mrf.mxu0
      %2672 = vmatprep.mubr.f32.mxu0 0.0
      %2673 = vmatmul.mubr.f32.gmra.mxu0 %v2551
      %v2674 = vpop.f32.mrf.mxu0
      %v2675 = vadd.f32 0.0, %v2674
      %v2676 = vpop.f32.mrf.mxu0
      %2677 = vmatprep.mubr.f32.mxu0 0.0
      %2678 = vmatmul.mubr.f32.gmra.mxu0 %v2552
      %v2679 = vpop.f32.mrf.mxu0
      %v2680 = vadd.f32 0.0, %v2679
      %v2681 = vpop.f32.mrf.mxu0
      %2682 = vmatprep.mubr.f32.mxu0 0.0
      %2683 = vmatmul.mubr.f32.gmra.mxu0 %v2553
      %v2684 = vpop.f32.mrf.mxu0
      %v2685 = vadd.f32 0.0, %v2684
      %v2686 = vpop.f32.mrf.mxu0
      %2687 = vmatprep.mubr.f32.mxu0 0.0
      %2688 = vmatmul.mubr.f32.gmra.mxu0 %v2554
      %v2689 = vpop.f32.mrf.mxu0
      %v2690 = vadd.f32 0.0, %v2689
      %v2691 = vpop.f32.mrf.mxu0
      %2692 = vmatprep.mubr.f32.mxu0 0.0
      %2693 = vmatmul.mubr.f32.gmra.mxu0 %v2555
      %v2694 = vpop.f32.mrf.mxu0
      %v2695 = vadd.f32 0.0, %v2694
      %v2696 = vpop.f32.mrf.mxu0
      %2697 = vmatprep.mubr.f32.mxu0 0.0
      %2698 = vmatmul.mubr.f32.gmra.mxu0 %v2556
      %v2699 = vpop.f32.mrf.mxu0
      %v2700 = vadd.f32 0.0, %v2699
      %v2701 = vpop.f32.mrf.mxu0
      %2702 = vmatprep.mubr.f32.mxu0 0.0
      %2703 = vmatmul.mubr.f32.gmra.mxu0 %v2557
      %v2704 = vpop.f32.mrf.mxu0
      %v2705 = vadd.f32 0.0, %v2704
      %v2706 = vpop.f32.mrf.mxu0
      %2707 = vmatprep.mubr.f32.mxu0 0.0
      %2708 = vmatmul.mubr.f32.gmra.mxu0 %v2558
      %v2709 = vpop.f32.mrf.mxu0
      %v2710 = vadd.f32 0.0, %v2709
      %v2711 = vpop.f32.mrf.mxu0
      %2712 = vmatprep.mubr.f32.mxu0 0.0
      %2713 = vmatmul.mubr.f32.gmra.mxu0 %v2559
      %v2714 = vpop.f32.mrf.mxu0
      %v2715 = vadd.f32 0.0, %v2714
      %v2716 = vpop.f32.mrf.mxu0
      %2717 = vmatprep.mubr.f32.mxu0 0.0
      %2718 = vmatmul.mubr.f32.gmra.mxu0 %v2560
      %v2719 = vpop.f32.mrf.mxu0
      %v2720 = vadd.f32 0.0, %v2719
      %v2721 = vpop.f32.mrf.mxu0
      %2722 = vmatprep.mubr.f32.mxu0 0.0
      %2723 = vmatmul.mubr.f32.gmra.mxu0 %v2561
      %v2724 = vpop.f32.mrf.mxu0
      %v2725 = vadd.f32 0.0, %v2724
      %v2726 = vpop.f32.mrf.mxu0
      %2727 = vmatprep.mubr.f32.mxu0 0.0
      %2728 = vmatmul.mubr.f32.gmra.mxu0 %v2562
      %v2729 = vpop.f32.mrf.mxu0
      %v2730 = vadd.f32 0.0, %v2729
      %v2731 = vpop.f32.mrf.mxu0
      %2732 = vmatprep.mubr.f32.mxu0 0.0
      %2733 = vmatmul.mubr.f32.gmra.mxu0 %v2563
      %v2734 = vpop.f32.mrf.mxu0
      %v2735 = vadd.f32 0.0, %v2734
      %v2736 = vpop.f32.mrf.mxu0
      %2737 = vmatprep.mubr.f32.mxu0 0.0
      %2738 = vmatmul.mubr.f32.gmra.mxu0 %v2564
      %v2739 = vpop.f32.mrf.mxu0
      %v2740 = vadd.f32 0.0, %v2739
      %v2741 = vpop.f32.mrf.mxu0
      %2742 = vmatprep.mubr.f32.mxu0 0.0
      %2743 = vmatmul.mubr.f32.gmra.mxu0 %v2565
      %v2744 = vpop.f32.mrf.mxu0
      %v2745 = vadd.f32 0.0, %v2744
      %v2746 = vpop.f32.mrf.mxu0
      %2747 = vmatprep.mubr.f32.mxu0 0.0
      %2748 = vmatmul.mubr.f32.gmra.mxu0 %v2566
      %v2749 = vpop.f32.mrf.mxu0
      %v2750 = vadd.f32 0.0, %v2749
      %v2751 = vpop.f32.mrf.mxu0
      %2752 = vmatprep.mubr.f32.mxu0 0.0
      %2753 = vmatmul.mubr.f32.gmra.mxu0 %v2567
      %v2754 = vpop.f32.mrf.mxu0
      %v2755 = vadd.f32 0.0, %v2754
      %v2756 = vpop.f32.mrf.mxu0
      %2757 = vmatprep.mubr.f32.mxu0 0.0
      %2758 = vmatmul.mubr.f32.gmra.mxu0 %v2568
      %v2759 = vpop.f32.mrf.mxu0
      %v2760 = vadd.f32 0.0, %v2759
      %v2761 = vpop.f32.mrf.mxu0
      %2762 = vmatprep.mubr.f32.mxu0 0.0
      %2763 = vmatmul.mubr.f32.gmra.mxu0 %v2569
      %v2764 = vpop.f32.mrf.mxu0
      %v2765 = vadd.f32 0.0, %v2764
      %v2766 = vpop.f32.mrf.mxu0
      %2767 = vmatprep.mubr.f32.mxu0 0.0
      %2768 = vmatmul.mubr.f32.gmra.mxu0 %v2570
      %v2769 = vpop.f32.mrf.mxu0
      %v2770 = vadd.f32 0.0, %v2769
      %v2771 = vpop.f32.mrf.mxu0
      %2772 = vmatprep.mubr.f32.mxu0 0.0
      %2773 = vmatmul.mubr.f32.gmra.mxu0 %v2571
      %v2774 = vpop.f32.mrf.mxu0
      %v2775 = vadd.f32 0.0, %v2774
      %v2776 = vpop.f32.mrf.mxu0
      %2777 = vmatprep.mubr.f32.mxu0 0.0
      %2778 = vmatmul.mubr.f32.gmra.mxu0 %v2572
      %v2779 = vpop.f32.mrf.mxu0
      %v2780 = vadd.f32 0.0, %v2779
      %v2781 = vpop.f32.mrf.mxu0
      %2782 = vmatprep.mubr.f32.mxu0 0.0
      %2783 = vmatmul.mubr.f32.gmra.mxu0 %v2573
      %v2784 = vpop.f32.mrf.mxu0
      %v2785 = vadd.f32 0.0, %v2784
      %v2786 = vpop.f32.mrf.mxu0
      %2787 = vmatprep.mubr.f32.mxu0 0.0
      %2788 = vmatmul.mubr.f32.gmra.mxu0 %v2574
      %v2789 = vpop.f32.mrf.mxu0
      %v2790 = vadd.f32 0.0, %v2789
      %v2791 = vpop.f32.mrf.mxu0
      %2792 = vmatprep.mubr.f32.mxu0 0.0
      %2793 = vmatmul.mubr.f32.gmra.mxu0 %v2575
      %v2794 = vpop.f32.mrf.mxu0
      %v2795 = vadd.f32 0.0, %v2794
      %v2796 = vpop.f32.mrf.mxu0
      %2797 = vmatprep.mubr.f32.mxu0 0.0
      %2798 = vmatmul.mubr.f32.gmra.mxu0 %v2576
      %v2799 = vpop.f32.mrf.mxu0
      %v2800 = vadd.f32 0.0, %v2799
      %v2801 = vpop.f32.mrf.mxu0
      %2802 = vmatprep.mubr.f32.mxu0 0.0
      %2803 = vmatmul.mubr.f32.gmra.mxu0 %v2577
      %v2804 = vpop.f32.mrf.mxu0
      %v2805 = vadd.f32 0.0, %v2804
      %v2806 = vpop.f32.mrf.mxu0
      %2807 = vmatprep.mubr.f32.mxu0 0.0
      %2808 = vmatmul.mubr.f32.gmra.mxu0 %v2578
      %v2809 = vpop.f32.mrf.mxu0
      %v2810 = vadd.f32 0.0, %v2809
      %v2811 = vpop.f32.mrf.mxu0
      %2812 = vmatprep.mubr.f32.mxu0 0.0
      %2813 = vmatmul.mubr.f32.gmra.mxu0 %v2579
      %v2814 = vpop.f32.mrf.mxu0
      %v2815 = vadd.f32 0.0, %v2814
      %v2816 = vpop.f32.mrf.mxu0
      %2817 = vmatprep.mubr.f32.mxu0 0.0
      %2818 = vmatmul.mubr.f32.gmra.mxu0 %v2580
      %v2819 = vpop.f32.mrf.mxu0
      %v2820 = vadd.f32 0.0, %v2819
      %v2821 = vpop.f32.mrf.mxu0
      %2822 = vdwg.mxu0
      %v2823 = vadd.f32 %v2484, %v2665
      %v2824 = vadd.f32 %v2485, %v2670
      %v2825 = vadd.f32 %v2486, %v2675
      %v2826 = vadd.f32 %v2487, %v2680
      %v2827 = vadd.f32 %v2488, %v2685
      %v2828 = vadd.f32 %v2489, %v2690
      %v2829 = vadd.f32 %v2490, %v2695
      %v2830 = vadd.f32 %v2491, %v2700
      %v2831 = vadd.f32 %v2492, %v2705
      %v2832 = vadd.f32 %v2493, %v2710
      %v2833 = vadd.f32 %v2494, %v2715
      %v2834 = vadd.f32 %v2495, %v2720
      %v2835 = vadd.f32 %v2496, %v2725
      %v2836 = vadd.f32 %v2497, %v2730
      %v2837 = vadd.f32 %v2498, %v2735
      %v2838 = vadd.f32 %v2499, %v2740
      %v2839 = vadd.f32 %v2500, %v2745
      %v2840 = vadd.f32 %v2501, %v2750
      %v2841 = vadd.f32 %v2502, %v2755
      %v2842 = vadd.f32 %v2503, %v2760
      %v2843 = vadd.f32 %v2504, %v2765
      %v2844 = vadd.f32 %v2505, %v2770
      %v2845 = vadd.f32 %v2506, %v2775
      %v2846 = vadd.f32 %v2507, %v2780
      %v2847 = vadd.f32 %v2508, %v2785
      %v2848 = vadd.f32 %v2509, %v2790
      %v2849 = vadd.f32 %v2510, %v2795
      %v2850 = vadd.f32 %v2511, %v2800
      %v2851 = vadd.f32 %v2512, %v2805
      %v2852 = vadd.f32 %v2513, %v2810
      %v2853 = vadd.f32 %v2514, %v2815
      %v2854 = vadd.f32 %v2515, %v2820
      %s2855 = scalar_lea.vmem %s199, 608
      %v2856 = vld [vmem:[%s2855] sm:$0xff]
      %v2857 = vld [vmem:[%s2855 + $0x8] sm:$0xff]
      %v2858 = vld [vmem:[%s2855 + $0x10] sm:$0xff]
      %v2859 = vld [vmem:[%s2855 + $0x18] sm:$0xff]
      %v2860 = vld [vmem:[%s2855 + $0x20] sm:$0xff]
      %v2861 = vld [vmem:[%s2855 + $0x28] sm:$0xff]
      %v2862 = vld [vmem:[%s2855 + $0x30] sm:$0xff]
      %v2863 = vld [vmem:[%s2855 + $0x38] sm:$0xff]
      %v2864 = vld [vmem:[%s2855 + $0x40] sm:$0xff]
      %v2865 = vld [vmem:[%s2855 + $0x48] sm:$0xff]
      %v2866 = vld [vmem:[%s2855 + $0x50] sm:$0xff]
      %v2867 = vld [vmem:[%s2855 + $0x58] sm:$0xff]
      %v2868 = vld [vmem:[%s2855 + $0x60] sm:$0xff]
      %v2869 = vld [vmem:[%s2855 + $0x68] sm:$0xff]
      %v2870 = vld [vmem:[%s2855 + $0x70] sm:$0xff]
      %v2871 = vld [vmem:[%s2855 + $0x78] sm:$0xff]
      %v2872 = vld [vmem:[%s2855 + $0x80] sm:$0xff]
      %v2873 = vld [vmem:[%s2855 + $0x88] sm:$0xff]
      %v2874 = vld [vmem:[%s2855 + $0x90] sm:$0xff]
      %v2875 = vld [vmem:[%s2855 + $0x98] sm:$0xff]
      %v2876 = vld [vmem:[%s2855 + $0xa0] sm:$0xff]
      %v2877 = vld [vmem:[%s2855 + $0xa8] sm:$0xff]
      %v2878 = vld [vmem:[%s2855 + $0xb0] sm:$0xff]
      %v2879 = vld [vmem:[%s2855 + $0xb8] sm:$0xff]
      %v2880 = vld [vmem:[%s2855 + $0xc0] sm:$0xff]
      %v2881 = vld [vmem:[%s2855 + $0xc8] sm:$0xff]
      %v2882 = vld [vmem:[%s2855 + $0xd0] sm:$0xff]
      %v2883 = vld [vmem:[%s2855 + $0xd8] sm:$0xff]
      %v2884 = vld [vmem:[%s2855 + $0xe0] sm:$0xff]
      %v2885 = vld [vmem:[%s2855 + $0xe8] sm:$0xff]
      %v2886 = vld [vmem:[%s2855 + $0xf0] sm:$0xff]
      %v2887 = vld [vmem:[%s2855 + $0xf8] sm:$0xff]
      %v2888 = vmax.f32 %v2856, 0.0
      %v2889 = vmax.f32 %v2857, 0.0
      %v2890 = vmax.f32 %v2858, 0.0
      %v2891 = vmax.f32 %v2859, 0.0
      %v2892 = vmax.f32 %v2860, 0.0
      %v2893 = vmax.f32 %v2861, 0.0
      %v2894 = vmax.f32 %v2862, 0.0
      %v2895 = vmax.f32 %v2863, 0.0
      %v2896 = vmax.f32 %v2864, 0.0
      %v2897 = vmax.f32 %v2865, 0.0
      %v2898 = vmax.f32 %v2866, 0.0
      %v2899 = vmax.f32 %v2867, 0.0
      %v2900 = vmax.f32 %v2868, 0.0
      %v2901 = vmax.f32 %v2869, 0.0
      %v2902 = vmax.f32 %v2870, 0.0
      %v2903 = vmax.f32 %v2871, 0.0
      %v2904 = vmax.f32 %v2872, 0.0
      %v2905 = vmax.f32 %v2873, 0.0
      %v2906 = vmax.f32 %v2874, 0.0
      %v2907 = vmax.f32 %v2875, 0.0
      %v2908 = vmax.f32 %v2876, 0.0
      %v2909 = vmax.f32 %v2877, 0.0
      %v2910 = vmax.f32 %v2878, 0.0
      %v2911 = vmax.f32 %v2879, 0.0
      %v2912 = vmax.f32 %v2880, 0.0
      %v2913 = vmax.f32 %v2881, 0.0
      %v2914 = vmax.f32 %v2882, 0.0
      %v2915 = vmax.f32 %v2883, 0.0
      %v2916 = vmax.f32 %v2884, 0.0
      %v2917 = vmax.f32 %v2885, 0.0
      %v2918 = vmax.f32 %v2886, 0.0
      %v2919 = vmax.f32 %v2887, 0.0
      %s2920 = scalar_lea.vmem %s1, 1024
      %v2921 = vld [vmem:[%s2920] sm:$0xff]
      %v2922 = vld [vmem:[%s2920 + $0x8] sm:$0xff]
      %v2923 = vld [vmem:[%s2920 + $0x10] sm:$0xff]
      %v2924 = vld [vmem:[%s2920 + $0x18] sm:$0xff]
      %v2925 = vld [vmem:[%s2920 + $0x20] sm:$0xff]
      %v2926 = vld [vmem:[%s2920 + $0x28] sm:$0xff]
      %v2927 = vld [vmem:[%s2920 + $0x30] sm:$0xff]
      %v2928 = vld [vmem:[%s2920 + $0x38] sm:$0xff]
      %v2929 = vld [vmem:[%s2920 + $0x40] sm:$0xff]
      %v2930 = vld [vmem:[%s2920 + $0x48] sm:$0xff]
      %v2931 = vld [vmem:[%s2920 + $0x50] sm:$0xff]
      %v2932 = vld [vmem:[%s2920 + $0x58] sm:$0xff]
      %v2933 = vld [vmem:[%s2920 + $0x60] sm:$0xff]
      %v2934 = vld [vmem:[%s2920 + $0x68] sm:$0xff]
      %v2935 = vld [vmem:[%s2920 + $0x70] sm:$0xff]
      %v2936 = vld [vmem:[%s2920 + $0x78] sm:$0xff]
      %2937 = vmatprep.subr.mxu0 0.0
      %2938 = vmatpush1.msra.mxu0 %v2936
      %2939 = vmatprep.subr.mxu0 0.0
      %2940 = vmatpush1.msra.mxu0 %v2935
      %2941 = vmatprep.subr.mxu0 0.0
      %2942 = vmatpush1.msra.mxu0 %v2934
      %2943 = vmatprep.subr.mxu0 0.0
      %2944 = vmatpush1.msra.mxu0 %v2933
      %2945 = vmatprep.subr.mxu0 0.0
      %2946 = vmatpush1.msra.mxu0 %v2932
      %2947 = vmatprep.subr.mxu0 0.0
      %2948 = vmatpush1.msra.mxu0 %v2931
      %2949 = vmatprep.subr.mxu0 0.0
      %2950 = vmatpush1.msra.mxu0 %v2930
      %2951 = vmatprep.subr.mxu0 0.0
      %2952 = vmatpush1.msra.mxu0 %v2929
      %2953 = vmatprep.subr.mxu0 0.0
      %2954 = vmatpush1.msra.mxu0 %v2928
      %2955 = vmatprep.subr.mxu0 0.0
      %2956 = vmatpush1.msra.mxu0 %v2927
      %2957 = vmatprep.subr.mxu0 0.0
      %2958 = vmatpush1.msra.mxu0 %v2926
      %2959 = vmatprep.subr.mxu0 0.0
      %2960 = vmatpush1.msra.mxu0 %v2925
      %2961 = vmatprep.subr.mxu0 0.0
      %2962 = vmatpush1.msra.mxu0 %v2924
      %2963 = vmatprep.subr.mxu0 0.0
      %2964 = vmatpush1.msra.mxu0 %v2923
      %2965 = vmatprep.subr.mxu0 0.0
      %2966 = vmatpush1.msra.mxu0 %v2922
      %2967 = vmatprep.subr.mxu0 0.0
      %2968 = vmatpush1.msra.mxu0 %v2921
      %2969 = vmatprep.subr.mxu0 0.0
      %2970 = vmatpush2.msra.mxu0 0.0
      %2971 = vmatprep.subr.mxu0 0.0
      %2972 = vmatpush2.msra.mxu0 0.0
      %2973 = vmatprep.subr.mxu0 0.0
      %2974 = vmatpush2.msra.mxu0 0.0
      %2975 = vmatprep.subr.mxu0 0.0
      %2976 = vmatpush2.msra.mxu0 0.0
      %2977 = vmatprep.subr.mxu0 0.0
      %2978 = vmatpush2.msra.mxu0 0.0
      %2979 = vmatprep.subr.mxu0 0.0
      %2980 = vmatpush2.msra.mxu0 0.0
      %2981 = vmatprep.subr.mxu0 0.0
      %2982 = vmatpush2.msra.mxu0 0.0
      %2983 = vmatprep.subr.mxu0 0.0
      %2984 = vmatpush2.msra.mxu0 0.0
      %2985 = vmatprep.subr.mxu0 0.0
      %2986 = vmatpush2.msra.mxu0 0.0
      %2987 = vmatprep.subr.mxu0 0.0
      %2988 = vmatpush2.msra.mxu0 0.0
      %2989 = vmatprep.subr.mxu0 0.0
      %2990 = vmatpush2.msra.mxu0 0.0
      %2991 = vmatprep.subr.mxu0 0.0
      %2992 = vmatpush2.msra.mxu0 0.0
      %2993 = vmatprep.subr.mxu0 0.0
      %2994 = vmatpush2.msra.mxu0 0.0
      %2995 = vmatprep.subr.mxu0 0.0
      %2996 = vmatpush2.msra.mxu0 0.0
      %2997 = vmatprep.subr.mxu0 0.0
      %2998 = vmatpush2.msra.mxu0 0.0
      %2999 = vmatprep.subr.mxu0 0.0
      %3000 = vmatpush2.msra.mxu0 0.0
      %3001 = vmatprep.mubr.f32.mxu0 0.0
      %3002 = vmatmul.mubr.f32.gmra.mxu0 %v2888
      %v3003 = vpop.f32.mrf.mxu0
      %v3004 = vadd.f32 0.0, %v3003
      %v3005 = vpop.f32.mrf.mxu0
      %3006 = vmatprep.mubr.f32.mxu0 0.0
      %3007 = vmatmul.mubr.f32.gmra.mxu0 %v2889
      %v3008 = vpop.f32.mrf.mxu0
      %v3009 = vadd.f32 0.0, %v3008
      %v3010 = vpop.f32.mrf.mxu0
      %3011 = vmatprep.mubr.f32.mxu0 0.0
      %3012 = vmatmul.mubr.f32.gmra.mxu0 %v2890
      %v3013 = vpop.f32.mrf.mxu0
      %v3014 = vadd.f32 0.0, %v3013
      %v3015 = vpop.f32.mrf.mxu0
      %3016 = vmatprep.mubr.f32.mxu0 0.0
      %3017 = vmatmul.mubr.f32.gmra.mxu0 %v2891
      %v3018 = vpop.f32.mrf.mxu0
      %v3019 = vadd.f32 0.0, %v3018
      %v3020 = vpop.f32.mrf.mxu0
      %3021 = vmatprep.mubr.f32.mxu0 0.0
      %3022 = vmatmul.mubr.f32.gmra.mxu0 %v2892
      %v3023 = vpop.f32.mrf.mxu0
      %v3024 = vadd.f32 0.0, %v3023
      %v3025 = vpop.f32.mrf.mxu0
      %3026 = vmatprep.mubr.f32.mxu0 0.0
      %3027 = vmatmul.mubr.f32.gmra.mxu0 %v2893
      %v3028 = vpop.f32.mrf.mxu0
      %v3029 = vadd.f32 0.0, %v3028
      %v3030 = vpop.f32.mrf.mxu0
      %3031 = vmatprep.mubr.f32.mxu0 0.0
      %3032 = vmatmul.mubr.f32.gmra.mxu0 %v2894
      %v3033 = vpop.f32.mrf.mxu0
      %v3034 = vadd.f32 0.0, %v3033
      %v3035 = vpop.f32.mrf.mxu0
      %3036 = vmatprep.mubr.f32.mxu0 0.0
      %3037 = vmatmul.mubr.f32.gmra.mxu0 %v2895
      %v3038 = vpop.f32.mrf.mxu0
      %v3039 = vadd.f32 0.0, %v3038
      %v3040 = vpop.f32.mrf.mxu0
      %3041 = vmatprep.mubr.f32.mxu0 0.0
      %3042 = vmatmul.mubr.f32.gmra.mxu0 %v2896
      %v3043 = vpop.f32.mrf.mxu0
      %v3044 = vadd.f32 0.0, %v3043
      %v3045 = vpop.f32.mrf.mxu0
      %3046 = vmatprep.mubr.f32.mxu0 0.0
      %3047 = vmatmul.mubr.f32.gmra.mxu0 %v2897
      %v3048 = vpop.f32.mrf.mxu0
      %v3049 = vadd.f32 0.0, %v3048
      %v3050 = vpop.f32.mrf.mxu0
      %3051 = vmatprep.mubr.f32.mxu0 0.0
      %3052 = vmatmul.mubr.f32.gmra.mxu0 %v2898
      %v3053 = vpop.f32.mrf.mxu0
      %v3054 = vadd.f32 0.0, %v3053
      %v3055 = vpop.f32.mrf.mxu0
      %3056 = vmatprep.mubr.f32.mxu0 0.0
      %3057 = vmatmul.mubr.f32.gmra.mxu0 %v2899
      %v3058 = vpop.f32.mrf.mxu0
      %v3059 = vadd.f32 0.0, %v3058
      %v3060 = vpop.f32.mrf.mxu0
      %3061 = vmatprep.mubr.f32.mxu0 0.0
      %3062 = vmatmul.mubr.f32.gmra.mxu0 %v2900
      %v3063 = vpop.f32.mrf.mxu0
      %v3064 = vadd.f32 0.0, %v3063
      %v3065 = vpop.f32.mrf.mxu0
      %3066 = vmatprep.mubr.f32.mxu0 0.0
      %3067 = vmatmul.mubr.f32.gmra.mxu0 %v2901
      %v3068 = vpop.f32.mrf.mxu0
      %v3069 = vadd.f32 0.0, %v3068
      %v3070 = vpop.f32.mrf.mxu0
      %3071 = vmatprep.mubr.f32.mxu0 0.0
      %3072 = vmatmul.mubr.f32.gmra.mxu0 %v2902
      %v3073 = vpop.f32.mrf.mxu0
      %v3074 = vadd.f32 0.0, %v3073
      %v3075 = vpop.f32.mrf.mxu0
      %3076 = vmatprep.mubr.f32.mxu0 0.0
      %3077 = vmatmul.mubr.f32.gmra.mxu0 %v2903
      %v3078 = vpop.f32.mrf.mxu0
      %v3079 = vadd.f32 0.0, %v3078
      %v3080 = vpop.f32.mrf.mxu0
      %3081 = vmatprep.mubr.f32.mxu0 0.0
      %3082 = vmatmul.mubr.f32.gmra.mxu0 %v2904
      %v3083 = vpop.f32.mrf.mxu0
      %v3084 = vadd.f32 0.0, %v3083
      %v3085 = vpop.f32.mrf.mxu0
      %3086 = vmatprep.mubr.f32.mxu0 0.0
      %3087 = vmatmul.mubr.f32.gmra.mxu0 %v2905
      %v3088 = vpop.f32.mrf.mxu0
      %v3089 = vadd.f32 0.0, %v3088
      %v3090 = vpop.f32.mrf.mxu0
      %3091 = vmatprep.mubr.f32.mxu0 0.0
      %3092 = vmatmul.mubr.f32.gmra.mxu0 %v2906
      %v3093 = vpop.f32.mrf.mxu0
      %v3094 = vadd.f32 0.0, %v3093
      %v3095 = vpop.f32.mrf.mxu0
      %3096 = vmatprep.mubr.f32.mxu0 0.0
      %3097 = vmatmul.mubr.f32.gmra.mxu0 %v2907
      %v3098 = vpop.f32.mrf.mxu0
      %v3099 = vadd.f32 0.0, %v3098
      %v3100 = vpop.f32.mrf.mxu0
      %3101 = vmatprep.mubr.f32.mxu0 0.0
      %3102 = vmatmul.mubr.f32.gmra.mxu0 %v2908
      %v3103 = vpop.f32.mrf.mxu0
      %v3104 = vadd.f32 0.0, %v3103
      %v3105 = vpop.f32.mrf.mxu0
      %3106 = vmatprep.mubr.f32.mxu0 0.0
      %3107 = vmatmul.mubr.f32.gmra.mxu0 %v2909
      %v3108 = vpop.f32.mrf.mxu0
      %v3109 = vadd.f32 0.0, %v3108
      %v3110 = vpop.f32.mrf.mxu0
      %3111 = vmatprep.mubr.f32.mxu0 0.0
      %3112 = vmatmul.mubr.f32.gmra.mxu0 %v2910
      %v3113 = vpop.f32.mrf.mxu0
      %v3114 = vadd.f32 0.0, %v3113
      %v3115 = vpop.f32.mrf.mxu0
      %3116 = vmatprep.mubr.f32.mxu0 0.0
      %3117 = vmatmul.mubr.f32.gmra.mxu0 %v2911
      %v3118 = vpop.f32.mrf.mxu0
      %v3119 = vadd.f32 0.0, %v3118
      %v3120 = vpop.f32.mrf.mxu0
      %3121 = vmatprep.mubr.f32.mxu0 0.0
      %3122 = vmatmul.mubr.f32.gmra.mxu0 %v2912
      %v3123 = vpop.f32.mrf.mxu0
      %v3124 = vadd.f32 0.0, %v3123
      %v3125 = vpop.f32.mrf.mxu0
      %3126 = vmatprep.mubr.f32.mxu0 0.0
      %3127 = vmatmul.mubr.f32.gmra.mxu0 %v2913
      %v3128 = vpop.f32.mrf.mxu0
      %v3129 = vadd.f32 0.0, %v3128
      %v3130 = vpop.f32.mrf.mxu0
      %3131 = vmatprep.mubr.f32.mxu0 0.0
      %3132 = vmatmul.mubr.f32.gmra.mxu0 %v2914
      %v3133 = vpop.f32.mrf.mxu0
      %v3134 = vadd.f32 0.0, %v3133
      %v3135 = vpop.f32.mrf.mxu0
      %3136 = vmatprep.mubr.f32.mxu0 0.0
      %3137 = vmatmul.mubr.f32.gmra.mxu0 %v2915
      %v3138 = vpop.f32.mrf.mxu0
      %v3139 = vadd.f32 0.0, %v3138
      %v3140 = vpop.f32.mrf.mxu0
      %3141 = vmatprep.mubr.f32.mxu0 0.0
      %3142 = vmatmul.mubr.f32.gmra.mxu0 %v2916
      %v3143 = vpop.f32.mrf.mxu0
      %v3144 = vadd.f32 0.0, %v3143
      %v3145 = vpop.f32.mrf.mxu0
      %3146 = vmatprep.mubr.f32.mxu0 0.0
      %3147 = vmatmul.mubr.f32.gmra.mxu0 %v2917
      %v3148 = vpop.f32.mrf.mxu0
      %v3149 = vadd.f32 0.0, %v3148
      %v3150 = vpop.f32.mrf.mxu0
      %3151 = vmatprep.mubr.f32.mxu0 0.0
      %3152 = vmatmul.mubr.f32.gmra.mxu0 %v2918
      %v3153 = vpop.f32.mrf.mxu0
      %v3154 = vadd.f32 0.0, %v3153
      %v3155 = vpop.f32.mrf.mxu0
      %3156 = vmatprep.mubr.f32.mxu0 0.0
      %3157 = vmatmul.mubr.f32.gmra.mxu0 %v2919
      %v3158 = vpop.f32.mrf.mxu0
      %v3159 = vadd.f32 0.0, %v3158
      %v3160 = vpop.f32.mrf.mxu0
      %3161 = vdwg.mxu0
      %v3162 = vadd.f32 %v2823, %v3004
      %v3163 = vadd.f32 %v2824, %v3009
      %v3164 = vadd.f32 %v2825, %v3014
      %v3165 = vadd.f32 %v2826, %v3019
      %v3166 = vadd.f32 %v2827, %v3024
      %v3167 = vadd.f32 %v2828, %v3029
      %v3168 = vadd.f32 %v2829, %v3034
      %v3169 = vadd.f32 %v2830, %v3039
      %v3170 = vadd.f32 %v2831, %v3044
      %v3171 = vadd.f32 %v2832, %v3049
      %v3172 = vadd.f32 %v2833, %v3054
      %v3173 = vadd.f32 %v2834, %v3059
      %v3174 = vadd.f32 %v2835, %v3064
      %v3175 = vadd.f32 %v2836, %v3069
      %v3176 = vadd.f32 %v2837, %v3074
      %v3177 = vadd.f32 %v2838, %v3079
      %v3178 = vadd.f32 %v2839, %v3084
      %v3179 = vadd.f32 %v2840, %v3089
      %v3180 = vadd.f32 %v2841, %v3094
      %v3181 = vadd.f32 %v2842, %v3099
      %v3182 = vadd.f32 %v2843, %v3104
      %v3183 = vadd.f32 %v2844, %v3109
      %v3184 = vadd.f32 %v2845, %v3114
      %v3185 = vadd.f32 %v2846, %v3119
      %v3186 = vadd.f32 %v2847, %v3124
      %v3187 = vadd.f32 %v2848, %v3129
      %v3188 = vadd.f32 %v2849, %v3134
      %v3189 = vadd.f32 %v2850, %v3139
      %v3190 = vadd.f32 %v2851, %v3144
      %v3191 = vadd.f32 %v2852, %v3149
      %v3192 = vadd.f32 %v2853, %v3154
      %v3193 = vadd.f32 %v2854, %v3159
      %v3194 = vld [vmem:[%s2] sm:$0x1]
      %v3196 = vlaneseq
      %v3197 = vshrl.u32 %v3196, 7
      %v3198 = vsub.s32 0, %v3197
      %v3199 = vrot.slane %v3194, %v3198
      %v3201 = vadd.f32 %v3162, %v3199
      %v3202 = vadd.f32 %v3163, %v3199
      %v3203 = vadd.f32 %v3164, %v3199
      %v3204 = vadd.f32 %v3165, %v3199
      %v3205 = vadd.f32 %v3166, %v3199
      %v3206 = vadd.f32 %v3167, %v3199
      %v3207 = vadd.f32 %v3168, %v3199
      %v3208 = vadd.f32 %v3169, %v3199
      %v3209 = vadd.f32 %v3170, %v3199
      %v3210 = vadd.f32 %v3171, %v3199
      %v3211 = vadd.f32 %v3172, %v3199
      %v3212 = vadd.f32 %v3173, %v3199
      %v3213 = vadd.f32 %v3174, %v3199
      %v3214 = vadd.f32 %v3175, %v3199
      %v3215 = vadd.f32 %v3176, %v3199
      %v3216 = vadd.f32 %v3177, %v3199
      %v3217 = vadd.f32 %v3178, %v3199
      %v3218 = vadd.f32 %v3179, %v3199
      %v3219 = vadd.f32 %v3180, %v3199
      %v3220 = vadd.f32 %v3181, %v3199
      %v3221 = vadd.f32 %v3182, %v3199
      %v3222 = vadd.f32 %v3183, %v3199
      %v3223 = vadd.f32 %v3184, %v3199
      %v3224 = vadd.f32 %v3185, %v3199
      %v3225 = vadd.f32 %v3186, %v3199
      %v3226 = vadd.f32 %v3187, %v3199
      %v3227 = vadd.f32 %v3188, %v3199
      %v3228 = vadd.f32 %v3189, %v3199
      %v3229 = vadd.f32 %v3190, %v3199
      %v3230 = vadd.f32 %v3191, %v3199
      %v3231 = vadd.f32 %v3192, %v3199
      %v3232 = vadd.f32 %v3193, %v3199
      %3233 = vst [vmem:[%s204] sm:$0xff] %v3201
      %3234 = vst [vmem:[%s204 + $0x8] sm:$0xff] %v3202
      %3235 = vst [vmem:[%s204 + $0x10] sm:$0xff] %v3203
      %3236 = vst [vmem:[%s204 + $0x18] sm:$0xff] %v3204
      %3237 = vst [vmem:[%s204 + $0x20] sm:$0xff] %v3205
      %3238 = vst [vmem:[%s204 + $0x28] sm:$0xff] %v3206
      %3239 = vst [vmem:[%s204 + $0x30] sm:$0xff] %v3207
      %3240 = vst [vmem:[%s204 + $0x38] sm:$0xff] %v3208
      %3241 = vst [vmem:[%s204 + $0x40] sm:$0xff] %v3209
      %3242 = vst [vmem:[%s204 + $0x48] sm:$0xff] %v3210
      %3243 = vst [vmem:[%s204 + $0x50] sm:$0xff] %v3211
      %3244 = vst [vmem:[%s204 + $0x58] sm:$0xff] %v3212
      %3245 = vst [vmem:[%s204 + $0x60] sm:$0xff] %v3213
      %3246 = vst [vmem:[%s204 + $0x68] sm:$0xff] %v3214
      %3247 = vst [vmem:[%s204 + $0x70] sm:$0xff] %v3215
      %3248 = vst [vmem:[%s204 + $0x78] sm:$0xff] %v3216
      %3249 = vst [vmem:[%s204 + $0x80] sm:$0xff] %v3217
      %3250 = vst [vmem:[%s204 + $0x88] sm:$0xff] %v3218
      %3251 = vst [vmem:[%s204 + $0x90] sm:$0xff] %v3219
      %3252 = vst [vmem:[%s204 + $0x98] sm:$0xff] %v3220
      %3253 = vst [vmem:[%s204 + $0xa0] sm:$0xff] %v3221
      %3254 = vst [vmem:[%s204 + $0xa8] sm:$0xff] %v3222
      %3255 = vst [vmem:[%s204 + $0xb0] sm:$0xff] %v3223
      %3256 = vst [vmem:[%s204 + $0xb8] sm:$0xff] %v3224
      %3257 = vst [vmem:[%s204 + $0xc0] sm:$0xff] %v3225
      %3258 = vst [vmem:[%s204 + $0xc8] sm:$0xff] %v3226
      %3259 = vst [vmem:[%s204 + $0xd0] sm:$0xff] %v3227
      %3260 = vst [vmem:[%s204 + $0xd8] sm:$0xff] %v3228
      %3261 = vst [vmem:[%s204 + $0xe0] sm:$0xff] %v3229
      %3262 = vst [vmem:[%s204 + $0xe8] sm:$0xff] %v3230
      %3263 = vst [vmem:[%s204 + $0xf0] sm:$0xff] %v3231
      %3264 = vst [vmem:[%s204 + $0xf8] sm:$0xff] %v3232
      %v3265 = vadd.f32 %v3201, %v3202
      %v3266 = vadd.f32 %v3265, %v3203
      %v3267 = vadd.f32 %v3266, %v3204
      %v3268 = vadd.f32 %v3267, %v3205
      %v3269 = vadd.f32 %v3268, %v3206
      %v3270 = vadd.f32 %v3269, %v3207
      %v3271 = vadd.f32 %v3270, %v3208
      %v3272 = vadd.f32 %v3271, %v3209
      %v3273 = vadd.f32 %v3272, %v3210
      %v3274 = vadd.f32 %v3273, %v3211
      %v3275 = vadd.f32 %v3274, %v3212
      %v3276 = vadd.f32 %v3275, %v3213
      %v3277 = vadd.f32 %v3276, %v3214
      %v3278 = vadd.f32 %v3277, %v3215
      %v3279 = vadd.f32 %v3278, %v3216
      %v3280 = vadd.f32 %v3279, %v3217
      %v3281 = vadd.f32 %v3280, %v3218
      %v3282 = vadd.f32 %v3281, %v3219
      %v3283 = vadd.f32 %v3282, %v3220
      %v3284 = vadd.f32 %v3283, %v3221
      %v3285 = vadd.f32 %v3284, %v3222
      %v3286 = vadd.f32 %v3285, %v3223
      %v3287 = vadd.f32 %v3286, %v3224
      %v3288 = vadd.f32 %v3287, %v3225
      %v3289 = vadd.f32 %v3288, %v3226
      %v3290 = vadd.f32 %v3289, %v3227
      %v3291 = vadd.f32 %v3290, %v3228
      %v3292 = vadd.f32 %v3291, %v3229
      %v3293 = vadd.f32 %v3292, %v3230
      %v3294 = vadd.f32 %v3293, %v3231
      %v3295 = vadd.f32 %v3294, %v3232
      %v3296 = vrot.slane %v3295, 4
      %v3297 = vadd.f32 %v3295, %v3296
      %v3298 = vrot.slane %v3297, 2
      %v3299 = vadd.f32 %v3297, %v3298
      %v3300 = vrot.slane %v3299, 1
      %v3301 = vadd.f32 %v3299, %v3300
      %3302 = vst [vmem:[%s208] sm:$0x1] %v3301
      %v3303 = vmul.f32 %v3201, %v3201
      %v3304 = vmul.f32 %v3202, %v3202
      %v3305 = vmul.f32 %v3203, %v3203
      %v3306 = vmul.f32 %v3204, %v3204
      %v3307 = vmul.f32 %v3205, %v3205
      %v3308 = vmul.f32 %v3206, %v3206
      %v3309 = vmul.f32 %v3207, %v3207
      %v3310 = vmul.f32 %v3208, %v3208
      %v3311 = vmul.f32 %v3209, %v3209
      %v3312 = vmul.f32 %v3210, %v3210
      %v3313 = vmul.f32 %v3211, %v3211
      %v3314 = vmul.f32 %v3212, %v3212
      %v3315 = vmul.f32 %v3213, %v3213
      %v3316 = vmul.f32 %v3214, %v3214
      %v3317 = vmul.f32 %v3215, %v3215
      %v3318 = vmul.f32 %v3216, %v3216
      %v3319 = vmul.f32 %v3217, %v3217
      %v3320 = vmul.f32 %v3218, %v3218
      %v3321 = vmul.f32 %v3219, %v3219
      %v3322 = vmul.f32 %v3220, %v3220
      %v3323 = vmul.f32 %v3221, %v3221
      %v3324 = vmul.f32 %v3222, %v3222
      %v3325 = vmul.f32 %v3223, %v3223
      %v3326 = vmul.f32 %v3224, %v3224
      %v3327 = vmul.f32 %v3225, %v3225
      %v3328 = vmul.f32 %v3226, %v3226
      %v3329 = vmul.f32 %v3227, %v3227
      %v3330 = vmul.f32 %v3228, %v3228
      %v3331 = vmul.f32 %v3229, %v3229
      %v3332 = vmul.f32 %v3230, %v3230
      %v3333 = vmul.f32 %v3231, %v3231
      %v3334 = vmul.f32 %v3232, %v3232
      %v3335 = vadd.f32 %v3303, %v3304
      %v3336 = vadd.f32 %v3335, %v3305
      %v3337 = vadd.f32 %v3336, %v3306
      %v3338 = vadd.f32 %v3337, %v3307
      %v3339 = vadd.f32 %v3338, %v3308
      %v3340 = vadd.f32 %v3339, %v3309
      %v3341 = vadd.f32 %v3340, %v3310
      %v3342 = vadd.f32 %v3341, %v3311
      %v3343 = vadd.f32 %v3342, %v3312
      %v3344 = vadd.f32 %v3343, %v3313
      %v3345 = vadd.f32 %v3344, %v3314
      %v3346 = vadd.f32 %v3345, %v3315
      %v3347 = vadd.f32 %v3346, %v3316
      %v3348 = vadd.f32 %v3347, %v3317
      %v3349 = vadd.f32 %v3348, %v3318
      %v3350 = vadd.f32 %v3349, %v3319
      %v3351 = vadd.f32 %v3350, %v3320
      %v3352 = vadd.f32 %v3351, %v3321
      %v3353 = vadd.f32 %v3352, %v3322
      %v3354 = vadd.f32 %v3353, %v3323
      %v3355 = vadd.f32 %v3354, %v3324
      %v3356 = vadd.f32 %v3355, %v3325
      %v3357 = vadd.f32 %v3356, %v3326
      %v3358 = vadd.f32 %v3357, %v3327
      %v3359 = vadd.f32 %v3358, %v3328
      %v3360 = vadd.f32 %v3359, %v3329
      %v3361 = vadd.f32 %v3360, %v3330
      %v3362 = vadd.f32 %v3361, %v3331
      %v3363 = vadd.f32 %v3362, %v3332
      %v3364 = vadd.f32 %v3363, %v3333
      %v3365 = vadd.f32 %v3364, %v3334
      %v3366 = vrot.slane %v3365, 4
      %v3367 = vadd.f32 %v3365, %v3366
      %v3368 = vrot.slane %v3367, 2
      %v3369 = vadd.f32 %v3367, %v3368
      %v3370 = vrot.slane %v3369, 1
      %v3371 = vadd.f32 %v3369, %v3370
      %3372 = vst [vmem:[%s208 + $0x1] sm:$0x1] %v3371
      %p3373 = scmp.lt.s32.totalorder %s16, 1
      %s3374 = scalar_select %p3373, %s16, 1
      %s3375 = smul.addr %s3374, 32
      %s3376 = smul.addr %s3375, 8
      %s3377 = scalar_lea.vmem %s3, %s3376
      %p3378 = scmp.lt.s32.totalorder %s16, 1
      %s3379 = scalar_select %p3378, %s16, 1
      %s3380 = smul.addr %s3379, 2
      %s3381 = scalar_lea.vmem %s4, %s3380
      // Predicated region
      $region33: #{triplet_unit_forward.2} parent=31 // pred_check
        %p3382 = pneg %p102
      $region34: #{triplet_unit_forward.2} parent=31 // pred_check_branch
        %3384 = sbr.rel (%p3382) target = $region36
      $region35: #{triplet_unit_forward.2} parent=31 // pred_region
        _
      $region36: #{triplet_unit_forward.2} parent=31 // pred_fallthru
        _
      // Predicated region
      $region37: #{triplet_unit_forward.2} parent=31 // pred_check
        %p3385 = pneg %p128
      $region38: #{triplet_unit_forward.2} parent=31 // pred_check_branch
        %3387 = sbr.rel (%p3385) target = $region40
      $region39: #{triplet_unit_forward.2} parent=31 // pred_region
        _
      $region40: #{triplet_unit_forward.2} parent=31 // pred_fallthru
        _
    $region32: #{triplet_unit_forward.2} parent=5 // pred_fallthru
      _
    %p3388 = scmp.le.s32.totalorder 2, %s11
    // Predicated region
    $region41: #{triplet_unit_forward.2} parent=5 // pred_check
      %p3389 = pneg %p3388
    $region42: #{triplet_unit_forward.2} parent=5 // pred_check_branch
      %3391 = sbr.rel (%p3389) target = $region44
    $region43: #{triplet_unit_forward.2} parent=5 // pred_region
      %s3392 = ssub.s32 %s11, 2
      // Predicated region
      $region45: #{triplet_unit_forward.2} parent=43 // pred_check
        %p3393 = pneg %p108
      $region46: #{triplet_unit_forward.2} parent=43 // pred_check_branch
        %3395 = sbr.rel (%p3393) target = $region48
      $region47: #{triplet_unit_forward.2} parent=43 // pred_region
        %p3396 = scmp.lt.s32.totalorder %s17, 1
        %s3397 = scalar_select %p3396, %s17, 1
        %s3398 = smul.addr %s3397, 32
        %s3399 = smul.addr %s3398, 8
        %s3400 = scalar_lea.vmem %s3, %s3399
      $region48: #{triplet_unit_forward.2} parent=43 // pred_fallthru
        _
      // Predicated region
      $region49: #{triplet_unit_forward.2} parent=43 // pred_check
        %p3401 = pneg %p134
      $region50: #{triplet_unit_forward.2} parent=43 // pred_check_branch
        %3403 = sbr.rel (%p3401) target = $region52
      $region51: #{triplet_unit_forward.2} parent=43 // pred_region
        %p3404 = scmp.lt.s32.totalorder %s17, 1
        %s3405 = scalar_select %p3404, %s17, 1
        %s3406 = smul.addr %s3405, 2
        %s3407 = scalar_lea.vmem %s4, %s3406
      $region52: #{triplet_unit_forward.2} parent=43 // pred_fallthru
        _
    $region44: #{triplet_unit_forward.2} parent=5 // pred_fallthru
      _
  $region6: #{triplet_unit_forward.2} parent=0 // loop_footer
    %s15 = sadd.s32 1, %s11
  $region7: #{triplet_unit_forward.2} parent=0 // loop_footer_branch
    %10 = sbr.rel target = $region3
  $region8: #{triplet_unit_forward.2} parent=0 // loop_exit
    _

</llo_original>
